<compile_context>
chip_gen: v7x
topology: tpu7x:2x2x1
jax: 0.10.0
libtpu: 0.0.40
codegen_flags: <defaults>
</compile_context>

<pallas_src>
import math

import jax
import jax.numpy as jnp
from jax import lax
from jax.experimental import pallas as pl
from jax.experimental.pallas import tpu as pltpu

# ---------------------------------------------------------------------------
# Static model description: (Cin, Cout, kernel_size, has_batchnorm)
# ---------------------------------------------------------------------------
_LAYERS = (
    (3, 128, 10, True),
    (128, 320, 1, True),
    (320, 320, 1, True),
    (320, 320, 1, True),
    (320, 128, 1, True),
    (128, 128, 3, True),
    (128, 512, 1, True),
    (512, 128, 5, True),
    (128, 128, 5, True),
    (128, 128, 3, True),
    (128, 128, 5, True),
    (128, 128, 5, True),
    (128, 256, 1, True),
    (256, 64, 7, True),
    (64, 3, 7, False),
)
_BN_EPS = 1e-5
_LANE = 128

# Execution plan: each segment = (spatial head layer id, (fused 1x1 tail ids)).
_PLAN = (
    (0, (1, 2, 3, 4)),    # k=10 conv (row taps in kernel, col taps pre-folded) + 4x 1x1
    (5, (6,)),            # k=3 128->128, fused 1x1 128->512
    (7, ()),              # k=5 512->128
    (8, ()),              # k=5 128->128
    (9, ()),              # k=3 128->128
    (10, ()),             # k=5 128->128
    (11, (12,)),          # k=5 128->128, fused 1x1 128->256
    (13, ()),             # k=7 256->64
    (14, ()),             # k=7 64->3 (padded to 128 lanes), no BN, ReLU
)


def _round_up(x, m):
    return (x + m - 1) // m * m


def _same_pad(k):
    # PyTorch Conv2d(padding='same', stride=1): left/top = (k-1)//2, rest right/bottom.
    lo = (k - 1) // 2
    return lo, (k - 1) - lo


def _phys_vmem_bytes():
    try:
        info = pltpu.get_tpu_info()
        v = int(getattr(info, "vmem_capacity_bytes", 0))
        if v > 0:
            return v
    except Exception:
        pass
    return 64 * 1024 * 1024          # conservative (v7x-class) fallback


_PHYS_VMEM = _phys_vmem_bytes()
if _PHYS_VMEM > 96 * 1024 * 1024:    # v5e / v6e: 128 MiB VMEM per core
    _VMEM_LIMIT = 96 * 1024 * 1024
    _ACT_BUDGET = 64 * 1024 * 1024
else:                                # v7x-class: 64 MiB per TensorCore
    _VMEM_LIMIT = 40 * 1024 * 1024
    _ACT_BUDGET = 24 * 1024 * 1024


def _head_conf(lid):
    """Static config for a spatial 'head' layer: (kh, kw, cin_in_kernel, pack_cols)."""
    cin, cout, k, _ = _LAYERS[lid]
    if lid == 0:
        # Column taps folded into channels by the XLA-side pre-expansion.
        return k, 1, k * cin, False
    pack = (cin % 128 == 0) and (k * cin <= 768)   # pack K for cin=128 layers
    return k, k, cin, pack


def _const_spec(a):
    zeros = (0,) * a.ndim
    return pl.BlockSpec(a.shape, lambda b, i, _z=zeros: _z)


# ---------------------------------------------------------------------------
# Fused kernel: spatial conv (kh x kw taps, folded BN + ReLU) followed by a
# chain of 1x1 convs (folded BN + ReLU), all on one (batch, row-tile) block.
# ---------------------------------------------------------------------------
def _make_conv_chain_kernel(kh, kw, th, w, cin, cout_head, cout_last, pack, n_tail):
    def kernel(*refs):
        x_ref, halo_ref = refs[0], refs[1]
        o_ref = refs[-1]
        lyr = refs[2:-1]
        w0_ref, s0_ref, b0_ref = lyr[0], lyr[1], lyr[2]

        # (th + halo, wp, cin) slab: current tile + <=16 halo rows only.
        slab = jnp.concatenate([x_ref[0], halo_ref[0]], axis=0)

        acc = jnp.zeros((th * w, cout_head), jnp.float32)
        for i in range(kh):
            rows = slab[i:i + th]                               # (th, wp, cin)
            if kw == 1:
                patch = rows.reshape(th * w, cin)
                acc = acc + jnp.dot(patch, w0_ref[i],
                                    preferred_element_type=jnp.float32)
            elif pack:
                # One K = kw*cin matmul per row tap (better MXU fill on v6e/v7x).
                cols = [rows[:, j:j + w, :] for j in range(kw)]
                patch = jnp.concatenate(cols, axis=-1).reshape(th * w, kw * cin)
                acc = acc + jnp.dot(patch, w0_ref[i],
                                    preferred_element_type=jnp.float32)
            else:
                for j in range(kw):
                    patch = rows[:, j:j + w, :].reshape(th * w, cin)
                    acc = acc + jnp.dot(patch, w0_ref[i * kw + j],
                                        preferred_element_type=jnp.float32)

        h = jnp.maximum(acc * s0_ref[...] + b0_ref[...], 0.0).astype(jnp.bfloat16)

        for t in range(n_tail):
            wt, st, bt = lyr[3 + 3 * t], lyr[4 + 3 * t], lyr[5 + 3 * t]
            y = jnp.dot(h, wt[...], preferred_element_type=jnp.float32)
            h = jnp.maximum(y * st[...] + bt[...], 0.0).astype(jnp.bfloat16)

        o_ref[0] = h.reshape(th, w, cout_last)
    return kernel


def _pick_tile_rows(n, hgt, w, wp, cin, kw, pack, chain_couts, weight_bytes,
                    align, rows_cap):
    """Static per-row VMEM model -> rows per tile (multiple of `align`)."""
    k_eff = kw * cin if (pack or kw == 1) else cin
    per_row = 3 * wp * cin * 2                           # input tile x2 buffers + slab
    per_row += w * k_eff * 2                             # im2col patch (bf16)
    per_row += w * chain_couts[0] * 4                    # head f32 accumulator
    per_row += w * sum(sorted(chain_couts)[-2:]) * 6     # ~2 live chain acts (f32+bf16)
    per_row += 2 * w * chain_couts[-1] * 2               # output tile x2 buffers
    budget = _ACT_BUDGET - 2 * weight_bytes
    rows = max(align, budget // max(per_row, 1))
    rows = min(rows, _round_up(hgt, align))
    if n % 2 == 1 and _round_up(hgt, align) > align:
        # Keep >=2 row tiles so a 'parallel' axis has >=2 steps (v7x: 2 TCs).
        rows = min(rows, _round_up(-(-hgt // 2), align))
    if rows_cap is not None:
        rows = min(rows, rows_cap)
    rows = max(align, (rows // align) * align)
    return int(rows)


def _conv_chain(x, head, tails, kh, kw, pack, rows_cap=None):
    """Spatial conv (+folded BN+ReLU) fused with a chain of 1x1 tail layers.

    x: (N, H, W, Cin) bf16.  head weight: (kh, K, Cout) [packed / kw folded]
    or (kh*kw, Cin, Cout); tails: list of ((Cin, Cout), (1, Cout), (1, Cout)).
    """
    n, hgt, w, cin = x.shape
    w0, s0, b0 = head
    cout_head = w0.shape[-1]
    cout_last = tails[-1][0].shape[-1] if tails else cout_head

    lo_r, _ = _same_pad(kh)
    lo_c, hi_c = _same_pad(kw) if kw > 1 else (0, 0)
    wp = w + lo_c + hi_c
    halo = _round_up(kh - 1, 8)            # 8 (k<=7) or 16 (k=10) halo rows
    align = halo

    chain_couts = [cout_head] + [t[0].shape[-1] for t in tails]
    wbytes = 0
    for (wt, st, bt) in [head] + list(tails):
        wbytes += wt.size * wt.dtype.itemsize + st.size * 4 + bt.size * 4

    th = _pick_tile_rows(n, hgt, w, wp, cin, kw, pack, chain_couts, wbytes,
                         align, rows_cap)
    num_h = -(-hgt // th)
    hp = num_h * th + halo
    xp = jnp.pad(x, ((0, 0), (lo_r, hp - hgt - lo_r), (lo_c, hi_c), (0, 0)))

    bpt = th // halo                        # halo-blocks per row tile
    in_specs = [
        pl.BlockSpec((1, th, wp, cin), lambda b, i: (b, i, 0, 0)),
        pl.BlockSpec((1, halo, wp, cin), lambda b, i: (b, (i + 1) * bpt, 0, 0)),
    ]
    operands = [xp, xp]
    for (wt, st, bt) in [head] + list(tails):
        for a in (wt, st, bt):
            in_specs.append(_const_spec(a))
            operands.append(a)

    kernel = _make_conv_chain_kernel(kh, kw, th, w, cin, cout_head, cout_last,
                                     pack, len(tails))
    out = pl.pallas_call(
        kernel,
        out_shape=jax.ShapeDtypeStruct((n, num_h * th, w, cout_last), jnp.bfloat16),
        grid=(n, num_h),
        in_specs=in_specs,
        out_specs=pl.BlockSpec((1, th, w, cout_last), lambda b, i: (b, i, 0, 0)),
        compiler_params=pltpu.CompilerParams(
            dimension_semantics=("parallel", "parallel"),
            vmem_limit_bytes=_VMEM_LIMIT),
    )(*operands)

    # Rows of the padded tail tile hold ReLU(shift) values; this slice is
    # required for correctness (do not drop/fuse it away).
    return out[:, :hgt] if num_h * th != hgt else out


# ---------------------------------------------------------------------------
# Parameters (BatchNorm folded in inference mode, matching model.eval()).
# ---------------------------------------------------------------------------
def init_params(key):
    raw = []
    for (cin, cout, k, has_bn) in _LAYERS:
        key, kw_, kb_ = jax.random.split(key, 3)
        fan_in = cin * k * k
        wb = math.sqrt(6.0 / fan_in)
        weight = jax.random.uniform(kw_, (cout, cin, k, k), jnp.float32, -wb, wb)
        bb = 1.0 / math.sqrt(fan_in)
        bias = jax.random.uniform(kb_, (cout,), jnp.float32, -bb, bb)
        if has_bn:
            gamma = jnp.ones((cout,), jnp.float32)
            beta = jnp.zeros((cout,), jnp.float32)
            mean = jnp.zeros((cout,), jnp.float32)
            var = jnp.ones((cout,), jnp.float32)
            scale = gamma / jnp.sqrt(var + _BN_EPS)
            shift = beta - mean * scale + bias * scale
        else:
            scale = jnp.ones((cout,), jnp.float32)
            shift = bias
        raw.append((weight, scale, shift))
    return raw


def pack_params(raw):
    """Kernel-ready weight layouts, computed once outside the jitted forward."""
    packed = []
    last = len(_LAYERS) - 1
    for lid, ((weight, scale, shift), (cin, cout, k, _)) in enumerate(zip(raw, _LAYERS)):
        wb = weight.astype(jnp.bfloat16)                       # (Cout, Cin, k, k)
        if k == 1:
            w_p = jnp.transpose(wb.reshape(cout, cin), (1, 0))  # (Cin, Cout)
        else:
            kh, kw, _, pack = _head_conf(lid)
            w_hwio = jnp.transpose(wb, (2, 3, 1, 0))            # (k, k, Cin, Cout)
            if kw == 1 or pack:
                w_p = w_hwio.reshape(kh, k * cin, cout)          # (kh, k*Cin, Cout)
            else:
                w_p = w_hwio.reshape(k * k, cin, cout)           # (k*k, Cin, Cout)
        s_p = scale.reshape(1, cout).astype(jnp.float32)
        b_p = shift.reshape(1, cout).astype(jnp.float32)
        if lid == last:                                          # lane-dense final store
            pad = _LANE - cout
            w_p = jnp.pad(w_p, ((0, 0),) * (w_p.ndim - 1) + ((0, pad),))
            s_p = jnp.pad(s_p, ((0, 0), (0, pad)), constant_values=1.0)
            b_p = jnp.pad(b_p, ((0, 0), (0, pad)))
        packed.append((w_p, s_p, b_p))
    return tuple(packed)


# ---------------------------------------------------------------------------
# Forward pass (params contains arrays only; all structure is static).
# ---------------------------------------------------------------------------
@jax.jit
def deblur_forward(x_nchw, params):
    """x_nchw: (N, 3, H, W) f32 -> (N, 3, H, W) f32 (same semantics as DeblurCNN)."""
    n, _, hgt, w = x_nchw.shape
    x = jnp.transpose(x_nchw, (0, 2, 3, 1)).astype(jnp.bfloat16)     # NHWC bf16

    # Layer 0 (k=10, cin=3): fold the 10 column taps into channels on the XLA
    # side (30-channel image, ~60 B/px) so the fused kernel only handles the
    # 10 row taps as K=30 matmuls -- no (N*H*W, 300) im2col buffer in HBM.
    k0 = _LAYERS[0][2]
    lo0, hi0 = _same_pad(k0)
    xc = jnp.pad(x, ((0, 0), (0, 0), (lo0, hi0), (0, 0)))
    x = jnp.concatenate([xc[:, :, j:j + w, :] for j in range(k0)], axis=-1)

    for head_id, tail_ids in _PLAN:
        kh, kw, _, pack = _head_conf(head_id)
        x = _conv_chain(x, params[head_id], [params[t] for t in tail_ids],
                        kh, kw, pack)

    x = x[..., :_LAYERS[-1][1]]                                      # 128 -> 3 channels
    return jnp.transpose(x, (0, 3, 1, 2)).astype(jnp.float32)


# ---------------------------------------------------------------------------
# Pure-JAX (XLA conv) f32 reference for correctness checking only.
# ---------------------------------------------------------------------------
def reference_forward(x_nchw, raw):
    x = jnp.transpose(x_nchw, (0, 2, 3, 1)).astype(jnp.float32)
    for (weight, scale, shift), (cin, cout, k, _) in zip(raw, _LAYERS):
        lo, hi = _same_pad(k)
        y = lax.conv_general_dilated(
            x, jnp.transpose(weight, (2, 3, 1, 0)),
            window_strides=(1, 1), padding=[(lo, hi), (lo, hi)],
            dimension_numbers=("NHWC", "HWIO", "NHWC"))
        x = jnp.maximum(y * scale.reshape(1, 1, 1, cout)
                        + shift.reshape(1, 1, 1, cout), 0.0)
    return jnp.transpose(x, (0, 3, 1, 2))


if __name__ == "__main__":
    key = jax.random.PRNGKey(0)
    key, kx = jax.random.split(key)
    x = jax.random.normal(kx, (2, 3, 16, 16), jnp.float32)

    raw = init_params(key)
    params = pack_params(raw)

    # --- unit check: spatial kernel with forced 8-row tiles (halo crossing +
    # packed-K path) against lax.conv in f32 ------------------------------------
    kc, cc = 5, 128
    key, k1, k2, k3, k4 = jax.random.split(key, 5)
    wt = jax.random.normal(k1, (cc, cc, kc, kc), jnp.float32) / math.sqrt(cc * kc * kc)
    sc = jax.random.uniform(k2, (cc,), jnp.float32, 0.5, 1.5)
    sh = jax.random.normal(k3, (cc,), jnp.float32) * 0.1
    xin = jax.random.normal(k4, (1, 24, 16, cc), jnp.float32)
    w_pk = jnp.transpose(wt.astype(jnp.bfloat16), (2, 3, 1, 0)).reshape(kc, kc * cc, cc)
    got = _conv_chain(xin.astype(jnp.bfloat16),
                      (w_pk, sc.reshape(1, cc), sh.reshape(1, cc)), [],
                      kc, kc, True, rows_cap=8)
    lo, hi = _same_pad(kc)
    ref1 = lax.conv_general_dilated(
        xin, jnp.transpose(wt, (2, 3, 1, 0)), (1, 1), [(lo, hi), (lo, hi)],
        dimension_numbers=("NHWC", "HWIO", "NHWC"))
    ref1 = jnp.maximum(ref1 * sc + sh, 0.0)
    err1 = float(jnp.max(jnp.abs(got.astype(jnp.float32) - ref1))
                 / (jnp.max(jnp.abs(ref1)) + 1e-12))
    assert err1 < 0.03, f"spatial kernel mismatch vs lax.conv: rel_err={err1}"

    # --- end-to-end forward ------------------------------------------------------
    out = jax.block_until_ready(deblur_forward(x, params))
    assert out.shape == (2, 3, 16, 16), out.shape
    assert bool(jnp.all(jnp.isfinite(out)))
    assert bool(jnp.all(out >= 0.0))          # final ReLU (present in the PyTorch spec)

    ref = reference_forward(x, raw)
    rel_err = float(jnp.max(jnp.abs(out - ref)) / (jnp.max(jnp.abs(ref)) + 1e-12))
    assert rel_err < 0.1, f"mismatch vs reference: rel_err={rel_err}"

    print("KERNEL_OK")
</pallas_src>

<mosaic_0001>
module attributes {stable_mosaic.version = 11 : i64} {
  func.func @kernel(%arg0: i32, %arg1: i32, %arg2: memref<1x8x20x128xbf16, #tpu.memory_space<vmem>>, %arg3: memref<1x8x20x128xbf16, #tpu.memory_space<vmem>>, %arg4: memref<5x640x128xbf16, #tpu.memory_space<vmem>>, %arg5: memref<1x128xf32, #tpu.memory_space<vmem>>, %arg6: memref<1x128xf32, #tpu.memory_space<vmem>>, %arg7: memref<1x8x16x128xbf16, #tpu.memory_space<vmem>>) attributes {dimension_semantics = [#tpu.dimension_semantics<parallel>, #tpu.dimension_semantics<parallel>], iteration_bounds = array<i64: 1, 3>, scalar_prefetch = 0 : i64, scratch_operands = 0 : i64, tpu.core_type = #tpu.core_type<tc>, window_params = [{transform_indices = @transform_0, window_bounds = array<i64: 1, 8, 20, 128>}, {transform_indices = @transform_1, window_bounds = array<i64: 1, 8, 20, 128>}, {pipeline_mode = #tpu.pipeline_mode<synchronous>, transform_indices = @transform_2, window_bounds = array<i64: 5, 640, 128>}, {pipeline_mode = #tpu.pipeline_mode<synchronous>, transform_indices = @transform_3, window_bounds = array<i64: 1, 128>}, {pipeline_mode = #tpu.pipeline_mode<synchronous>, transform_indices = @transform_4, window_bounds = array<i64: 1, 128>}, {transform_indices = @transform_5, window_bounds = array<i64: 1, 8, 16, 128>}]} {
    %c0 = arith.constant 0 : index
    %c0_0 = arith.constant 0 : index
    %c0_1 = arith.constant 0 : index
    %c0_2 = arith.constant 0 : index
    %0 = vector.load %arg2[%c0, %c0_0, %c0_1, %c0_2] : memref<1x8x20x128xbf16, #tpu.memory_space<vmem>>, vector<1x8x20x128xbf16>
    %1 = vector.shape_cast %0 : vector<1x8x20x128xbf16> to vector<8x20x128xbf16>
    %c0_3 = arith.constant 0 : index
    %c0_4 = arith.constant 0 : index
    %c0_5 = arith.constant 0 : index
    %c0_6 = arith.constant 0 : index
    %2 = vector.load %arg3[%c0_3, %c0_4, %c0_5, %c0_6] : memref<1x8x20x128xbf16, #tpu.memory_space<vmem>>, vector<1x8x20x128xbf16>
    %3 = vector.shape_cast %2 : vector<1x8x20x128xbf16> to vector<8x20x128xbf16>
    %4 = tpu.concatenate %1, %3 in 0 : vector<8x20x128xbf16>, vector<8x20x128xbf16> -> vector<16x20x128xbf16>
    %cst = arith.constant 0.000000e+00 : f32
    %5 = vector.broadcast %cst : f32 to vector<128x128xf32>
    %6 = vector.extract_strided_slice %4 {offsets = [0, 0, 0], sizes = [8, 20, 128], strides = [1, 1, 1]} : vector<16x20x128xbf16> to vector<8x20x128xbf16>
    %7 = vector.extract_strided_slice %6 {offsets = [0, 0, 0], sizes = [8, 16, 128], strides = [1, 1, 1]} : vector<8x20x128xbf16> to vector<8x16x128xbf16>
    %8 = vector.extract_strided_slice %6 {offsets = [0, 1, 0], sizes = [8, 16, 128], strides = [1, 1, 1]} : vector<8x20x128xbf16> to vector<8x16x128xbf16>
    %9 = vector.extract_strided_slice %6 {offsets = [0, 2, 0], sizes = [8, 16, 128], strides = [1, 1, 1]} : vector<8x20x128xbf16> to vector<8x16x128xbf16>
    %10 = vector.extract_strided_slice %6 {offsets = [0, 3, 0], sizes = [8, 16, 128], strides = [1, 1, 1]} : vector<8x20x128xbf16> to vector<8x16x128xbf16>
    %11 = vector.extract_strided_slice %6 {offsets = [0, 4, 0], sizes = [8, 16, 128], strides = [1, 1, 1]} : vector<8x20x128xbf16> to vector<8x16x128xbf16>
    %12 = tpu.concatenate %7, %8, %9, %10, %11 in 2 : vector<8x16x128xbf16>, vector<8x16x128xbf16>, vector<8x16x128xbf16>, vector<8x16x128xbf16>, vector<8x16x128xbf16> -> vector<8x16x640xbf16>
    %13 = vector.shape_cast %12 : vector<8x16x640xbf16> to vector<128x640xbf16>
    %c0_7 = arith.constant 0 : index
    %c0_8 = arith.constant 0 : index
    %c0_9 = arith.constant 0 : index
    %14 = vector.load %arg4[%c0_7, %c0_8, %c0_9] : memref<5x640x128xbf16, #tpu.memory_space<vmem>>, vector<1x640x128xbf16>
    %15 = vector.shape_cast %14 : vector<1x640x128xbf16> to vector<640x128xbf16>
    %cst_10 = arith.constant dense<0.000000e+00> : vector<128x128xf32>
    %16 = tpu.matmul %13, %15, %cst_10 {dimension_numbers = #tpu.dot_dimension_numbers<[1], [0], [0], [1], [0, 0, 1, 1], [], []>} : vector<128x640xbf16>, vector<640x128xbf16>, vector<128x128xf32> -> vector<128x128xf32>
    %17 = arith.addf %5, %16 : vector<128x128xf32>
    %18 = vector.extract_strided_slice %4 {offsets = [1, 0, 0], sizes = [8, 20, 128], strides = [1, 1, 1]} : vector<16x20x128xbf16> to vector<8x20x128xbf16>
    %19 = vector.extract_strided_slice %18 {offsets = [0, 0, 0], sizes = [8, 16, 128], strides = [1, 1, 1]} : vector<8x20x128xbf16> to vector<8x16x128xbf16>
    %20 = vector.extract_strided_slice %18 {offsets = [0, 1, 0], sizes = [8, 16, 128], strides = [1, 1, 1]} : vector<8x20x128xbf16> to vector<8x16x128xbf16>
    %21 = vector.extract_strided_slice %18 {offsets = [0, 2, 0], sizes = [8, 16, 128], strides = [1, 1, 1]} : vector<8x20x128xbf16> to vector<8x16x128xbf16>
    %22 = vector.extract_strided_slice %18 {offsets = [0, 3, 0], sizes = [8, 16, 128], strides = [1, 1, 1]} : vector<8x20x128xbf16> to vector<8x16x128xbf16>
    %23 = vector.extract_strided_slice %18 {offsets = [0, 4, 0], sizes = [8, 16, 128], strides = [1, 1, 1]} : vector<8x20x128xbf16> to vector<8x16x128xbf16>
    %24 = tpu.concatenate %19, %20, %21, %22, %23 in 2 : vector<8x16x128xbf16>, vector<8x16x128xbf16>, vector<8x16x128xbf16>, vector<8x16x128xbf16>, vector<8x16x128xbf16> -> vector<8x16x640xbf16>
    %25 = vector.shape_cast %24 : vector<8x16x640xbf16> to vector<128x640xbf16>
    %c1 = arith.constant 1 : index
    %c0_11 = arith.constant 0 : index
    %c0_12 = arith.constant 0 : index
    %26 = vector.load %arg4[%c1, %c0_11, %c0_12] : memref<5x640x128xbf16, #tpu.memory_space<vmem>>, vector<1x640x128xbf16>
    %27 = vector.shape_cast %26 : vector<1x640x128xbf16> to vector<640x128xbf16>
    %cst_13 = arith.constant dense<0.000000e+00> : vector<128x128xf32>
    %28 = tpu.matmul %25, %27, %cst_13 {dimension_numbers = #tpu.dot_dimension_numbers<[1], [0], [0], [1], [0, 0, 1, 1], [], []>} : vector<128x640xbf16>, vector<640x128xbf16>, vector<128x128xf32> -> vector<128x128xf32>
    %29 = arith.addf %17, %28 : vector<128x128xf32>
    %30 = vector.extract_strided_slice %4 {offsets = [2, 0, 0], sizes = [8, 20, 128], strides = [1, 1, 1]} : vector<16x20x128xbf16> to vector<8x20x128xbf16>
    %31 = vector.extract_strided_slice %30 {offsets = [0, 0, 0], sizes = [8, 16, 128], strides = [1, 1, 1]} : vector<8x20x128xbf16> to vector<8x16x128xbf16>
    %32 = vector.extract_strided_slice %30 {offsets = [0, 1, 0], sizes = [8, 16, 128], strides = [1, 1, 1]} : vector<8x20x128xbf16> to vector<8x16x128xbf16>
    %33 = vector.extract_strided_slice %30 {offsets = [0, 2, 0], sizes = [8, 16, 128], strides = [1, 1, 1]} : vector<8x20x128xbf16> to vector<8x16x128xbf16>
    %34 = vector.extract_strided_slice %30 {offsets = [0, 3, 0], sizes = [8, 16, 128], strides = [1, 1, 1]} : vector<8x20x128xbf16> to vector<8x16x128xbf16>
    %35 = vector.extract_strided_slice %30 {offsets = [0, 4, 0], sizes = [8, 16, 128], strides = [1, 1, 1]} : vector<8x20x128xbf16> to vector<8x16x128xbf16>
    %36 = tpu.concatenate %31, %32, %33, %34, %35 in 2 : vector<8x16x128xbf16>, vector<8x16x128xbf16>, vector<8x16x128xbf16>, vector<8x16x128xbf16>, vector<8x16x128xbf16> -> vector<8x16x640xbf16>
    %37 = vector.shape_cast %36 : vector<8x16x640xbf16> to vector<128x640xbf16>
    %c2 = arith.constant 2 : index
    %c0_14 = arith.constant 0 : index
    %c0_15 = arith.constant 0 : index
    %38 = vector.load %arg4[%c2, %c0_14, %c0_15] : memref<5x640x128xbf16, #tpu.memory_space<vmem>>, vector<1x640x128xbf16>
    %39 = vector.shape_cast %38 : vector<1x640x128xbf16> to vector<640x128xbf16>
    %cst_16 = arith.constant dense<0.000000e+00> : vector<128x128xf32>
    %40 = tpu.matmul %37, %39, %cst_16 {dimension_numbers = #tpu.dot_dimension_numbers<[1], [0], [0], [1], [0, 0, 1, 1], [], []>} : vector<128x640xbf16>, vector<640x128xbf16>, vector<128x128xf32> -> vector<128x128xf32>
    %41 = arith.addf %29, %40 : vector<128x128xf32>
    %42 = vector.extract_strided_slice %4 {offsets = [3, 0, 0], sizes = [8, 20, 128], strides = [1, 1, 1]} : vector<16x20x128xbf16> to vector<8x20x128xbf16>
    %43 = vector.extract_strided_slice %42 {offsets = [0, 0, 0], sizes = [8, 16, 128], strides = [1, 1, 1]} : vector<8x20x128xbf16> to vector<8x16x128xbf16>
    %44 = vector.extract_strided_slice %42 {offsets = [0, 1, 0], sizes = [8, 16, 128], strides = [1, 1, 1]} : vector<8x20x128xbf16> to vector<8x16x128xbf16>
    %45 = vector.extract_strided_slice %42 {offsets = [0, 2, 0], sizes = [8, 16, 128], strides = [1, 1, 1]} : vector<8x20x128xbf16> to vector<8x16x128xbf16>
    %46 = vector.extract_strided_slice %42 {offsets = [0, 3, 0], sizes = [8, 16, 128], strides = [1, 1, 1]} : vector<8x20x128xbf16> to vector<8x16x128xbf16>
    %47 = vector.extract_strided_slice %42 {offsets = [0, 4, 0], sizes = [8, 16, 128], strides = [1, 1, 1]} : vector<8x20x128xbf16> to vector<8x16x128xbf16>
    %48 = tpu.concatenate %43, %44, %45, %46, %47 in 2 : vector<8x16x128xbf16>, vector<8x16x128xbf16>, vector<8x16x128xbf16>, vector<8x16x128xbf16>, vector<8x16x128xbf16> -> vector<8x16x640xbf16>
    %49 = vector.shape_cast %48 : vector<8x16x640xbf16> to vector<128x640xbf16>
    %c3 = arith.constant 3 : index
    %c0_17 = arith.constant 0 : index
    %c0_18 = arith.constant 0 : index
    %50 = vector.load %arg4[%c3, %c0_17, %c0_18] : memref<5x640x128xbf16, #tpu.memory_space<vmem>>, vector<1x640x128xbf16>
    %51 = vector.shape_cast %50 : vector<1x640x128xbf16> to vector<640x128xbf16>
    %cst_19 = arith.constant dense<0.000000e+00> : vector<128x128xf32>
    %52 = tpu.matmul %49, %51, %cst_19 {dimension_numbers = #tpu.dot_dimension_numbers<[1], [0], [0], [1], [0, 0, 1, 1], [], []>} : vector<128x640xbf16>, vector<640x128xbf16>, vector<128x128xf32> -> vector<128x128xf32>
    %53 = arith.addf %41, %52 : vector<128x128xf32>
    %54 = vector.extract_strided_slice %4 {offsets = [4, 0, 0], sizes = [8, 20, 128], strides = [1, 1, 1]} : vector<16x20x128xbf16> to vector<8x20x128xbf16>
    %55 = vector.extract_strided_slice %54 {offsets = [0, 0, 0], sizes = [8, 16, 128], strides = [1, 1, 1]} : vector<8x20x128xbf16> to vector<8x16x128xbf16>
    %56 = vector.extract_strided_slice %54 {offsets = [0, 1, 0], sizes = [8, 16, 128], strides = [1, 1, 1]} : vector<8x20x128xbf16> to vector<8x16x128xbf16>
    %57 = vector.extract_strided_slice %54 {offsets = [0, 2, 0], sizes = [8, 16, 128], strides = [1, 1, 1]} : vector<8x20x128xbf16> to vector<8x16x128xbf16>
    %58 = vector.extract_strided_slice %54 {offsets = [0, 3, 0], sizes = [8, 16, 128], strides = [1, 1, 1]} : vector<8x20x128xbf16> to vector<8x16x128xbf16>
    %59 = vector.extract_strided_slice %54 {offsets = [0, 4, 0], sizes = [8, 16, 128], strides = [1, 1, 1]} : vector<8x20x128xbf16> to vector<8x16x128xbf16>
    %60 = tpu.concatenate %55, %56, %57, %58, %59 in 2 : vector<8x16x128xbf16>, vector<8x16x128xbf16>, vector<8x16x128xbf16>, vector<8x16x128xbf16>, vector<8x16x128xbf16> -> vector<8x16x640xbf16>
    %61 = vector.shape_cast %60 : vector<8x16x640xbf16> to vector<128x640xbf16>
    %c4 = arith.constant 4 : index
    %c0_20 = arith.constant 0 : index
    %c0_21 = arith.constant 0 : index
    %62 = vector.load %arg4[%c4, %c0_20, %c0_21] : memref<5x640x128xbf16, #tpu.memory_space<vmem>>, vector<1x640x128xbf16>
    %63 = vector.shape_cast %62 : vector<1x640x128xbf16> to vector<640x128xbf16>
    %cst_22 = arith.constant dense<0.000000e+00> : vector<128x128xf32>
    %64 = tpu.matmul %61, %63, %cst_22 {dimension_numbers = #tpu.dot_dimension_numbers<[1], [0], [0], [1], [0, 0, 1, 1], [], []>} : vector<128x640xbf16>, vector<640x128xbf16>, vector<128x128xf32> -> vector<128x128xf32>
    %65 = arith.addf %53, %64 : vector<128x128xf32>
    %c0_23 = arith.constant 0 : index
    %c0_24 = arith.constant 0 : index
    %66 = vector.load %arg5[%c0_23, %c0_24] : memref<1x128xf32, #tpu.memory_space<vmem>>, vector<1x128xf32>
    %67 = vector.broadcast %66 : vector<1x128xf32> to vector<128x128xf32>
    %68 = arith.mulf %65, %67 : vector<128x128xf32>
    %c0_25 = arith.constant 0 : index
    %c0_26 = arith.constant 0 : index
    %69 = vector.load %arg6[%c0_25, %c0_26] : memref<1x128xf32, #tpu.memory_space<vmem>>, vector<1x128xf32>
    %70 = vector.broadcast %69 : vector<1x128xf32> to vector<128x128xf32>
    %71 = arith.addf %68, %70 : vector<128x128xf32>
    %cst_27 = arith.constant 0.000000e+00 : f32
    %72 = vector.broadcast %cst_27 : f32 to vector<128x128xf32>
    %73 = arith.maximumf %71, %72 : vector<128x128xf32>
    %74 = arith.truncf %73 : vector<128x128xf32> to vector<128x128xbf16>
    %75 = vector.shape_cast %74 : vector<128x128xbf16> to vector<8x16x128xbf16>
    %c0_28 = arith.constant 0 : index
    %c0_29 = arith.constant 0 : index
    %c0_30 = arith.constant 0 : index
    %c0_31 = arith.constant 0 : index
    %76 = vector.load %arg7[%c0_28, %c0_29, %c0_30, %c0_31] : memref<1x8x16x128xbf16, #tpu.memory_space<vmem>>, vector<1x8x16x128xbf16>
    %77 = vector.shape_cast %76 : vector<1x8x16x128xbf16> to vector<8x16x128xbf16>
    %78 = vector.shape_cast %75 : vector<8x16x128xbf16> to vector<1x8x16x128xbf16>
    tpu.vector_store %arg7[%c0_28, %c0_29, %c0_30, %c0_31], %78 {strides = array<i32>} : memref<1x8x16x128xbf16, #tpu.memory_space<vmem>>, vector<1x8x16x128xbf16>,
    return
  }
  func.func @transform_0(%arg0: i32, %arg1: i32) -> (i32, i32, i32, i32) {
    %c0_i32 = arith.constant 0 : i32
    %c0_i32_0 = arith.constant 0 : i32
    %c0_i32_1 = arith.constant 0 : i32
    return %arg0, %arg1, %c0_i32, %c0_i32_0 : i32, i32, i32, i32
  }
  func.func @transform_1(%arg0: i32, %arg1: i32) -> (i32, i32, i32, i32) {
    %c1_i32 = arith.constant 1 : i32
    %0 = arith.addi %arg1, %c1_i32 : i32
    %c1_i32_0 = arith.constant 1 : i32
    %1 = arith.muli %0, %c1_i32_0 : i32
    %c0_i32 = arith.constant 0 : i32
    %c0_i32_1 = arith.constant 0 : i32
    %c0_i32_2 = arith.constant 0 : i32
    return %arg0, %1, %c0_i32, %c0_i32_1 : i32, i32, i32, i32
  }
  func.func @transform_2(%arg0: i32, %arg1: i32) -> (i32, i32, i32) {
    %c0_i32 = arith.constant 0 : i32
    %c0_i32_0 = arith.constant 0 : i32
    %c0_i32_1 = arith.constant 0 : i32
    %c0_i32_2 = arith.constant 0 : i32
    return %c0_i32, %c0_i32_0, %c0_i32_1 : i32, i32, i32
  }
  func.func @transform_3(%arg0: i32, %arg1: i32) -> (i32, i32) {
    %c0_i32 = arith.constant 0 : i32
    %c0_i32_0 = arith.constant 0 : i32
    %c0_i32_1 = arith.constant 0 : i32
    return %c0_i32, %c0_i32_0 : i32, i32
  }
  func.func @transform_4(%arg0: i32, %arg1: i32) -> (i32, i32) {
    %c0_i32 = arith.constant 0 : i32
    %c0_i32_0 = arith.constant 0 : i32
    %c0_i32_1 = arith.constant 0 : i32
    return %c0_i32, %c0_i32_0 : i32, i32
  }
  func.func @transform_5(%arg0: i32, %arg1: i32) -> (i32, i32, i32, i32) {
    %c0_i32 = arith.constant 0 : i32
    %c0_i32_0 = arith.constant 0 : i32
    %c0_i32_1 = arith.constant 0 : i32
    return %arg0, %arg1, %c0_i32, %c0_i32_0 : i32, i32, i32, i32
  }
}

</mosaic_0001>

<llo_original>
// kernel: tpu_custom_call.1
$region0: #{tpu_custom_call.1}
  #allocation0 [shape = 'u32[]', space=smem, size = 0x4, offset = 0x4, fixed_abs, tag = 'smem constant byte address 0x4 - core index']
  #allocation1 [shape = 'u32[144,128]{1,0:T(1,128)}', space=vmem, size = 0x12000, scoped, tag = 'internal scratch']
  %s0 = inlined_call_operand.vmem [shape: bf16[1,32,20,128], index: 0, kind: input, shape index: {}]
  %s1 = inlined_call_operand.vmem [shape: bf16[1,32,20,128], index: 1, kind: input, shape index: {}]
  %s2 = inlined_call_operand.hbm [shape: bf16[5,640,128], index: 2, kind: input, shape index: {}]
  %s3 = inlined_call_operand.vmem [shape: f32[1,128], index: 3, kind: input, shape index: {}]
  %s4 = inlined_call_operand.vmem [shape: f32[1,128], index: 4, kind: input, shape index: {}]
  %s5 = inlined_call_operand.hbm [shape: bf16[1,24,16,128], index: 5, kind: output, shape index: {}]
  %s6 = sld [smem:[#allocation0]]
  $region57: #{tpu_custom_call.1} parent=0
    _
  %s8 = ssub.s32 1, %s6
  %s9 = scalar_select 0, %s8, %s6
  $region1: #{tpu_custom_call.1} parent=0
    #allocation2 [shape = 'u8[819200]{0}', space=vmem, size = 0xc8000, scoped, tag = 'input window, operand 2, single buffered']
    #allocation3 [shape = 's32[2]{0}', space=sflag, size = 0x8, scoped, tag = 'scoped memory for tpu_custom_call.1']
    #allocation4 [shape = 's32[2]{0}', space=sflag, size = 0x8, scoped, tag = 'scoped memory for tpu_custom_call.1']
    #allocation5 [shape = 'u8[65536]{0}', space=vmem, size = 0x10000, scoped, tag = 'output window, operand 0']
    %10 = vsyncpa [#allocation3], 0
    %11 = vsyncpa [#allocation4], 0
    %s12 = scalar_lea.sflag [#allocation4], 1
    %13 = vsyncpa %s12, 0
    loop: start=0, step=1, limit=5
    $region2: #{tpu_custom_call.1} parent=1 // loop_pre_header
      _
    $region3: #{tpu_custom_call.1} parent=1 // loop_header
      %s15 = sphi 0, %s19
      %p16 = scmp.ge.s32.totalorder %s15, 5
      %s22 = sphi 0, %s34
      %s23 = sphi 0, %s30
      %s24 = sphi 0, %s22
      %s25 = sphi 0, %s23
      %s26 = sphi 0, %s24
      %s27 = sphi 0, %s25
      %s39 = sphi 0, %s41
      %s42 = sphi 0, %s39
      %s43 = sphi 0, %s42
      %s59 = sphi 0, %s43
      %s69 = sphi 0, %s71
      %s72 = sphi 0, %s69
      %s73 = sphi 0, %s72
      %s89 = sphi 0, %s73
      %s93 = sphi 0, %s93
      %s95 = sphi 0, %s93
      %s96 = sphi 0, %s95
      %s110 = sphi 0, %s96
      %s114 = sphi 0, %s114
      %s116 = sphi 0, %s114
      %s117 = sphi 0, %s116
      %s131 = sphi 0, %s117
      %s135 = sphi 0, %s135
      %s137 = sphi 0, %s135
      %s138 = sphi 0, %s137
      %s152 = sphi 0, %s138
      %s160 = sphi 0, %s162
      %s163 = sphi 0, %s160
      %s164 = sphi 0, %s163
      %s180 = sphi 0, %s164
    $region4: #{tpu_custom_call.1} parent=1 // loop_header_branch
      %18 = sbr.rel (%p16) target = $region8
    $region5: #{tpu_custom_call.1} parent=1 // loop_body
      %s20 = ssub.s32 %s15, 1
      %s21 = ssub.s32 %s15, 2
      %s28 = sadd.s32 1, %s23
      %p29 = scmp.ge.s32.totalorder %s28, 3
      %s30 = scalar_select %p29, 0, %s28
      %s31 = sadd.s32 1, %s22
      %s32 = scalar_select %p29, %s31, %s22
      %p33 = scmp.ge.s32.totalorder %s32, 1
      %s34 = scalar_select %p33, 0, %s32
      %s35 = ssub.s32 %s22, %s34
      %s36 = ssub.s32 %s23, %s30
      %s37 = sor.u32 %s35, %s36
      %p38 = scmp.eq.s32.totalorder %s37, 0
      %s40 = sadd.s32 %s39, 1
      %s41 = scalar_select %p38, %s39, %s40
      %p44 = pneg %p38
      %p45 = scmp.eq.s32.totalorder %s15, 2
      %p46 = por %p44, %p45
      %p47 = scmp.ne.s32.totalorder %s39, %s42
      %p48 = scmp.eq.s32.totalorder %s15, 0
      %p49 = por %p47, %p48
      %p50 = scmp.ne.s32.totalorder %s39, %s42
      %p51 = scmp.eq.s32.totalorder %s20, 2
      %p52 = por %p50, %p51
      %p53 = scmp.ne.s32.totalorder %s42, %s43
      %p54 = scmp.eq.s32.totalorder %s20, 0
      %p55 = por %p53, %p54
      %p56 = scmp.ne.s32.totalorder %s42, %s43
      %p57 = scmp.eq.s32.totalorder %s21, 2
      %p58 = por %p56, %p57
      %p60 = scmp.ne.s32.totalorder %s43, %s59
      %p61 = scmp.eq.s32.totalorder %s21, 0
      %p62 = por %p60, %p61
      %s63 = sadd.s32 %s23, 1
      %s64 = sadd.s32 %s30, 1
      %s65 = ssub.s32 %s22, %s34
      %s66 = ssub.s32 %s63, %s64
      %s67 = sor.u32 %s65, %s66
      %p68 = scmp.eq.s32.totalorder %s67, 0
      %s70 = sadd.s32 %s69, 1
      %s71 = scalar_select %p68, %s69, %s70
      %p74 = pneg %p68
      %p75 = scmp.eq.s32.totalorder %s15, 2
      %p76 = por %p74, %p75
      %p77 = scmp.ne.s32.totalorder %s69, %s72
      %p78 = scmp.eq.s32.totalorder %s15, 0
      %p79 = por %p77, %p78
      %p80 = scmp.ne.s32.totalorder %s69, %s72
      %p81 = scmp.eq.s32.totalorder %s20, 2
      %p82 = por %p80, %p81
      %p83 = scmp.ne.s32.totalorder %s72, %s73
      %p84 = scmp.eq.s32.totalorder %s20, 0
      %p85 = por %p83, %p84
      %p86 = scmp.ne.s32.totalorder %s72, %s73
      %p87 = scmp.eq.s32.totalorder %s21, 2
      %p88 = por %p86, %p87
      %p90 = scmp.ne.s32.totalorder %s73, %s89
      %p91 = scmp.eq.s32.totalorder %s21, 0
      %p92 = por %p90, %p91
      %s94 = sadd.s32 %s93, 1
      %p97 = scmp.eq.s32.totalorder %s15, 2
      %p98 = scmp.ne.s32.totalorder %s93, %s95
      %p99 = scmp.eq.s32.totalorder %s15, 0
      %p100 = por %p98, %p99
      %p101 = scmp.ne.s32.totalorder %s93, %s95
      %p102 = scmp.eq.s32.totalorder %s20, 2
      %p103 = por %p101, %p102
      %p104 = scmp.ne.s32.totalorder %s95, %s96
      %p105 = scmp.eq.s32.totalorder %s20, 0
      %p106 = por %p104, %p105
      %p107 = scmp.ne.s32.totalorder %s95, %s96
      %p108 = scmp.eq.s32.totalorder %s21, 2
      %p109 = por %p107, %p108
      %p111 = scmp.ne.s32.totalorder %s96, %s110
      %p112 = scmp.eq.s32.totalorder %s21, 0
      %p113 = por %p111, %p112
      %s115 = sadd.s32 %s114, 1
      %p118 = scmp.eq.s32.totalorder %s15, 2
      %p119 = scmp.ne.s32.totalorder %s114, %s116
      %p120 = scmp.eq.s32.totalorder %s15, 0
      %p121 = por %p119, %p120
      %p122 = scmp.ne.s32.totalorder %s114, %s116
      %p123 = scmp.eq.s32.totalorder %s20, 2
      %p124 = por %p122, %p123
      %p125 = scmp.ne.s32.totalorder %s116, %s117
      %p126 = scmp.eq.s32.totalorder %s20, 0
      %p127 = por %p125, %p126
      %p128 = scmp.ne.s32.totalorder %s116, %s117
      %p129 = scmp.eq.s32.totalorder %s21, 2
      %p130 = por %p128, %p129
      %p132 = scmp.ne.s32.totalorder %s117, %s131
      %p133 = scmp.eq.s32.totalorder %s21, 0
      %p134 = por %p132, %p133
      %s136 = sadd.s32 %s135, 1
      %p139 = scmp.eq.s32.totalorder %s15, 2
      %p140 = scmp.ne.s32.totalorder %s135, %s137
      %p141 = scmp.eq.s32.totalorder %s15, 0
      %p142 = por %p140, %p141
      %p143 = scmp.ne.s32.totalorder %s135, %s137
      %p144 = scmp.eq.s32.totalorder %s20, 2
      %p145 = por %p143, %p144
      %p146 = scmp.ne.s32.totalorder %s137, %s138
      %p147 = scmp.eq.s32.totalorder %s20, 0
      %p148 = por %p146, %p147
      %p149 = scmp.ne.s32.totalorder %s137, %s138
      %p150 = scmp.eq.s32.totalorder %s21, 2
      %p151 = por %p149, %p150
      %p153 = scmp.ne.s32.totalorder %s138, %s152
      %p154 = scmp.eq.s32.totalorder %s21, 0
      %p155 = por %p153, %p154
      %s156 = ssub.s32 %s22, %s34
      %s157 = ssub.s32 %s23, %s30
      %s158 = sor.u32 %s156, %s157
      %p159 = scmp.eq.s32.totalorder %s158, 0
      %s161 = sadd.s32 %s160, 1
      %s162 = scalar_select %p159, %s160, %s161
      %p165 = pneg %p159
      %p166 = scmp.eq.s32.totalorder %s15, 2
      %p167 = por %p165, %p166
      %p168 = scmp.ne.s32.totalorder %s160, %s163
      %p169 = scmp.eq.s32.totalorder %s15, 0
      %p170 = por %p168, %p169
      %p171 = scmp.ne.s32.totalorder %s160, %s163
      %p172 = scmp.eq.s32.totalorder %s20, 2
      %p173 = por %p171, %p172
      %p174 = scmp.ne.s32.totalorder %s163, %s164
      %p175 = scmp.eq.s32.totalorder %s20, 0
      %p176 = por %p174, %p175
      %p177 = scmp.ne.s32.totalorder %s163, %s164
      %p178 = scmp.eq.s32.totalorder %s21, 2
      %p179 = por %p177, %p178
      %p181 = scmp.ne.s32.totalorder %s164, %s180
      %p182 = scmp.eq.s32.totalorder %s21, 0
      %p183 = por %p181, %p182
      %p184 = scmp.le.s32.totalorder 1, %s15
      %p185 = scmp.lt.s32.totalorder %s15, 4
      %p186 = pnand %p184, %p185
      %p187 = pneg %p186
      // Predicated region
      $region9: #{tpu_custom_call.1} parent=5 // pred_check
        _
      $region10: #{tpu_custom_call.1} parent=5 // pred_check_branch
        %189 = sbr.rel (%p186) target = $region12
      $region11: #{tpu_custom_call.1} parent=5 // pred_region
        %s190 = ssub.s32 %s15, 1
        // Predicated region
        $region13: #{tpu_custom_call.1} parent=11 // pred_check
          %p191 = pneg %p106
        $region14: #{tpu_custom_call.1} parent=11 // pred_check_branch
          %193 = sbr.rel (%p191) target = $region16
        $region15: #{tpu_custom_call.1} parent=11 // pred_region
          %s195 = ssub.s32 25600, 25600
          %196 = vsyncadd [#allocation3], %s195
          %s197 = sshll.u32 [#allocation2], 4
          %s198 = int_to_ptr.vmem [resolvable:$true] %s197
          %203 = dma.hbm_to_vmem [thread:$0]  %s2, 25600, %s198, [#allocation3], 64, 64, 4
        $region16: #{tpu_custom_call.1} parent=11 // pred_fallthru
          _
        // Predicated region
        $region17: #{tpu_custom_call.1} parent=11 // pred_check
          %p204 = pneg %p127
        $region18: #{tpu_custom_call.1} parent=11 // pred_check_branch
          %206 = sbr.rel (%p204) target = $region20
        $region19: #{tpu_custom_call.1} parent=11 // pred_region
          _
        $region20: #{tpu_custom_call.1} parent=11 // pred_fallthru
          _
        // Predicated region
        $region21: #{tpu_custom_call.1} parent=11 // pred_check
          %p207 = pneg %p148
        $region22: #{tpu_custom_call.1} parent=11 // pred_check_branch
          %209 = sbr.rel (%p207) target = $region24
        $region23: #{tpu_custom_call.1} parent=11 // pred_region
          _
        $region24: #{tpu_custom_call.1} parent=11 // pred_fallthru
          _
      $region12: #{tpu_custom_call.1} parent=5 // pred_fallthru
        _
      %p210 = scmp.lt.s32.totalorder %s15, 3
      // Predicated region
      $region25: #{tpu_custom_call.1} parent=5 // pred_check
        %p211 = pneg %p210
      $region26: #{tpu_custom_call.1} parent=5 // pred_check_branch
        %213 = sbr.rel (%p211) target = $region28
      $region27: #{tpu_custom_call.1} parent=5 // pred_region
        // Predicated region
        $region29: #{tpu_custom_call.1} parent=27 // pred_check
          %p214 = pneg %p49
        $region30: #{tpu_custom_call.1} parent=27 // pred_check_branch
          %216 = sbr.rel (%p214) target = $region32
        $region31: #{tpu_custom_call.1} parent=27 // pred_region
          %s217 = smul.u32 8, %s23
          %p218 = scmp.lt.s32.totalorder %s22, 0
          %s219 = scalar_select %p218, %s22, 0
          %p220 = scmp.lt.s32.totalorder %s217, 31
          %s221 = scalar_select %p220, %s217, 31
          %s222 = smul.addr %s221, 3
          %s223 = smul.addr %s219, 96
          %s224 = sadd.s32 %s222, %s223
          %s225 = smul.addr %s224, 4
          %s226 = scalar_lea.vmem %s0, %s225
          %s227 = smul.u32 8, %s23
        $region32: #{tpu_custom_call.1} parent=27 // pred_fallthru
          _
        // Predicated region
        $region33: #{tpu_custom_call.1} parent=27 // pred_check
          %p228 = pneg %p79
        $region34: #{tpu_custom_call.1} parent=27 // pred_check_branch
          %230 = sbr.rel (%p228) target = $region36
        $region35: #{tpu_custom_call.1} parent=27 // pred_region
          %s231 = sadd.s32 %s23, 1
          %s232 = smul.u32 8, %s231
          %p233 = scmp.lt.s32.totalorder %s22, 0
          %s234 = scalar_select %p233, %s22, 0
          %p235 = scmp.lt.s32.totalorder %s232, 31
          %s236 = scalar_select %p235, %s232, 31
          %s237 = smul.addr %s236, 3
          %s238 = smul.addr %s234, 96
          %s239 = sadd.s32 %s237, %s238
          %s240 = smul.addr %s239, 4
          %s241 = scalar_lea.vmem %s1, %s240
          %s242 = sadd.s32 %s23, 1
          %s243 = smul.u32 8, %s242
        $region36: #{tpu_custom_call.1} parent=27 // pred_fallthru
          _
      $region28: #{tpu_custom_call.1} parent=5 // pred_fallthru
        _
      %p244 = scmp.le.s32.totalorder 1, %s15
      %p245 = scmp.lt.s32.totalorder %s15, 4
      %p246 = pnand %p244, %p245
      %p247 = pneg %p246
      // Predicated region
      $region37: #{tpu_custom_call.1} parent=5 // pred_check
        _
      $region38: #{tpu_custom_call.1} parent=5 // pred_check_branch
        %249 = sbr.rel (%p246) target = $region40
      $region39: #{tpu_custom_call.1} parent=5 // pred_region
        %s250 = ssub.s32 %s15, 1
        // Predicated region
        $region41: #{tpu_custom_call.1} parent=39 // pred_check
          %p251 = pneg %p106
        $region42: #{tpu_custom_call.1} parent=39 // pred_check_branch
          %253 = sbr.rel (%p251) target = $region44
        $region43: #{tpu_custom_call.1} parent=39 // pred_region
          %254 = dma.done [#allocation3], 25600
        $region44: #{tpu_custom_call.1} parent=39 // pred_fallthru
          _
        %s255 = smul.u32 8, %s25
        %p256 = scmp.lt.s32.totalorder %s24, 0
        %s257 = scalar_select %p256, %s24, 0
        %p258 = scmp.lt.s32.totalorder %s255, 31
        %s259 = scalar_select %p258, %s255, 31
        %s260 = smul.addr %s259, 3
        %s261 = smul.addr %s257, 96
        %s262 = sadd.s32 %s260, %s261
        %s263 = smul.addr %s262, 4
        %s264 = scalar_lea.vmem %s0, %s263
        %p265 = pneg %p55
        %p266 = pneg %p52
        %s267 = sadd.s32 %s25, 1
        %s268 = smul.u32 8, %s267
        %p269 = scmp.lt.s32.totalorder %s24, 0
        %s270 = scalar_select %p269, %s24, 0
        %p271 = scmp.lt.s32.totalorder %s268, 31
        %s272 = scalar_select %p271, %s268, 31
        %s273 = smul.addr %s272, 3
        %s274 = smul.addr %s270, 96
        %s275 = sadd.s32 %s273, %s274
        %s276 = smul.addr %s275, 4
        %s277 = scalar_lea.vmem %s1, %s276
        %p278 = pneg %p85
        %p279 = pneg %p82
        %p280 = pneg %p106
        %p281 = pneg %p103
        %p282 = pneg %p127
        %p283 = pneg %p124
        %p284 = pneg %p148
        %p285 = pneg %p145
        %p286 = pneg %p176
        %p287 = pneg %p173
        %s288 = sand.u32 %s163, 1
        %s289 = scalar_lea.sflag [#allocation4], %s288
        %s290 = sand.u32 %s163, 1
        %s291 = smul.addr %s290, 64
        %s292 = scalar_lea.vmem [#allocation5], %s291
        %s293 = smul.u32 8, %s25
        %p294 = scmp.lt.s32.totalorder %s24, 0
        %s295 = scalar_select %p294, %s24, 0
        %p296 = scmp.lt.s32.totalorder %s293, 31
        %s297 = scalar_select %p296, %s293, 31
        %s298 = smul.addr %s297, 3
        %s299 = smul.addr %s295, 96
        %s300 = sadd.s32 %s298, %s299
        %s301 = smul.addr %s300, 4
        %s302 = scalar_lea.vmem %s0, %s301
        %s303 = smul.u32 8, %s25
        %s304 = sadd.s32 %s25, 1
        %s305 = smul.u32 8, %s304
        %p306 = scmp.lt.s32.totalorder %s24, 0
        %s307 = scalar_select %p306, %s24, 0
        %p308 = scmp.lt.s32.totalorder %s305, 31
        %s309 = scalar_select %p308, %s305, 31
        %s310 = smul.addr %s309, 3
        %s311 = smul.addr %s307, 96
        %s312 = sadd.s32 %s310, %s311
        %s313 = smul.addr %s312, 4
        %s314 = scalar_lea.vmem %s1, %s313
        %s315 = sadd.s32 %s25, 1
        %s316 = smul.u32 8, %s315
        %s317 = smul.u32 8, %s25
        %v319 = vld [vmem:[%s302] sm:$0xf]
        %v320 = vld [vmem:[%s302 + $0x4] sm:$0xf]
        %v321 = vld [vmem:[%s302 + $0x8] sm:$0x3]
        %v322 = vld [vmem:[%s302 + $0xc] sm:$0xf]
        %v323 = vld [vmem:[%s302 + $0x10] sm:$0xf]
        %v324 = vld [vmem:[%s302 + $0x14] sm:$0x3]
        %v325 = vld [vmem:[%s302 + $0x18] sm:$0xf]
        %v326 = vld [vmem:[%s302 + $0x1c] sm:$0xf]
        %v327 = vld [vmem:[%s302 + $0x20] sm:$0x3]
        %v328 = vld [vmem:[%s302 + $0x24] sm:$0xf]
        %v329 = vld [vmem:[%s302 + $0x28] sm:$0xf]
        %v330 = vld [vmem:[%s302 + $0x2c] sm:$0x3]
        %v331 = vld [vmem:[%s302 + $0x30] sm:$0xf]
        %v332 = vld [vmem:[%s302 + $0x34] sm:$0xf]
        %v333 = vld [vmem:[%s302 + $0x38] sm:$0x3]
        %v334 = vld [vmem:[%s302 + $0x3c] sm:$0xf]
        %v335 = vld [vmem:[%s302 + $0x40] sm:$0xf]
        %v336 = vld [vmem:[%s302 + $0x44] sm:$0x3]
        %v337 = vld [vmem:[%s302 + $0x48] sm:$0xf]
        %v338 = vld [vmem:[%s302 + $0x4c] sm:$0xf]
        %v339 = vld [vmem:[%s302 + $0x50] sm:$0x3]
        %v340 = vld [vmem:[%s302 + $0x54] sm:$0xf]
        %v341 = vld [vmem:[%s302 + $0x58] sm:$0xf]
        %v342 = vld [vmem:[%s302 + $0x5c] sm:$0x3]
        %v343 = vld [vmem:[%s314] sm:$0xf]
        %v344 = vld [vmem:[%s314 + $0x4] sm:$0xf]
        %v345 = vld [vmem:[%s314 + $0x8] sm:$0x3]
        %v346 = vld [vmem:[%s314 + $0xc] sm:$0xf]
        %v347 = vld [vmem:[%s314 + $0x10] sm:$0xf]
        %v348 = vld [vmem:[%s314 + $0x14] sm:$0x3]
        %v349 = vld [vmem:[%s314 + $0x18] sm:$0xf]
        %v350 = vld [vmem:[%s314 + $0x1c] sm:$0xf]
        %v351 = vld [vmem:[%s314 + $0x20] sm:$0x3]
        %v352 = vld [vmem:[%s314 + $0x24] sm:$0xf]
        %v353 = vld [vmem:[%s314 + $0x28] sm:$0xf]
        %v354 = vld [vmem:[%s314 + $0x2c] sm:$0x3]
        %v371 = vunpack.c.l.b16 %v319
        %v372 = vunpack.c.l.b16 %v320
        %v373 = vunpack.c.l.b16 %v322
        %v374 = vunpack.c.l.b16 %v323
        %v375 = vunpack.c.l.b16 %v325
        %v376 = vunpack.c.l.b16 %v326
        %v377 = vunpack.c.l.b16 %v328
        %v378 = vunpack.c.l.b16 %v329
        %v379 = vunpack.c.l.b16 %v331
        %v380 = vunpack.c.l.b16 %v332
        %v381 = vunpack.c.l.b16 %v334
        %v382 = vunpack.c.l.b16 %v335
        %v383 = vunpack.c.l.b16 %v337
        %v384 = vunpack.c.l.b16 %v338
        %v385 = vunpack.c.l.b16 %v340
        %v386 = vunpack.c.l.b16 %v341
        %v387 = vpack.c.b16 %v372, %v371
        %v388 = vpack.c.b16 %v374, %v373
        %v389 = vpack.c.b16 %v376, %v375
        %v390 = vpack.c.b16 %v378, %v377
        %v391 = vpack.c.b16 %v380, %v379
        %v392 = vpack.c.b16 %v382, %v381
        %v393 = vpack.c.b16 %v384, %v383
        %v394 = vpack.c.b16 %v386, %v385
        %v411 = vunpack.c.l.b16 %v321
        %v412 = vunpack.c.l.b16 %v324
        %v413 = vunpack.c.l.b16 %v327
        %v414 = vunpack.c.l.b16 %v330
        %v415 = vunpack.c.l.b16 %v333
        %v416 = vunpack.c.l.b16 %v336
        %v417 = vunpack.c.l.b16 %v339
        %v418 = vunpack.c.l.b16 %v342
        %v419 = vpack.c.b16 %v411, %v411
        %v420 = vpack.c.b16 %v412, %v412
        %v421 = vpack.c.b16 %v413, %v413
        %v422 = vpack.c.b16 %v414, %v414
        %v423 = vpack.c.b16 %v415, %v415
        %v424 = vpack.c.b16 %v416, %v416
        %v425 = vpack.c.b16 %v417, %v417
        %v426 = vpack.c.b16 %v418, %v418
        %vm427 = vsmask.f32 7424
        %v429 = vshrl.u32 %v387, 16
        %v431 = vshll.u32 %v387, 16
        %v433 = vrot.slane %v431, 1
        %v434 = vor.u32 %v429, %v433
        %v436 = vshll.u32 %v419, 16
        %v438 = vrot.slane %v436, 1
        %v439 = vsel %vm427, %v434, %v438
        %v441 = vshrl.u32 %v388, 16
        %v443 = vshll.u32 %v388, 16
        %v445 = vrot.slane %v443, 1
        %v446 = vor.u32 %v441, %v445
        %v448 = vshll.u32 %v420, 16
        %v450 = vrot.slane %v448, 1
        %v451 = vsel %vm427, %v446, %v450
        %v453 = vshrl.u32 %v389, 16
        %v455 = vshll.u32 %v389, 16
        %v457 = vrot.slane %v455, 1
        %v458 = vor.u32 %v453, %v457
        %v460 = vshll.u32 %v421, 16
        %v462 = vrot.slane %v460, 1
        %v463 = vsel %vm427, %v458, %v462
        %v465 = vshrl.u32 %v390, 16
        %v467 = vshll.u32 %v390, 16
        %v469 = vrot.slane %v467, 1
        %v470 = vor.u32 %v465, %v469
        %v472 = vshll.u32 %v422, 16
        %v474 = vrot.slane %v472, 1
        %v475 = vsel %vm427, %v470, %v474
        %v477 = vshrl.u32 %v391, 16
        %v479 = vshll.u32 %v391, 16
        %v481 = vrot.slane %v479, 1
        %v482 = vor.u32 %v477, %v481
        %v484 = vshll.u32 %v423, 16
        %v486 = vrot.slane %v484, 1
        %v487 = vsel %vm427, %v482, %v486
        %v489 = vshrl.u32 %v392, 16
        %v491 = vshll.u32 %v392, 16
        %v493 = vrot.slane %v491, 1
        %v494 = vor.u32 %v489, %v493
        %v496 = vshll.u32 %v424, 16
        %v498 = vrot.slane %v496, 1
        %v499 = vsel %vm427, %v494, %v498
        %v501 = vshrl.u32 %v393, 16
        %v503 = vshll.u32 %v393, 16
        %v505 = vrot.slane %v503, 1
        %v506 = vor.u32 %v501, %v505
        %v508 = vshll.u32 %v425, 16
        %v510 = vrot.slane %v508, 1
        %v511 = vsel %vm427, %v506, %v510
        %v513 = vshrl.u32 %v394, 16
        %v515 = vshll.u32 %v394, 16
        %v517 = vrot.slane %v515, 1
        %v518 = vor.u32 %v513, %v517
        %v520 = vshll.u32 %v426, 16
        %v522 = vrot.slane %v520, 1
        %v523 = vsel %vm427, %v518, %v522
        %vm532 = vcmask 1046528
        %v533 = vrot.slane %v387, 1
        %v534 = vrot.slane %v419, 1
        %v535 = vsel %vm532, %v533, %v534
        %v536 = vrot.slane %v388, 1
        %v537 = vrot.slane %v420, 1
        %v538 = vsel %vm532, %v536, %v537
        %v539 = vrot.slane %v389, 1
        %v540 = vrot.slane %v421, 1
        %v541 = vsel %vm532, %v539, %v540
        %v542 = vrot.slane %v390, 1
        %v543 = vrot.slane %v422, 1
        %v544 = vsel %vm532, %v542, %v543
        %v545 = vrot.slane %v391, 1
        %v546 = vrot.slane %v423, 1
        %v547 = vsel %vm532, %v545, %v546
        %v548 = vrot.slane %v392, 1
        %v549 = vrot.slane %v424, 1
        %v550 = vsel %vm532, %v548, %v549
        %v551 = vrot.slane %v393, 1
        %v552 = vrot.slane %v425, 1
        %v553 = vsel %vm532, %v551, %v552
        %v554 = vrot.slane %v394, 1
        %v555 = vrot.slane %v426, 1
        %v556 = vsel %vm532, %v554, %v555
        %vm565 = vsmask.f32 6400
        %v566 = vrot.slane %v429, 1
        %v567 = vrot.slane %v431, 2
        %v568 = vor.u32 %v566, %v567
        %v569 = vshrl.u32 %v419, 16
        %v571 = vrot.slane %v569, 1
        %v572 = vrot.slane %v436, 2
        %v573 = vor.u32 %v571, %v572
        %v574 = vsel %vm565, %v568, %v573
        %v575 = vrot.slane %v441, 1
        %v576 = vrot.slane %v443, 2
        %v577 = vor.u32 %v575, %v576
        %v578 = vshrl.u32 %v420, 16
        %v580 = vrot.slane %v578, 1
        %v581 = vrot.slane %v448, 2
        %v582 = vor.u32 %v580, %v581
        %v583 = vsel %vm565, %v577, %v582
        %v584 = vrot.slane %v453, 1
        %v585 = vrot.slane %v455, 2
        %v586 = vor.u32 %v584, %v585
        %v587 = vshrl.u32 %v421, 16
        %v589 = vrot.slane %v587, 1
        %v590 = vrot.slane %v460, 2
        %v591 = vor.u32 %v589, %v590
        %v592 = vsel %vm565, %v586, %v591
        %v593 = vrot.slane %v465, 1
        %v594 = vrot.slane %v467, 2
        %v595 = vor.u32 %v593, %v594
        %v596 = vshrl.u32 %v422, 16
        %v598 = vrot.slane %v596, 1
        %v599 = vrot.slane %v472, 2
        %v600 = vor.u32 %v598, %v599
        %v601 = vsel %vm565, %v595, %v600
        %v602 = vrot.slane %v477, 1
        %v603 = vrot.slane %v479, 2
        %v604 = vor.u32 %v602, %v603
        %v605 = vshrl.u32 %v423, 16
        %v607 = vrot.slane %v605, 1
        %v608 = vrot.slane %v484, 2
        %v609 = vor.u32 %v607, %v608
        %v610 = vsel %vm565, %v604, %v609
        %v611 = vrot.slane %v489, 1
        %v612 = vrot.slane %v491, 2
        %v613 = vor.u32 %v611, %v612
        %v614 = vshrl.u32 %v424, 16
        %v616 = vrot.slane %v614, 1
        %v617 = vrot.slane %v496, 2
        %v618 = vor.u32 %v616, %v617
        %v619 = vsel %vm565, %v613, %v618
        %v620 = vrot.slane %v501, 1
        %v621 = vrot.slane %v503, 2
        %v622 = vor.u32 %v620, %v621
        %v623 = vshrl.u32 %v425, 16
        %v625 = vrot.slane %v623, 1
        %v626 = vrot.slane %v508, 2
        %v627 = vor.u32 %v625, %v626
        %v628 = vsel %vm565, %v622, %v627
        %v629 = vrot.slane %v513, 1
        %v630 = vrot.slane %v515, 2
        %v631 = vor.u32 %v629, %v630
        %v632 = vshrl.u32 %v426, 16
        %v634 = vrot.slane %v632, 1
        %v635 = vrot.slane %v520, 2
        %v636 = vor.u32 %v634, %v635
        %v637 = vsel %vm565, %v631, %v636
        %vm646 = vcmask 1045504
        %v647 = vrot.slane %v387, 2
        %v648 = vrot.slane %v419, 2
        %v649 = vsel %vm646, %v647, %v648
        %v650 = vrot.slane %v388, 2
        %v651 = vrot.slane %v420, 2
        %v652 = vsel %vm646, %v650, %v651
        %v653 = vrot.slane %v389, 2
        %v654 = vrot.slane %v421, 2
        %v655 = vsel %vm646, %v653, %v654
        %v656 = vrot.slane %v390, 2
        %v657 = vrot.slane %v422, 2
        %v658 = vsel %vm646, %v656, %v657
        %v659 = vrot.slane %v391, 2
        %v660 = vrot.slane %v423, 2
        %v661 = vsel %vm646, %v659, %v660
        %v662 = vrot.slane %v392, 2
        %v663 = vrot.slane %v424, 2
        %v664 = vsel %vm646, %v662, %v663
        %v665 = vrot.slane %v393, 2
        %v666 = vrot.slane %v425, 2
        %v667 = vsel %vm646, %v665, %v666
        %v668 = vrot.slane %v394, 2
        %v669 = vrot.slane %v426, 2
        %v670 = vsel %vm646, %v668, %v669
        %v679 = vld [vmem:[#allocation2] sm:$0xf]
        %v680 = vld [vmem:[#allocation2 + $0x4] sm:$0xf]
        %v681 = vld [vmem:[#allocation2 + $0x8] sm:$0xf]
        %v682 = vld [vmem:[#allocation2 + $0xc] sm:$0xf]
        %v683 = vld [vmem:[#allocation2 + $0x10] sm:$0xf]
        %v684 = vld [vmem:[#allocation2 + $0x14] sm:$0xf]
        %v685 = vld [vmem:[#allocation2 + $0x18] sm:$0xf]
        %v686 = vld [vmem:[#allocation2 + $0x1c] sm:$0xf]
        %v687 = vld [vmem:[#allocation2 + $0x20] sm:$0xf]
        %v688 = vld [vmem:[#allocation2 + $0x24] sm:$0xf]
        %v689 = vld [vmem:[#allocation2 + $0x28] sm:$0xf]
        %v690 = vld [vmem:[#allocation2 + $0x2c] sm:$0xf]
        %v691 = vld [vmem:[#allocation2 + $0x30] sm:$0xf]
        %v692 = vld [vmem:[#allocation2 + $0x34] sm:$0xf]
        %v693 = vld [vmem:[#allocation2 + $0x38] sm:$0xf]
        %v694 = vld [vmem:[#allocation2 + $0x3c] sm:$0xf]
        %v695 = vld [vmem:[#allocation2 + $0x40] sm:$0xf]
        %v696 = vld [vmem:[#allocation2 + $0x44] sm:$0xf]
        %v697 = vld [vmem:[#allocation2 + $0x48] sm:$0xf]
        %v698 = vld [vmem:[#allocation2 + $0x4c] sm:$0xf]
        %v699 = vld [vmem:[#allocation2 + $0x50] sm:$0xf]
        %v700 = vld [vmem:[#allocation2 + $0x54] sm:$0xf]
        %v701 = vld [vmem:[#allocation2 + $0x58] sm:$0xf]
        %v702 = vld [vmem:[#allocation2 + $0x5c] sm:$0xf]
        %v703 = vld [vmem:[#allocation2 + $0x60] sm:$0xf]
        %v704 = vld [vmem:[#allocation2 + $0x64] sm:$0xf]
        %v705 = vld [vmem:[#allocation2 + $0x68] sm:$0xf]
        %v706 = vld [vmem:[#allocation2 + $0x6c] sm:$0xf]
        %v707 = vld [vmem:[#allocation2 + $0x70] sm:$0xf]
        %v708 = vld [vmem:[#allocation2 + $0x74] sm:$0xf]
        %v709 = vld [vmem:[#allocation2 + $0x78] sm:$0xf]
        %v710 = vld [vmem:[#allocation2 + $0x7c] sm:$0xf]
        %v711 = vld [vmem:[#allocation2 + $0x80] sm:$0xf]
        %v712 = vld [vmem:[#allocation2 + $0x84] sm:$0xf]
        %v713 = vld [vmem:[#allocation2 + $0x88] sm:$0xf]
        %v714 = vld [vmem:[#allocation2 + $0x8c] sm:$0xf]
        %v715 = vld [vmem:[#allocation2 + $0x90] sm:$0xf]
        %v716 = vld [vmem:[#allocation2 + $0x94] sm:$0xf]
        %v717 = vld [vmem:[#allocation2 + $0x98] sm:$0xf]
        %v718 = vld [vmem:[#allocation2 + $0x9c] sm:$0xf]
        %v719 = vld [vmem:[#allocation2 + $0xa0] sm:$0xf]
        %v720 = vld [vmem:[#allocation2 + $0xa4] sm:$0xf]
        %v721 = vld [vmem:[#allocation2 + $0xa8] sm:$0xf]
        %v722 = vld [vmem:[#allocation2 + $0xac] sm:$0xf]
        %v723 = vld [vmem:[#allocation2 + $0xb0] sm:$0xf]
        %v724 = vld [vmem:[#allocation2 + $0xb4] sm:$0xf]
        %v725 = vld [vmem:[#allocation2 + $0xb8] sm:$0xf]
        %v726 = vld [vmem:[#allocation2 + $0xbc] sm:$0xf]
        %v727 = vld [vmem:[#allocation2 + $0xc0] sm:$0xf]
        %v728 = vld [vmem:[#allocation2 + $0xc4] sm:$0xf]
        %v729 = vld [vmem:[#allocation2 + $0xc8] sm:$0xf]
        %v730 = vld [vmem:[#allocation2 + $0xcc] sm:$0xf]
        %v731 = vld [vmem:[#allocation2 + $0xd0] sm:$0xf]
        %v732 = vld [vmem:[#allocation2 + $0xd4] sm:$0xf]
        %v733 = vld [vmem:[#allocation2 + $0xd8] sm:$0xf]
        %v734 = vld [vmem:[#allocation2 + $0xdc] sm:$0xf]
        %v735 = vld [vmem:[#allocation2 + $0xe0] sm:$0xf]
        %v736 = vld [vmem:[#allocation2 + $0xe4] sm:$0xf]
        %v737 = vld [vmem:[#allocation2 + $0xe8] sm:$0xf]
        %v738 = vld [vmem:[#allocation2 + $0xec] sm:$0xf]
        %v739 = vld [vmem:[#allocation2 + $0xf0] sm:$0xf]
        %v740 = vld [vmem:[#allocation2 + $0xf4] sm:$0xf]
        %v741 = vld [vmem:[#allocation2 + $0xf8] sm:$0xf]
        %v742 = vld [vmem:[#allocation2 + $0xfc] sm:$0xf]
        %v743 = vld [vmem:[#allocation2 + $0x100] sm:$0xf]
        %v744 = vld [vmem:[#allocation2 + $0x104] sm:$0xf]
        %v745 = vld [vmem:[#allocation2 + $0x108] sm:$0xf]
        %v746 = vld [vmem:[#allocation2 + $0x10c] sm:$0xf]
        %v747 = vld [vmem:[#allocation2 + $0x110] sm:$0xf]
        %v748 = vld [vmem:[#allocation2 + $0x114] sm:$0xf]
        %v749 = vld [vmem:[#allocation2 + $0x118] sm:$0xf]
        %v750 = vld [vmem:[#allocation2 + $0x11c] sm:$0xf]
        %v751 = vld [vmem:[#allocation2 + $0x120] sm:$0xf]
        %v752 = vld [vmem:[#allocation2 + $0x124] sm:$0xf]
        %v753 = vld [vmem:[#allocation2 + $0x128] sm:$0xf]
        %v754 = vld [vmem:[#allocation2 + $0x12c] sm:$0xf]
        %v755 = vld [vmem:[#allocation2 + $0x130] sm:$0xf]
        %v756 = vld [vmem:[#allocation2 + $0x134] sm:$0xf]
        %v757 = vld [vmem:[#allocation2 + $0x138] sm:$0xf]
        %v758 = vld [vmem:[#allocation2 + $0x13c] sm:$0xf]
        %v761 = vunpack.c.l.b16 %v343
        %v762 = vunpack.c.l.b16 %v344
        %v763 = vpack.c.b16 %v762, %v761
        %v766 = vunpack.c.l.b16 %v345
        %v767 = vpack.c.b16 %v766, %v766
        %v769 = vshrl.u32 %v763, 16
        %v771 = vshll.u32 %v763, 16
        %v773 = vrot.slane %v771, 1
        %v774 = vor.u32 %v769, %v773
        %v776 = vshll.u32 %v767, 16
        %v778 = vrot.slane %v776, 1
        %v779 = vsel %vm427, %v774, %v778
        %v781 = vrot.slane %v763, 1
        %v782 = vrot.slane %v767, 1
        %v783 = vsel %vm532, %v781, %v782
        %v785 = vrot.slane %v769, 1
        %v786 = vrot.slane %v771, 2
        %v787 = vor.u32 %v785, %v786
        %v788 = vshrl.u32 %v767, 16
        %v790 = vrot.slane %v788, 1
        %v791 = vrot.slane %v776, 2
        %v792 = vor.u32 %v790, %v791
        %v793 = vsel %vm565, %v787, %v792
        %v795 = vrot.slane %v763, 2
        %v796 = vrot.slane %v767, 2
        %v797 = vsel %vm646, %v795, %v796
        %s799 = scalar_lea.vmem [#allocation2], 320
        %v800 = vld [vmem:[%s799] sm:$0xf]
        %v801 = vld [vmem:[%s799 + $0x4] sm:$0xf]
        %v802 = vld [vmem:[%s799 + $0x8] sm:$0xf]
        %v803 = vld [vmem:[%s799 + $0xc] sm:$0xf]
        %v804 = vld [vmem:[%s799 + $0x10] sm:$0xf]
        %v805 = vld [vmem:[%s799 + $0x14] sm:$0xf]
        %v806 = vld [vmem:[%s799 + $0x18] sm:$0xf]
        %v807 = vld [vmem:[%s799 + $0x1c] sm:$0xf]
        %v808 = vld [vmem:[%s799 + $0x20] sm:$0xf]
        %v809 = vld [vmem:[%s799 + $0x24] sm:$0xf]
        %v810 = vld [vmem:[%s799 + $0x28] sm:$0xf]
        %v811 = vld [vmem:[%s799 + $0x2c] sm:$0xf]
        %v812 = vld [vmem:[%s799 + $0x30] sm:$0xf]
        %v813 = vld [vmem:[%s799 + $0x34] sm:$0xf]
        %v814 = vld [vmem:[%s799 + $0x38] sm:$0xf]
        %v815 = vld [vmem:[%s799 + $0x3c] sm:$0xf]
        %v816 = vld [vmem:[%s799 + $0x40] sm:$0xf]
        %v817 = vld [vmem:[%s799 + $0x44] sm:$0xf]
        %v818 = vld [vmem:[%s799 + $0x48] sm:$0xf]
        %v819 = vld [vmem:[%s799 + $0x4c] sm:$0xf]
        %v820 = vld [vmem:[%s799 + $0x50] sm:$0xf]
        %v821 = vld [vmem:[%s799 + $0x54] sm:$0xf]
        %v822 = vld [vmem:[%s799 + $0x58] sm:$0xf]
        %v823 = vld [vmem:[%s799 + $0x5c] sm:$0xf]
        %v824 = vld [vmem:[%s799 + $0x60] sm:$0xf]
        %v825 = vld [vmem:[%s799 + $0x64] sm:$0xf]
        %v826 = vld [vmem:[%s799 + $0x68] sm:$0xf]
        %v827 = vld [vmem:[%s799 + $0x6c] sm:$0xf]
        %v828 = vld [vmem:[%s799 + $0x70] sm:$0xf]
        %v829 = vld [vmem:[%s799 + $0x74] sm:$0xf]
        %v830 = vld [vmem:[%s799 + $0x78] sm:$0xf]
        %v831 = vld [vmem:[%s799 + $0x7c] sm:$0xf]
        %v832 = vld [vmem:[%s799 + $0x80] sm:$0xf]
        %v833 = vld [vmem:[%s799 + $0x84] sm:$0xf]
        %v834 = vld [vmem:[%s799 + $0x88] sm:$0xf]
        %v835 = vld [vmem:[%s799 + $0x8c] sm:$0xf]
        %v836 = vld [vmem:[%s799 + $0x90] sm:$0xf]
        %v837 = vld [vmem:[%s799 + $0x94] sm:$0xf]
        %v838 = vld [vmem:[%s799 + $0x98] sm:$0xf]
        %v839 = vld [vmem:[%s799 + $0x9c] sm:$0xf]
        %v840 = vld [vmem:[%s799 + $0xa0] sm:$0xf]
        %v841 = vld [vmem:[%s799 + $0xa4] sm:$0xf]
        %v842 = vld [vmem:[%s799 + $0xa8] sm:$0xf]
        %v843 = vld [vmem:[%s799 + $0xac] sm:$0xf]
        %v844 = vld [vmem:[%s799 + $0xb0] sm:$0xf]
        %v845 = vld [vmem:[%s799 + $0xb4] sm:$0xf]
        %v846 = vld [vmem:[%s799 + $0xb8] sm:$0xf]
        %v847 = vld [vmem:[%s799 + $0xbc] sm:$0xf]
        %v848 = vld [vmem:[%s799 + $0xc0] sm:$0xf]
        %v849 = vld [vmem:[%s799 + $0xc4] sm:$0xf]
        %v850 = vld [vmem:[%s799 + $0xc8] sm:$0xf]
        %v851 = vld [vmem:[%s799 + $0xcc] sm:$0xf]
        %v852 = vld [vmem:[%s799 + $0xd0] sm:$0xf]
        %v853 = vld [vmem:[%s799 + $0xd4] sm:$0xf]
        %v854 = vld [vmem:[%s799 + $0xd8] sm:$0xf]
        %v855 = vld [vmem:[%s799 + $0xdc] sm:$0xf]
        %v856 = vld [vmem:[%s799 + $0xe0] sm:$0xf]
        %v857 = vld [vmem:[%s799 + $0xe4] sm:$0xf]
        %v858 = vld [vmem:[%s799 + $0xe8] sm:$0xf]
        %v859 = vld [vmem:[%s799 + $0xec] sm:$0xf]
        %v860 = vld [vmem:[%s799 + $0xf0] sm:$0xf]
        %v861 = vld [vmem:[%s799 + $0xf4] sm:$0xf]
        %v862 = vld [vmem:[%s799 + $0xf8] sm:$0xf]
        %v863 = vld [vmem:[%s799 + $0xfc] sm:$0xf]
        %v864 = vld [vmem:[%s799 + $0x100] sm:$0xf]
        %v865 = vld [vmem:[%s799 + $0x104] sm:$0xf]
        %v866 = vld [vmem:[%s799 + $0x108] sm:$0xf]
        %v867 = vld [vmem:[%s799 + $0x10c] sm:$0xf]
        %v868 = vld [vmem:[%s799 + $0x110] sm:$0xf]
        %v869 = vld [vmem:[%s799 + $0x114] sm:$0xf]
        %v870 = vld [vmem:[%s799 + $0x118] sm:$0xf]
        %v871 = vld [vmem:[%s799 + $0x11c] sm:$0xf]
        %v872 = vld [vmem:[%s799 + $0x120] sm:$0xf]
        %v873 = vld [vmem:[%s799 + $0x124] sm:$0xf]
        %v874 = vld [vmem:[%s799 + $0x128] sm:$0xf]
        %v875 = vld [vmem:[%s799 + $0x12c] sm:$0xf]
        %v876 = vld [vmem:[%s799 + $0x130] sm:$0xf]
        %v877 = vld [vmem:[%s799 + $0x134] sm:$0xf]
        %v878 = vld [vmem:[%s799 + $0x138] sm:$0xf]
        %v879 = vld [vmem:[%s799 + $0x13c] sm:$0xf]
        %v960 = vunpack.c.l.b16 %v800
        %v961 = vunpack.c.l.b16 %v801
        %v962 = vunpack.c.l.b16 %v802
        %v963 = vunpack.c.l.b16 %v803
        %v964 = vunpack.c.l.b16 %v804
        %v965 = vunpack.c.l.b16 %v805
        %v966 = vunpack.c.l.b16 %v806
        %v967 = vunpack.c.l.b16 %v807
        %v968 = vunpack.c.l.b16 %v808
        %v969 = vunpack.c.l.b16 %v809
        %v970 = vunpack.c.l.b16 %v810
        %v971 = vunpack.c.l.b16 %v811
        %v972 = vunpack.c.l.b16 %v812
        %v973 = vunpack.c.l.b16 %v813
        %v974 = vunpack.c.l.b16 %v814
        %v975 = vunpack.c.l.b16 %v815
        %v976 = vunpack.c.l.b16 %v816
        %v977 = vunpack.c.l.b16 %v817
        %v978 = vunpack.c.l.b16 %v818
        %v979 = vunpack.c.l.b16 %v819
        %v980 = vunpack.c.l.b16 %v820
        %v981 = vunpack.c.l.b16 %v821
        %v982 = vunpack.c.l.b16 %v822
        %v983 = vunpack.c.l.b16 %v823
        %v984 = vunpack.c.l.b16 %v824
        %v985 = vunpack.c.l.b16 %v825
        %v986 = vunpack.c.l.b16 %v826
        %v987 = vunpack.c.l.b16 %v827
        %v988 = vunpack.c.l.b16 %v828
        %v989 = vunpack.c.l.b16 %v829
        %v990 = vunpack.c.l.b16 %v830
        %v991 = vunpack.c.l.b16 %v831
        %v992 = vunpack.c.l.b16 %v832
        %v993 = vunpack.c.l.b16 %v833
        %v994 = vunpack.c.l.b16 %v834
        %v995 = vunpack.c.l.b16 %v835
        %v996 = vunpack.c.l.b16 %v836
        %v997 = vunpack.c.l.b16 %v837
        %v998 = vunpack.c.l.b16 %v838
        %v999 = vunpack.c.l.b16 %v839
        %v1000 = vunpack.c.l.b16 %v840
        %v1001 = vunpack.c.l.b16 %v841
        %v1002 = vunpack.c.l.b16 %v842
        %v1003 = vunpack.c.l.b16 %v843
        %v1004 = vunpack.c.l.b16 %v844
        %v1005 = vunpack.c.l.b16 %v845
        %v1006 = vunpack.c.l.b16 %v846
        %v1007 = vunpack.c.l.b16 %v847
        %v1008 = vunpack.c.l.b16 %v848
        %v1009 = vunpack.c.l.b16 %v849
        %v1010 = vunpack.c.l.b16 %v850
        %v1011 = vunpack.c.l.b16 %v851
        %v1012 = vunpack.c.l.b16 %v852
        %v1013 = vunpack.c.l.b16 %v853
        %v1014 = vunpack.c.l.b16 %v854
        %v1015 = vunpack.c.l.b16 %v855
        %v1016 = vunpack.c.l.b16 %v856
        %v1017 = vunpack.c.l.b16 %v857
        %v1018 = vunpack.c.l.b16 %v858
        %v1019 = vunpack.c.l.b16 %v859
        %v1020 = vunpack.c.l.b16 %v860
        %v1021 = vunpack.c.l.b16 %v861
        %v1022 = vunpack.c.l.b16 %v862
        %v1023 = vunpack.c.l.b16 %v863
        %v1024 = vunpack.c.l.b16 %v864
        %v1025 = vunpack.c.l.b16 %v865
        %v1026 = vunpack.c.l.b16 %v866
        %v1027 = vunpack.c.l.b16 %v867
        %v1028 = vunpack.c.l.b16 %v868
        %v1029 = vunpack.c.l.b16 %v869
        %v1030 = vunpack.c.l.b16 %v870
        %v1031 = vunpack.c.l.b16 %v871
        %v1032 = vunpack.c.l.b16 %v872
        %v1033 = vunpack.c.l.b16 %v873
        %v1034 = vunpack.c.l.b16 %v874
        %v1035 = vunpack.c.l.b16 %v875
        %v1036 = vunpack.c.l.b16 %v876
        %v1037 = vunpack.c.l.b16 %v877
        %v1038 = vunpack.c.l.b16 %v878
        %v1039 = vunpack.c.l.b16 %v879
        %v1040 = vpack.c.b16 %v961, %v960
        %v1041 = vpack.c.b16 %v963, %v962
        %v1042 = vpack.c.b16 %v965, %v964
        %v1043 = vpack.c.b16 %v967, %v966
        %v1044 = vpack.c.b16 %v969, %v968
        %v1045 = vpack.c.b16 %v971, %v970
        %v1046 = vpack.c.b16 %v973, %v972
        %v1047 = vpack.c.b16 %v975, %v974
        %v1048 = vpack.c.b16 %v977, %v976
        %v1049 = vpack.c.b16 %v979, %v978
        %v1050 = vpack.c.b16 %v981, %v980
        %v1051 = vpack.c.b16 %v983, %v982
        %v1052 = vpack.c.b16 %v985, %v984
        %v1053 = vpack.c.b16 %v987, %v986
        %v1054 = vpack.c.b16 %v989, %v988
        %v1055 = vpack.c.b16 %v991, %v990
        %v1056 = vpack.c.b16 %v993, %v992
        %v1057 = vpack.c.b16 %v995, %v994
        %v1058 = vpack.c.b16 %v997, %v996
        %v1059 = vpack.c.b16 %v999, %v998
        %v1060 = vpack.c.b16 %v1001, %v1000
        %v1061 = vpack.c.b16 %v1003, %v1002
        %v1062 = vpack.c.b16 %v1005, %v1004
        %v1063 = vpack.c.b16 %v1007, %v1006
        %v1064 = vpack.c.b16 %v1009, %v1008
        %v1065 = vpack.c.b16 %v1011, %v1010
        %v1066 = vpack.c.b16 %v1013, %v1012
        %v1067 = vpack.c.b16 %v1015, %v1014
        %v1068 = vpack.c.b16 %v1017, %v1016
        %v1069 = vpack.c.b16 %v1019, %v1018
        %v1070 = vpack.c.b16 %v1021, %v1020
        %v1071 = vpack.c.b16 %v1023, %v1022
        %v1072 = vpack.c.b16 %v1025, %v1024
        %v1073 = vpack.c.b16 %v1027, %v1026
        %v1074 = vpack.c.b16 %v1029, %v1028
        %v1075 = vpack.c.b16 %v1031, %v1030
        %v1076 = vpack.c.b16 %v1033, %v1032
        %v1077 = vpack.c.b16 %v1035, %v1034
        %v1078 = vpack.c.b16 %v1037, %v1036
        %v1079 = vpack.c.b16 %v1039, %v1038
        %1120 = vmatprep.subr.bf16.mxu0 0
        %1121 = vmatpush1.bf16.msra.mxu0 %v1040
        %1122 = vmatprep.subr.bf16.mxu0 0
        %1123 = vmatpush1.bf16.msra.mxu0 %v1041
        %1124 = vmatprep.subr.bf16.mxu0 0
        %1125 = vmatpush1.bf16.msra.mxu0 %v1042
        %1126 = vmatprep.subr.bf16.mxu0 0
        %1127 = vmatpush1.bf16.msra.mxu0 %v1043
        %1128 = vmatprep.subr.bf16.mxu0 0
        %1129 = vmatpush1.bf16.msra.mxu0 %v1044
        %1130 = vmatprep.subr.bf16.mxu0 0
        %1131 = vmatpush1.bf16.msra.mxu0 %v1045
        %1132 = vmatprep.subr.bf16.mxu0 0
        %1133 = vmatpush1.bf16.msra.mxu0 %v1046
        %1134 = vmatprep.subr.bf16.mxu0 0
        %1135 = vmatpush1.bf16.msra.mxu0 %v1047
        %1136 = vmatprep.subr.bf16.mxu0 0
        %1137 = vmatpush1.bf16.msra.mxu0 %v1048
        %1138 = vmatprep.subr.bf16.mxu0 0
        %1139 = vmatpush1.bf16.msra.mxu0 %v1049
        %1140 = vmatprep.subr.bf16.mxu0 0
        %1141 = vmatpush1.bf16.msra.mxu0 %v1050
        %1142 = vmatprep.subr.bf16.mxu0 0
        %1143 = vmatpush1.bf16.msra.mxu0 %v1051
        %1144 = vmatprep.subr.bf16.mxu0 0
        %1145 = vmatpush1.bf16.msra.mxu0 %v1052
        %1146 = vmatprep.subr.bf16.mxu0 0
        %1147 = vmatpush1.bf16.msra.mxu0 %v1053
        %1148 = vmatprep.subr.bf16.mxu0 0
        %1149 = vmatpush1.bf16.msra.mxu0 %v1054
        %1150 = vmatprep.subr.bf16.mxu0 0
        %1151 = vmatpush1.bf16.msra.mxu0 %v1055
        %1152 = vmatprep.mubr.bf16.mxu0 %v451
        %1153 = vmatmul.mubr.bf16.gmra.mrb[0].mxu0 %v388
        %v1154 = vpop.f32.mrb[0].mxu0
        %v1155 = vadd.f32 0.0, %v1154
        %v1156 = vpop.f32.mrb[0].mxu0
        %v1157 = vpop.f32.mrb[0].mxu0
        %v1158 = vadd.f32 0.0, %v1157
        %v1159 = vpop.f32.mrb[0].mxu0
        %1160 = vmatprep.mubr.bf16.mxu0 %v463
        %1161 = vmatmul.mubr.bf16.gmra.mrb[0].mxu0 %v389
        %v1162 = vpop.f32.mrb[0].mxu0
        %v1163 = vadd.f32 0.0, %v1162
        %v1164 = vpop.f32.mrb[0].mxu0
        %v1165 = vpop.f32.mrb[0].mxu0
        %v1166 = vadd.f32 0.0, %v1165
        %v1167 = vpop.f32.mrb[0].mxu0
        %1168 = vmatprep.mubr.bf16.mxu0 %v475
        %1169 = vmatmul.mubr.bf16.gmra.mrb[0].mxu0 %v390
        %v1170 = vpop.f32.mrb[0].mxu0
        %v1171 = vadd.f32 0.0, %v1170
        %v1172 = vpop.f32.mrb[0].mxu0
        %v1173 = vpop.f32.mrb[0].mxu0
        %v1174 = vadd.f32 0.0, %v1173
        %v1175 = vpop.f32.mrb[0].mxu0
        %1176 = vmatprep.mubr.bf16.mxu0 %v487
        %1177 = vmatmul.mubr.bf16.gmra.mrb[0].mxu0 %v391
        %v1178 = vpop.f32.mrb[0].mxu0
        %v1179 = vadd.f32 0.0, %v1178
        %v1180 = vpop.f32.mrb[0].mxu0
        %v1181 = vpop.f32.mrb[0].mxu0
        %v1182 = vadd.f32 0.0, %v1181
        %v1183 = vpop.f32.mrb[0].mxu0
        %1184 = vmatprep.mubr.bf16.mxu0 %v499
        %1185 = vmatmul.mubr.bf16.gmra.mrb[0].mxu0 %v392
        %v1186 = vpop.f32.mrb[0].mxu0
        %v1187 = vadd.f32 0.0, %v1186
        %v1188 = vpop.f32.mrb[0].mxu0
        %v1189 = vpop.f32.mrb[0].mxu0
        %v1190 = vadd.f32 0.0, %v1189
        %v1191 = vpop.f32.mrb[0].mxu0
        %1192 = vmatprep.mubr.bf16.mxu0 %v511
        %1193 = vmatmul.mubr.bf16.gmra.mrb[0].mxu0 %v393
        %v1194 = vpop.f32.mrb[0].mxu0
        %v1195 = vadd.f32 0.0, %v1194
        %v1196 = vpop.f32.mrb[0].mxu0
        %v1197 = vpop.f32.mrb[0].mxu0
        %v1198 = vadd.f32 0.0, %v1197
        %v1199 = vpop.f32.mrb[0].mxu0
        %1200 = vmatprep.mubr.bf16.mxu0 %v523
        %1201 = vmatmul.mubr.bf16.gmra.mrb[0].mxu0 %v394
        %v1202 = vpop.f32.mrb[0].mxu0
        %v1203 = vadd.f32 0.0, %v1202
        %v1204 = vpop.f32.mrb[0].mxu0
        %v1205 = vpop.f32.mrb[0].mxu0
        %v1206 = vadd.f32 0.0, %v1205
        %v1207 = vpop.f32.mrb[0].mxu0
        %1208 = vmatprep.mubr.bf16.mxu0 %v779
        %1209 = vmatmul.mubr.bf16.gmra.mrb[0].mxu0 %v763
        %v1210 = vpop.f32.mrb[0].mxu0
        %v1211 = vadd.f32 0.0, %v1210
        %v1212 = vpop.f32.mrb[0].mxu0
        %v1213 = vpop.f32.mrb[0].mxu0
        %v1214 = vadd.f32 0.0, %v1213
        %v1215 = vpop.f32.mrb[0].mxu0
        %1216 = vdwg.mxu0
        %1217 = vmatprep.subr.bf16.mxu0 0
        %1218 = vmatpush1.bf16.msra.mxu0 %v1056
        %1219 = vmatprep.subr.bf16.mxu0 0
        %1220 = vmatpush1.bf16.msra.mxu0 %v1057
        %1221 = vmatprep.subr.bf16.mxu0 0
        %1222 = vmatpush1.bf16.msra.mxu0 %v1058
        %1223 = vmatprep.subr.bf16.mxu0 0
        %1224 = vmatpush1.bf16.msra.mxu0 %v1059
        %1225 = vmatprep.subr.bf16.mxu0 0
        %1226 = vmatpush1.bf16.msra.mxu0 %v1060
        %1227 = vmatprep.subr.bf16.mxu0 0
        %1228 = vmatpush1.bf16.msra.mxu0 %v1061
        %1229 = vmatprep.subr.bf16.mxu0 0
        %1230 = vmatpush1.bf16.msra.mxu0 %v1062
        %1231 = vmatprep.subr.bf16.mxu0 0
        %1232 = vmatpush1.bf16.msra.mxu0 %v1063
        %1233 = vmatprep.subr.bf16.mxu0 0
        %1234 = vmatpush1.bf16.msra.mxu0 %v1064
        %1235 = vmatprep.subr.bf16.mxu0 0
        %1236 = vmatpush1.bf16.msra.mxu0 %v1065
        %1237 = vmatprep.subr.bf16.mxu0 0
        %1238 = vmatpush1.bf16.msra.mxu0 %v1066
        %1239 = vmatprep.subr.bf16.mxu0 0
        %1240 = vmatpush1.bf16.msra.mxu0 %v1067
        %1241 = vmatprep.subr.bf16.mxu0 0
        %1242 = vmatpush1.bf16.msra.mxu0 %v1068
        %1243 = vmatprep.subr.bf16.mxu0 0
        %1244 = vmatpush1.bf16.msra.mxu0 %v1069
        %1245 = vmatprep.subr.bf16.mxu0 0
        %1246 = vmatpush1.bf16.msra.mxu0 %v1070
        %1247 = vmatprep.subr.bf16.mxu0 0
        %1248 = vmatpush1.bf16.msra.mxu0 %v1071
        %1249 = vmatprep.mubr.bf16.mxu0 %v583
        %1250 = vmatmul.mubr.bf16.gmra.mrb[0].mxu0 %v538
        %v1251 = vpop.f32.mrb[0].mxu0
        %v1252 = vadd.f32 %v1155, %v1251
        %v1253 = vpop.f32.mrb[0].mxu0
        %v1254 = vpop.f32.mrb[0].mxu0
        %v1255 = vadd.f32 %v1158, %v1254
        %v1256 = vpop.f32.mrb[0].mxu0
        %1257 = vmatprep.mubr.bf16.mxu0 %v592
        %1258 = vmatmul.mubr.bf16.gmra.mrb[0].mxu0 %v541
        %v1259 = vpop.f32.mrb[0].mxu0
        %v1260 = vadd.f32 %v1163, %v1259
        %v1261 = vpop.f32.mrb[0].mxu0
        %v1262 = vpop.f32.mrb[0].mxu0
        %v1263 = vadd.f32 %v1166, %v1262
        %v1264 = vpop.f32.mrb[0].mxu0
        %1265 = vmatprep.mubr.bf16.mxu0 %v601
        %1266 = vmatmul.mubr.bf16.gmra.mrb[0].mxu0 %v544
        %v1267 = vpop.f32.mrb[0].mxu0
        %v1268 = vadd.f32 %v1171, %v1267
        %v1269 = vpop.f32.mrb[0].mxu0
        %v1270 = vpop.f32.mrb[0].mxu0
        %v1271 = vadd.f32 %v1174, %v1270
        %v1272 = vpop.f32.mrb[0].mxu0
        %1273 = vmatprep.mubr.bf16.mxu0 %v610
        %1274 = vmatmul.mubr.bf16.gmra.mrb[0].mxu0 %v547
        %v1275 = vpop.f32.mrb[0].mxu0
        %v1276 = vadd.f32 %v1179, %v1275
        %v1277 = vpop.f32.mrb[0].mxu0
        %v1278 = vpop.f32.mrb[0].mxu0
        %v1279 = vadd.f32 %v1182, %v1278
        %v1280 = vpop.f32.mrb[0].mxu0
        %1281 = vmatprep.mubr.bf16.mxu0 %v619
        %1282 = vmatmul.mubr.bf16.gmra.mrb[0].mxu0 %v550
        %v1283 = vpop.f32.mrb[0].mxu0
        %v1284 = vadd.f32 %v1187, %v1283
        %v1285 = vpop.f32.mrb[0].mxu0
        %v1286 = vpop.f32.mrb[0].mxu0
        %v1287 = vadd.f32 %v1190, %v1286
        %v1288 = vpop.f32.mrb[0].mxu0
        %1289 = vmatprep.mubr.bf16.mxu0 %v628
        %1290 = vmatmul.mubr.bf16.gmra.mrb[0].mxu0 %v553
        %v1291 = vpop.f32.mrb[0].mxu0
        %v1292 = vadd.f32 %v1195, %v1291
        %v1293 = vpop.f32.mrb[0].mxu0
        %v1294 = vpop.f32.mrb[0].mxu0
        %v1295 = vadd.f32 %v1198, %v1294
        %v1296 = vpop.f32.mrb[0].mxu0
        %1297 = vmatprep.mubr.bf16.mxu0 %v637
        %1298 = vmatmul.mubr.bf16.gmra.mrb[0].mxu0 %v556
        %v1299 = vpop.f32.mrb[0].mxu0
        %v1300 = vadd.f32 %v1203, %v1299
        %v1301 = vpop.f32.mrb[0].mxu0
        %v1302 = vpop.f32.mrb[0].mxu0
        %v1303 = vadd.f32 %v1206, %v1302
        %v1304 = vpop.f32.mrb[0].mxu0
        %1305 = vmatprep.mubr.bf16.mxu0 %v793
        %1306 = vmatmul.mubr.bf16.gmra.mrb[0].mxu0 %v783
        %v1307 = vpop.f32.mrb[0].mxu0
        %v1308 = vadd.f32 %v1211, %v1307
        %v1309 = vpop.f32.mrb[0].mxu0
        %v1310 = vpop.f32.mrb[0].mxu0
        %v1311 = vadd.f32 %v1214, %v1310
        %v1312 = vpop.f32.mrb[0].mxu0
        %1313 = vdwg.mxu0
        %1314 = vmatprep.subr.bf16.mxu0 0
        %1315 = vmatpush1.bf16.msra.mxu0 %v1072
        %1316 = vmatprep.subr.bf16.mxu0 0
        %1317 = vmatpush1.bf16.msra.mxu0 %v1073
        %1318 = vmatprep.subr.bf16.mxu0 0
        %1319 = vmatpush1.bf16.msra.mxu0 %v1074
        %1320 = vmatprep.subr.bf16.mxu0 0
        %1321 = vmatpush1.bf16.msra.mxu0 %v1075
        %1322 = vmatprep.subr.bf16.mxu0 0
        %1323 = vmatpush1.bf16.msra.mxu0 %v1076
        %1324 = vmatprep.subr.bf16.mxu0 0
        %1325 = vmatpush1.bf16.msra.mxu0 %v1077
        %1326 = vmatprep.subr.bf16.mxu0 0
        %1327 = vmatpush1.bf16.msra.mxu0 %v1078
        %1328 = vmatprep.subr.bf16.mxu0 0
        %1329 = vmatpush1.bf16.msra.mxu0 %v1079
        %1330 = vmatprep.subr.bf16.mxu0 0
        %1331 = vmatpush1.bf16.msra.mxu0 0
        %1332 = vmatprep.subr.bf16.mxu0 0
        %1333 = vmatpush1.bf16.msra.mxu0 0
        %1334 = vmatprep.subr.bf16.mxu0 0
        %1335 = vmatpush1.bf16.msra.mxu0 0
        %1336 = vmatprep.subr.bf16.mxu0 0
        %1337 = vmatpush1.bf16.msra.mxu0 0
        %1338 = vmatprep.subr.bf16.mxu0 0
        %1339 = vmatpush1.bf16.msra.mxu0 0
        %1340 = vmatprep.subr.bf16.mxu0 0
        %1341 = vmatpush1.bf16.msra.mxu0 0
        %1342 = vmatprep.subr.bf16.mxu0 0
        %1343 = vmatpush1.bf16.msra.mxu0 0
        %1344 = vmatprep.subr.bf16.mxu0 0
        %1345 = vmatpush1.bf16.msra.mxu0 0
        %1346 = vmatprep.mubr.bf16.mxu0 0
        %1347 = vmatmul.mubr.bf16.gmra.mrb[0].mxu0 %v652
        %v1348 = vpop.f32.mrb[0].mxu0
        %v1349 = vadd.f32 %v1252, %v1348
        %v1350 = vpop.f32.mrb[0].mxu0
        %v1351 = vpop.f32.mrb[0].mxu0
        %v1352 = vadd.f32 %v1255, %v1351
        %v1353 = vpop.f32.mrb[0].mxu0
        %1354 = vmatprep.mubr.bf16.mxu0 0
        %1355 = vmatmul.mubr.bf16.gmra.mrb[0].mxu0 %v655
        %v1356 = vpop.f32.mrb[0].mxu0
        %v1357 = vadd.f32 %v1260, %v1356
        %v1358 = vpop.f32.mrb[0].mxu0
        %v1359 = vpop.f32.mrb[0].mxu0
        %v1360 = vadd.f32 %v1263, %v1359
        %v1361 = vpop.f32.mrb[0].mxu0
        %1362 = vmatprep.mubr.bf16.mxu0 0
        %1363 = vmatmul.mubr.bf16.gmra.mrb[0].mxu0 %v658
        %v1364 = vpop.f32.mrb[0].mxu0
        %v1365 = vadd.f32 %v1268, %v1364
        %v1366 = vpop.f32.mrb[0].mxu0
        %v1367 = vpop.f32.mrb[0].mxu0
        %v1368 = vadd.f32 %v1271, %v1367
        %v1369 = vpop.f32.mrb[0].mxu0
        %1370 = vmatprep.mubr.bf16.mxu0 0
        %1371 = vmatmul.mubr.bf16.gmra.mrb[0].mxu0 %v661
        %v1372 = vpop.f32.mrb[0].mxu0
        %v1373 = vadd.f32 %v1276, %v1372
        %v1374 = vpop.f32.mrb[0].mxu0
        %v1375 = vpop.f32.mrb[0].mxu0
        %v1376 = vadd.f32 %v1279, %v1375
        %v1377 = vpop.f32.mrb[0].mxu0
        %1378 = vmatprep.mubr.bf16.mxu0 0
        %1379 = vmatmul.mubr.bf16.gmra.mrb[0].mxu0 %v664
        %v1380 = vpop.f32.mrb[0].mxu0
        %v1381 = vadd.f32 %v1284, %v1380
        %v1382 = vpop.f32.mrb[0].mxu0
        %v1383 = vpop.f32.mrb[0].mxu0
        %v1384 = vadd.f32 %v1287, %v1383
        %v1385 = vpop.f32.mrb[0].mxu0
        %1386 = vmatprep.mubr.bf16.mxu0 0
        %1387 = vmatmul.mubr.bf16.gmra.mrb[0].mxu0 %v667
        %v1388 = vpop.f32.mrb[0].mxu0
        %v1389 = vadd.f32 %v1292, %v1388
        %v1390 = vpop.f32.mrb[0].mxu0
        %v1391 = vpop.f32.mrb[0].mxu0
        %v1392 = vadd.f32 %v1295, %v1391
        %v1393 = vpop.f32.mrb[0].mxu0
        %1394 = vmatprep.mubr.bf16.mxu0 0
        %1395 = vmatmul.mubr.bf16.gmra.mrb[0].mxu0 %v670
        %v1396 = vpop.f32.mrb[0].mxu0
        %v1397 = vadd.f32 %v1300, %v1396
        %v1398 = vpop.f32.mrb[0].mxu0
        %v1399 = vpop.f32.mrb[0].mxu0
        %v1400 = vadd.f32 %v1303, %v1399
        %v1401 = vpop.f32.mrb[0].mxu0
        %1402 = vmatprep.mubr.bf16.mxu0 0
        %1403 = vmatmul.mubr.bf16.gmra.mrb[0].mxu0 %v797
        %v1404 = vpop.f32.mrb[0].mxu0
        %v1405 = vadd.f32 %v1308, %v1404
        %v1406 = vpop.f32.mrb[0].mxu0
        %v1407 = vpop.f32.mrb[0].mxu0
        %v1408 = vadd.f32 %v1311, %v1407
        %v1409 = vpop.f32.mrb[0].mxu0
        %1410 = vdwg.mxu0
        %v1491 = vunpack.c.l.b16 %v679
        %v1492 = vunpack.c.l.b16 %v680
        %v1493 = vunpack.c.l.b16 %v681
        %v1494 = vunpack.c.l.b16 %v682
        %v1495 = vunpack.c.l.b16 %v683
        %v1496 = vunpack.c.l.b16 %v684
        %v1497 = vunpack.c.l.b16 %v685
        %v1498 = vunpack.c.l.b16 %v686
        %v1499 = vunpack.c.l.b16 %v687
        %v1500 = vunpack.c.l.b16 %v688
        %v1501 = vunpack.c.l.b16 %v689
        %v1502 = vunpack.c.l.b16 %v690
        %v1503 = vunpack.c.l.b16 %v691
        %v1504 = vunpack.c.l.b16 %v692
        %v1505 = vunpack.c.l.b16 %v693
        %v1506 = vunpack.c.l.b16 %v694
        %v1507 = vunpack.c.l.b16 %v695
        %v1508 = vunpack.c.l.b16 %v696
        %v1509 = vunpack.c.l.b16 %v697
        %v1510 = vunpack.c.l.b16 %v698
        %v1511 = vunpack.c.l.b16 %v699
        %v1512 = vunpack.c.l.b16 %v700
        %v1513 = vunpack.c.l.b16 %v701
        %v1514 = vunpack.c.l.b16 %v702
        %v1515 = vunpack.c.l.b16 %v703
        %v1516 = vunpack.c.l.b16 %v704
        %v1517 = vunpack.c.l.b16 %v705
        %v1518 = vunpack.c.l.b16 %v706
        %v1519 = vunpack.c.l.b16 %v707
        %v1520 = vunpack.c.l.b16 %v708
        %v1521 = vunpack.c.l.b16 %v709
        %v1522 = vunpack.c.l.b16 %v710
        %v1523 = vunpack.c.l.b16 %v711
        %v1524 = vunpack.c.l.b16 %v712
        %v1525 = vunpack.c.l.b16 %v713
        %v1526 = vunpack.c.l.b16 %v714
        %v1527 = vunpack.c.l.b16 %v715
        %v1528 = vunpack.c.l.b16 %v716
        %v1529 = vunpack.c.l.b16 %v717
        %v1530 = vunpack.c.l.b16 %v718
        %v1531 = vunpack.c.l.b16 %v719
        %v1532 = vunpack.c.l.b16 %v720
        %v1533 = vunpack.c.l.b16 %v721
        %v1534 = vunpack.c.l.b16 %v722
        %v1535 = vunpack.c.l.b16 %v723
        %v1536 = vunpack.c.l.b16 %v724
        %v1537 = vunpack.c.l.b16 %v725
        %v1538 = vunpack.c.l.b16 %v726
        %v1539 = vunpack.c.l.b16 %v727
        %v1540 = vunpack.c.l.b16 %v728
        %v1541 = vunpack.c.l.b16 %v729
        %v1542 = vunpack.c.l.b16 %v730
        %v1543 = vunpack.c.l.b16 %v731
        %v1544 = vunpack.c.l.b16 %v732
        %v1545 = vunpack.c.l.b16 %v733
        %v1546 = vunpack.c.l.b16 %v734
        %v1547 = vunpack.c.l.b16 %v735
        %v1548 = vunpack.c.l.b16 %v736
        %v1549 = vunpack.c.l.b16 %v737
        %v1550 = vunpack.c.l.b16 %v738
        %v1551 = vunpack.c.l.b16 %v739
        %v1552 = vunpack.c.l.b16 %v740
        %v1553 = vunpack.c.l.b16 %v741
        %v1554 = vunpack.c.l.b16 %v742
        %v1555 = vunpack.c.l.b16 %v743
        %v1556 = vunpack.c.l.b16 %v744
        %v1557 = vunpack.c.l.b16 %v745
        %v1558 = vunpack.c.l.b16 %v746
        %v1559 = vunpack.c.l.b16 %v747
        %v1560 = vunpack.c.l.b16 %v748
        %v1561 = vunpack.c.l.b16 %v749
        %v1562 = vunpack.c.l.b16 %v750
        %v1563 = vunpack.c.l.b16 %v751
        %v1564 = vunpack.c.l.b16 %v752
        %v1565 = vunpack.c.l.b16 %v753
        %v1566 = vunpack.c.l.b16 %v754
        %v1567 = vunpack.c.l.b16 %v755
        %v1568 = vunpack.c.l.b16 %v756
        %v1569 = vunpack.c.l.b16 %v757
        %v1570 = vunpack.c.l.b16 %v758
        %v1571 = vpack.c.b16 %v1492, %v1491
        %v1572 = vpack.c.b16 %v1494, %v1493
        %v1573 = vpack.c.b16 %v1496, %v1495
        %v1574 = vpack.c.b16 %v1498, %v1497
        %v1575 = vpack.c.b16 %v1500, %v1499
        %v1576 = vpack.c.b16 %v1502, %v1501
        %v1577 = vpack.c.b16 %v1504, %v1503
        %v1578 = vpack.c.b16 %v1506, %v1505
        %v1579 = vpack.c.b16 %v1508, %v1507
        %v1580 = vpack.c.b16 %v1510, %v1509
        %v1581 = vpack.c.b16 %v1512, %v1511
        %v1582 = vpack.c.b16 %v1514, %v1513
        %v1583 = vpack.c.b16 %v1516, %v1515
        %v1584 = vpack.c.b16 %v1518, %v1517
        %v1585 = vpack.c.b16 %v1520, %v1519
        %v1586 = vpack.c.b16 %v1522, %v1521
        %v1587 = vpack.c.b16 %v1524, %v1523
        %v1588 = vpack.c.b16 %v1526, %v1525
        %v1589 = vpack.c.b16 %v1528, %v1527
        %v1590 = vpack.c.b16 %v1530, %v1529
        %v1591 = vpack.c.b16 %v1532, %v1531
        %v1592 = vpack.c.b16 %v1534, %v1533
        %v1593 = vpack.c.b16 %v1536, %v1535
        %v1594 = vpack.c.b16 %v1538, %v1537
        %v1595 = vpack.c.b16 %v1540, %v1539
        %v1596 = vpack.c.b16 %v1542, %v1541
        %v1597 = vpack.c.b16 %v1544, %v1543
        %v1598 = vpack.c.b16 %v1546, %v1545
        %v1599 = vpack.c.b16 %v1548, %v1547
        %v1600 = vpack.c.b16 %v1550, %v1549
        %v1601 = vpack.c.b16 %v1552, %v1551
        %v1602 = vpack.c.b16 %v1554, %v1553
        %v1603 = vpack.c.b16 %v1556, %v1555
        %v1604 = vpack.c.b16 %v1558, %v1557
        %v1605 = vpack.c.b16 %v1560, %v1559
        %v1606 = vpack.c.b16 %v1562, %v1561
        %v1607 = vpack.c.b16 %v1564, %v1563
        %v1608 = vpack.c.b16 %v1566, %v1565
        %v1609 = vpack.c.b16 %v1568, %v1567
        %v1610 = vpack.c.b16 %v1570, %v1569
        %1651 = vmatprep.subr.bf16.mxu0 0
        %1652 = vmatpush1.bf16.msra.mxu0 %v1571
        %1653 = vmatprep.subr.bf16.mxu0 0
        %1654 = vmatpush1.bf16.msra.mxu0 %v1572
        %1655 = vmatprep.subr.bf16.mxu0 0
        %1656 = vmatpush1.bf16.msra.mxu0 %v1573
        %1657 = vmatprep.subr.bf16.mxu0 0
        %1658 = vmatpush1.bf16.msra.mxu0 %v1574
        %1659 = vmatprep.subr.bf16.mxu0 0
        %1660 = vmatpush1.bf16.msra.mxu0 %v1575
        %1661 = vmatprep.subr.bf16.mxu0 0
        %1662 = vmatpush1.bf16.msra.mxu0 %v1576
        %1663 = vmatprep.subr.bf16.mxu0 0
        %1664 = vmatpush1.bf16.msra.mxu0 %v1577
        %1665 = vmatprep.subr.bf16.mxu0 0
        %1666 = vmatpush1.bf16.msra.mxu0 %v1578
        %1667 = vmatprep.subr.bf16.mxu0 0
        %1668 = vmatpush1.bf16.msra.mxu0 %v1579
        %1669 = vmatprep.subr.bf16.mxu0 0
        %1670 = vmatpush1.bf16.msra.mxu0 %v1580
        %1671 = vmatprep.subr.bf16.mxu0 0
        %1672 = vmatpush1.bf16.msra.mxu0 %v1581
        %1673 = vmatprep.subr.bf16.mxu0 0
        %1674 = vmatpush1.bf16.msra.mxu0 %v1582
        %1675 = vmatprep.subr.bf16.mxu0 0
        %1676 = vmatpush1.bf16.msra.mxu0 %v1583
        %1677 = vmatprep.subr.bf16.mxu0 0
        %1678 = vmatpush1.bf16.msra.mxu0 %v1584
        %1679 = vmatprep.subr.bf16.mxu0 0
        %1680 = vmatpush1.bf16.msra.mxu0 %v1585
        %1681 = vmatprep.subr.bf16.mxu0 0
        %1682 = vmatpush1.bf16.msra.mxu0 %v1586
        %1683 = vmatprep.mubr.bf16.mxu0 %v439
        %1684 = vmatmul.mubr.bf16.gmra.mrb[0].mxu0 %v387
        %v1685 = vpop.f32.mrb[0].mxu0
        %v1686 = vadd.f32 %v1349, %v1685
        %v1687 = vpop.f32.mrb[0].mxu0
        %v1688 = vpop.f32.mrb[0].mxu0
        %v1689 = vadd.f32 %v1352, %v1688
        %v1690 = vpop.f32.mrb[0].mxu0
        %1691 = vmatprep.mubr.bf16.mxu0 %v451
        %1692 = vmatmul.mubr.bf16.gmra.mrb[0].mxu0 %v388
        %v1693 = vpop.f32.mrb[0].mxu0
        %v1694 = vadd.f32 %v1357, %v1693
        %v1695 = vpop.f32.mrb[0].mxu0
        %v1696 = vpop.f32.mrb[0].mxu0
        %v1697 = vadd.f32 %v1360, %v1696
        %v1698 = vpop.f32.mrb[0].mxu0
        %1699 = vmatprep.mubr.bf16.mxu0 %v463
        %1700 = vmatmul.mubr.bf16.gmra.mrb[0].mxu0 %v389
        %v1701 = vpop.f32.mrb[0].mxu0
        %v1702 = vadd.f32 %v1365, %v1701
        %v1703 = vpop.f32.mrb[0].mxu0
        %v1704 = vpop.f32.mrb[0].mxu0
        %v1705 = vadd.f32 %v1368, %v1704
        %v1706 = vpop.f32.mrb[0].mxu0
        %1707 = vmatprep.mubr.bf16.mxu0 %v475
        %1708 = vmatmul.mubr.bf16.gmra.mrb[0].mxu0 %v390
        %v1709 = vpop.f32.mrb[0].mxu0
        %v1710 = vadd.f32 %v1373, %v1709
        %v1711 = vpop.f32.mrb[0].mxu0
        %v1712 = vpop.f32.mrb[0].mxu0
        %v1713 = vadd.f32 %v1376, %v1712
        %v1714 = vpop.f32.mrb[0].mxu0
        %1715 = vmatprep.mubr.bf16.mxu0 %v487
        %1716 = vmatmul.mubr.bf16.gmra.mrb[0].mxu0 %v391
        %v1717 = vpop.f32.mrb[0].mxu0
        %v1718 = vadd.f32 %v1381, %v1717
        %v1719 = vpop.f32.mrb[0].mxu0
        %v1720 = vpop.f32.mrb[0].mxu0
        %v1721 = vadd.f32 %v1384, %v1720
        %v1722 = vpop.f32.mrb[0].mxu0
        %1723 = vmatprep.mubr.bf16.mxu0 %v499
        %1724 = vmatmul.mubr.bf16.gmra.mrb[0].mxu0 %v392
        %v1725 = vpop.f32.mrb[0].mxu0
        %v1726 = vadd.f32 %v1389, %v1725
        %v1727 = vpop.f32.mrb[0].mxu0
        %v1728 = vpop.f32.mrb[0].mxu0
        %v1729 = vadd.f32 %v1392, %v1728
        %v1730 = vpop.f32.mrb[0].mxu0
        %1731 = vmatprep.mubr.bf16.mxu0 %v511
        %1732 = vmatmul.mubr.bf16.gmra.mrb[0].mxu0 %v393
        %v1733 = vpop.f32.mrb[0].mxu0
        %v1734 = vadd.f32 %v1397, %v1733
        %v1735 = vpop.f32.mrb[0].mxu0
        %v1736 = vpop.f32.mrb[0].mxu0
        %v1737 = vadd.f32 %v1400, %v1736
        %v1738 = vpop.f32.mrb[0].mxu0
        %1739 = vmatprep.mubr.bf16.mxu0 %v523
        %1740 = vmatmul.mubr.bf16.gmra.mrb[0].mxu0 %v394
        %v1741 = vpop.f32.mrb[0].mxu0
        %v1742 = vadd.f32 %v1405, %v1741
        %v1743 = vpop.f32.mrb[0].mxu0
        %v1744 = vpop.f32.mrb[0].mxu0
        %v1745 = vadd.f32 %v1408, %v1744
        %v1746 = vpop.f32.mrb[0].mxu0
        %1747 = vdwg.mxu0
        %1748 = vmatprep.subr.bf16.mxu0 0
        %1749 = vmatpush1.bf16.msra.mxu0 %v1587
        %1750 = vmatprep.subr.bf16.mxu0 0
        %1751 = vmatpush1.bf16.msra.mxu0 %v1588
        %1752 = vmatprep.subr.bf16.mxu0 0
        %1753 = vmatpush1.bf16.msra.mxu0 %v1589
        %1754 = vmatprep.subr.bf16.mxu0 0
        %1755 = vmatpush1.bf16.msra.mxu0 %v1590
        %1756 = vmatprep.subr.bf16.mxu0 0
        %1757 = vmatpush1.bf16.msra.mxu0 %v1591
        %1758 = vmatprep.subr.bf16.mxu0 0
        %1759 = vmatpush1.bf16.msra.mxu0 %v1592
        %1760 = vmatprep.subr.bf16.mxu0 0
        %1761 = vmatpush1.bf16.msra.mxu0 %v1593
        %1762 = vmatprep.subr.bf16.mxu0 0
        %1763 = vmatpush1.bf16.msra.mxu0 %v1594
        %1764 = vmatprep.subr.bf16.mxu0 0
        %1765 = vmatpush1.bf16.msra.mxu0 %v1595
        %1766 = vmatprep.subr.bf16.mxu0 0
        %1767 = vmatpush1.bf16.msra.mxu0 %v1596
        %1768 = vmatprep.subr.bf16.mxu0 0
        %1769 = vmatpush1.bf16.msra.mxu0 %v1597
        %1770 = vmatprep.subr.bf16.mxu0 0
        %1771 = vmatpush1.bf16.msra.mxu0 %v1598
        %1772 = vmatprep.subr.bf16.mxu0 0
        %1773 = vmatpush1.bf16.msra.mxu0 %v1599
        %1774 = vmatprep.subr.bf16.mxu0 0
        %1775 = vmatpush1.bf16.msra.mxu0 %v1600
        %1776 = vmatprep.subr.bf16.mxu0 0
        %1777 = vmatpush1.bf16.msra.mxu0 %v1601
        %1778 = vmatprep.subr.bf16.mxu0 0
        %1779 = vmatpush1.bf16.msra.mxu0 %v1602
        %1780 = vmatprep.mubr.bf16.mxu0 %v574
        %1781 = vmatmul.mubr.bf16.gmra.mrb[0].mxu0 %v535
        %v1782 = vpop.f32.mrb[0].mxu0
        %v1783 = vadd.f32 %v1686, %v1782
        %v1784 = vpop.f32.mrb[0].mxu0
        %v1785 = vpop.f32.mrb[0].mxu0
        %v1786 = vadd.f32 %v1689, %v1785
        %v1787 = vpop.f32.mrb[0].mxu0
        %1788 = vmatprep.mubr.bf16.mxu0 %v583
        %1789 = vmatmul.mubr.bf16.gmra.mrb[0].mxu0 %v538
        %v1790 = vpop.f32.mrb[0].mxu0
        %v1791 = vadd.f32 %v1694, %v1790
        %v1792 = vpop.f32.mrb[0].mxu0
        %v1793 = vpop.f32.mrb[0].mxu0
        %v1794 = vadd.f32 %v1697, %v1793
        %v1795 = vpop.f32.mrb[0].mxu0
        %1796 = vmatprep.mubr.bf16.mxu0 %v592
        %1797 = vmatmul.mubr.bf16.gmra.mrb[0].mxu0 %v541
        %v1798 = vpop.f32.mrb[0].mxu0
        %v1799 = vadd.f32 %v1702, %v1798
        %v1800 = vpop.f32.mrb[0].mxu0
        %v1801 = vpop.f32.mrb[0].mxu0
        %v1802 = vadd.f32 %v1705, %v1801
        %v1803 = vpop.f32.mrb[0].mxu0
        %1804 = vmatprep.mubr.bf16.mxu0 %v601
        %1805 = vmatmul.mubr.bf16.gmra.mrb[0].mxu0 %v544
        %v1806 = vpop.f32.mrb[0].mxu0
        %v1807 = vadd.f32 %v1710, %v1806
        %v1808 = vpop.f32.mrb[0].mxu0
        %v1809 = vpop.f32.mrb[0].mxu0
        %v1810 = vadd.f32 %v1713, %v1809
        %v1811 = vpop.f32.mrb[0].mxu0
        %1812 = vmatprep.mubr.bf16.mxu0 %v610
        %1813 = vmatmul.mubr.bf16.gmra.mrb[0].mxu0 %v547
        %v1814 = vpop.f32.mrb[0].mxu0
        %v1815 = vadd.f32 %v1718, %v1814
        %v1816 = vpop.f32.mrb[0].mxu0
        %v1817 = vpop.f32.mrb[0].mxu0
        %v1818 = vadd.f32 %v1721, %v1817
        %v1819 = vpop.f32.mrb[0].mxu0
        %1820 = vmatprep.mubr.bf16.mxu0 %v619
        %1821 = vmatmul.mubr.bf16.gmra.mrb[0].mxu0 %v550
        %v1822 = vpop.f32.mrb[0].mxu0
        %v1823 = vadd.f32 %v1726, %v1822
        %v1824 = vpop.f32.mrb[0].mxu0
        %v1825 = vpop.f32.mrb[0].mxu0
        %v1826 = vadd.f32 %v1729, %v1825
        %v1827 = vpop.f32.mrb[0].mxu0
        %1828 = vmatprep.mubr.bf16.mxu0 %v628
        %1829 = vmatmul.mubr.bf16.gmra.mrb[0].mxu0 %v553
        %v1830 = vpop.f32.mrb[0].mxu0
        %v1831 = vadd.f32 %v1734, %v1830
        %v1832 = vpop.f32.mrb[0].mxu0
        %v1833 = vpop.f32.mrb[0].mxu0
        %v1834 = vadd.f32 %v1737, %v1833
        %v1835 = vpop.f32.mrb[0].mxu0
        %1836 = vmatprep.mubr.bf16.mxu0 %v637
        %1837 = vmatmul.mubr.bf16.gmra.mrb[0].mxu0 %v556
        %v1838 = vpop.f32.mrb[0].mxu0
        %v1839 = vadd.f32 %v1742, %v1838
        %v1840 = vpop.f32.mrb[0].mxu0
        %v1841 = vpop.f32.mrb[0].mxu0
        %v1842 = vadd.f32 %v1745, %v1841
        %v1843 = vpop.f32.mrb[0].mxu0
        %1844 = vdwg.mxu0
        %1845 = vmatprep.subr.bf16.mxu0 0
        %1846 = vmatpush1.bf16.msra.mxu0 %v1603
        %1847 = vmatprep.subr.bf16.mxu0 0
        %1848 = vmatpush1.bf16.msra.mxu0 %v1604
        %1849 = vmatprep.subr.bf16.mxu0 0
        %1850 = vmatpush1.bf16.msra.mxu0 %v1605
        %1851 = vmatprep.subr.bf16.mxu0 0
        %1852 = vmatpush1.bf16.msra.mxu0 %v1606
        %1853 = vmatprep.subr.bf16.mxu0 0
        %1854 = vmatpush1.bf16.msra.mxu0 %v1607
        %1855 = vmatprep.subr.bf16.mxu0 0
        %1856 = vmatpush1.bf16.msra.mxu0 %v1608
        %1857 = vmatprep.subr.bf16.mxu0 0
        %1858 = vmatpush1.bf16.msra.mxu0 %v1609
        %1859 = vmatprep.subr.bf16.mxu0 0
        %1860 = vmatpush1.bf16.msra.mxu0 %v1610
        %1861 = vmatprep.subr.bf16.mxu0 0
        %1862 = vmatpush1.bf16.msra.mxu0 0
        %1863 = vmatprep.subr.bf16.mxu0 0
        %1864 = vmatpush1.bf16.msra.mxu0 0
        %1865 = vmatprep.subr.bf16.mxu0 0
        %1866 = vmatpush1.bf16.msra.mxu0 0
        %1867 = vmatprep.subr.bf16.mxu0 0
        %1868 = vmatpush1.bf16.msra.mxu0 0
        %1869 = vmatprep.subr.bf16.mxu0 0
        %1870 = vmatpush1.bf16.msra.mxu0 0
        %1871 = vmatprep.subr.bf16.mxu0 0
        %1872 = vmatpush1.bf16.msra.mxu0 0
        %1873 = vmatprep.subr.bf16.mxu0 0
        %1874 = vmatpush1.bf16.msra.mxu0 0
        %1875 = vmatprep.subr.bf16.mxu0 0
        %1876 = vmatpush1.bf16.msra.mxu0 0
        %1877 = vmatprep.mubr.bf16.mxu0 0
        %1878 = vmatmul.mubr.bf16.gmra.mrb[0].mxu0 %v649
        %v1879 = vpop.f32.mrb[0].mxu0
        %v1880 = vadd.f32 %v1783, %v1879
        %v1881 = vpop.f32.mrb[0].mxu0
        %v1882 = vpop.f32.mrb[0].mxu0
        %v1883 = vadd.f32 %v1786, %v1882
        %v1884 = vpop.f32.mrb[0].mxu0
        %1885 = vmatprep.mubr.bf16.mxu0 0
        %1886 = vmatmul.mubr.bf16.gmra.mrb[0].mxu0 %v652
        %v1887 = vpop.f32.mrb[0].mxu0
        %v1888 = vadd.f32 %v1791, %v1887
        %v1889 = vpop.f32.mrb[0].mxu0
        %v1890 = vpop.f32.mrb[0].mxu0
        %v1891 = vadd.f32 %v1794, %v1890
        %v1892 = vpop.f32.mrb[0].mxu0
        %1893 = vmatprep.mubr.bf16.mxu0 0
        %1894 = vmatmul.mubr.bf16.gmra.mrb[0].mxu0 %v655
        %v1895 = vpop.f32.mrb[0].mxu0
        %v1896 = vadd.f32 %v1799, %v1895
        %v1897 = vpop.f32.mrb[0].mxu0
        %v1898 = vpop.f32.mrb[0].mxu0
        %v1899 = vadd.f32 %v1802, %v1898
        %v1900 = vpop.f32.mrb[0].mxu0
        %1901 = vmatprep.mubr.bf16.mxu0 0
        %1902 = vmatmul.mubr.bf16.gmra.mrb[0].mxu0 %v658
        %v1903 = vpop.f32.mrb[0].mxu0
        %v1904 = vadd.f32 %v1807, %v1903
        %v1905 = vpop.f32.mrb[0].mxu0
        %v1906 = vpop.f32.mrb[0].mxu0
        %v1907 = vadd.f32 %v1810, %v1906
        %v1908 = vpop.f32.mrb[0].mxu0
        %1909 = vmatprep.mubr.bf16.mxu0 0
        %1910 = vmatmul.mubr.bf16.gmra.mrb[0].mxu0 %v661
        %v1911 = vpop.f32.mrb[0].mxu0
        %v1912 = vadd.f32 %v1815, %v1911
        %v1913 = vpop.f32.mrb[0].mxu0
        %v1914 = vpop.f32.mrb[0].mxu0
        %v1915 = vadd.f32 %v1818, %v1914
        %v1916 = vpop.f32.mrb[0].mxu0
        %1917 = vmatprep.mubr.bf16.mxu0 0
        %1918 = vmatmul.mubr.bf16.gmra.mrb[0].mxu0 %v664
        %v1919 = vpop.f32.mrb[0].mxu0
        %v1920 = vadd.f32 %v1823, %v1919
        %v1921 = vpop.f32.mrb[0].mxu0
        %v1922 = vpop.f32.mrb[0].mxu0
        %v1923 = vadd.f32 %v1826, %v1922
        %v1924 = vpop.f32.mrb[0].mxu0
        %1925 = vmatprep.mubr.bf16.mxu0 0
        %1926 = vmatmul.mubr.bf16.gmra.mrb[0].mxu0 %v667
        %v1927 = vpop.f32.mrb[0].mxu0
        %v1928 = vadd.f32 %v1831, %v1927
        %v1929 = vpop.f32.mrb[0].mxu0
        %v1930 = vpop.f32.mrb[0].mxu0
        %v1931 = vadd.f32 %v1834, %v1930
        %v1932 = vpop.f32.mrb[0].mxu0
        %1933 = vmatprep.mubr.bf16.mxu0 0
        %1934 = vmatmul.mubr.bf16.gmra.mrb[0].mxu0 %v670
        %v1935 = vpop.f32.mrb[0].mxu0
        %v1936 = vadd.f32 %v1839, %v1935
        %v1937 = vpop.f32.mrb[0].mxu0
        %v1938 = vpop.f32.mrb[0].mxu0
        %v1939 = vadd.f32 %v1842, %v1938
        %v1940 = vpop.f32.mrb[0].mxu0
        %1941 = vdwg.mxu0
        %v1944 = vunpack.c.l.b16 %v346
        %v1945 = vunpack.c.l.b16 %v347
        %v1946 = vpack.c.b16 %v1945, %v1944
        %v1949 = vunpack.c.l.b16 %v348
        %v1950 = vpack.c.b16 %v1949, %v1949
        %v1952 = vshrl.u32 %v1946, 16
        %v1954 = vshll.u32 %v1946, 16
        %v1956 = vrot.slane %v1954, 1
        %v1957 = vor.u32 %v1952, %v1956
        %v1959 = vshll.u32 %v1950, 16
        %v1961 = vrot.slane %v1959, 1
        %v1962 = vsel %vm427, %v1957, %v1961
        %v1964 = vrot.slane %v1946, 1
        %v1965 = vrot.slane %v1950, 1
        %v1966 = vsel %vm532, %v1964, %v1965
        %v1968 = vrot.slane %v1952, 1
        %v1969 = vrot.slane %v1954, 2
        %v1970 = vor.u32 %v1968, %v1969
        %v1971 = vshrl.u32 %v1950, 16
        %v1973 = vrot.slane %v1971, 1
        %v1974 = vrot.slane %v1959, 2
        %v1975 = vor.u32 %v1973, %v1974
        %v1976 = vsel %vm565, %v1970, %v1975
        %v1978 = vrot.slane %v1946, 2
        %v1979 = vrot.slane %v1950, 2
        %v1980 = vsel %vm646, %v1978, %v1979
        %s1982 = scalar_lea.vmem [#allocation2], 640
        %v1983 = vld [vmem:[%s1982] sm:$0xf]
        %v1984 = vld [vmem:[%s1982 + $0x4] sm:$0xf]
        %v1985 = vld [vmem:[%s1982 + $0x8] sm:$0xf]
        %v1986 = vld [vmem:[%s1982 + $0xc] sm:$0xf]
        %v1987 = vld [vmem:[%s1982 + $0x10] sm:$0xf]
        %v1988 = vld [vmem:[%s1982 + $0x14] sm:$0xf]
        %v1989 = vld [vmem:[%s1982 + $0x18] sm:$0xf]
        %v1990 = vld [vmem:[%s1982 + $0x1c] sm:$0xf]
        %v1991 = vld [vmem:[%s1982 + $0x20] sm:$0xf]
        %v1992 = vld [vmem:[%s1982 + $0x24] sm:$0xf]
        %v1993 = vld [vmem:[%s1982 + $0x28] sm:$0xf]
        %v1994 = vld [vmem:[%s1982 + $0x2c] sm:$0xf]
        %v1995 = vld [vmem:[%s1982 + $0x30] sm:$0xf]
        %v1996 = vld [vmem:[%s1982 + $0x34] sm:$0xf]
        %v1997 = vld [vmem:[%s1982 + $0x38] sm:$0xf]
        %v1998 = vld [vmem:[%s1982 + $0x3c] sm:$0xf]
        %v1999 = vld [vmem:[%s1982 + $0x40] sm:$0xf]
        %v2000 = vld [vmem:[%s1982 + $0x44] sm:$0xf]
        %v2001 = vld [vmem:[%s1982 + $0x48] sm:$0xf]
        %v2002 = vld [vmem:[%s1982 + $0x4c] sm:$0xf]
        %v2003 = vld [vmem:[%s1982 + $0x50] sm:$0xf]
        %v2004 = vld [vmem:[%s1982 + $0x54] sm:$0xf]
        %v2005 = vld [vmem:[%s1982 + $0x58] sm:$0xf]
        %v2006 = vld [vmem:[%s1982 + $0x5c] sm:$0xf]
        %v2007 = vld [vmem:[%s1982 + $0x60] sm:$0xf]
        %v2008 = vld [vmem:[%s1982 + $0x64] sm:$0xf]
        %v2009 = vld [vmem:[%s1982 + $0x68] sm:$0xf]
        %v2010 = vld [vmem:[%s1982 + $0x6c] sm:$0xf]
        %v2011 = vld [vmem:[%s1982 + $0x70] sm:$0xf]
        %v2012 = vld [vmem:[%s1982 + $0x74] sm:$0xf]
        %v2013 = vld [vmem:[%s1982 + $0x78] sm:$0xf]
        %v2014 = vld [vmem:[%s1982 + $0x7c] sm:$0xf]
        %v2015 = vld [vmem:[%s1982 + $0x80] sm:$0xf]
        %v2016 = vld [vmem:[%s1982 + $0x84] sm:$0xf]
        %v2017 = vld [vmem:[%s1982 + $0x88] sm:$0xf]
        %v2018 = vld [vmem:[%s1982 + $0x8c] sm:$0xf]
        %v2019 = vld [vmem:[%s1982 + $0x90] sm:$0xf]
        %v2020 = vld [vmem:[%s1982 + $0x94] sm:$0xf]
        %v2021 = vld [vmem:[%s1982 + $0x98] sm:$0xf]
        %v2022 = vld [vmem:[%s1982 + $0x9c] sm:$0xf]
        %v2023 = vld [vmem:[%s1982 + $0xa0] sm:$0xf]
        %v2024 = vld [vmem:[%s1982 + $0xa4] sm:$0xf]
        %v2025 = vld [vmem:[%s1982 + $0xa8] sm:$0xf]
        %v2026 = vld [vmem:[%s1982 + $0xac] sm:$0xf]
        %v2027 = vld [vmem:[%s1982 + $0xb0] sm:$0xf]
        %v2028 = vld [vmem:[%s1982 + $0xb4] sm:$0xf]
        %v2029 = vld [vmem:[%s1982 + $0xb8] sm:$0xf]
        %v2030 = vld [vmem:[%s1982 + $0xbc] sm:$0xf]
        %v2031 = vld [vmem:[%s1982 + $0xc0] sm:$0xf]
        %v2032 = vld [vmem:[%s1982 + $0xc4] sm:$0xf]
        %v2033 = vld [vmem:[%s1982 + $0xc8] sm:$0xf]
        %v2034 = vld [vmem:[%s1982 + $0xcc] sm:$0xf]
        %v2035 = vld [vmem:[%s1982 + $0xd0] sm:$0xf]
        %v2036 = vld [vmem:[%s1982 + $0xd4] sm:$0xf]
        %v2037 = vld [vmem:[%s1982 + $0xd8] sm:$0xf]
        %v2038 = vld [vmem:[%s1982 + $0xdc] sm:$0xf]
        %v2039 = vld [vmem:[%s1982 + $0xe0] sm:$0xf]
        %v2040 = vld [vmem:[%s1982 + $0xe4] sm:$0xf]
        %v2041 = vld [vmem:[%s1982 + $0xe8] sm:$0xf]
        %v2042 = vld [vmem:[%s1982 + $0xec] sm:$0xf]
        %v2043 = vld [vmem:[%s1982 + $0xf0] sm:$0xf]
        %v2044 = vld [vmem:[%s1982 + $0xf4] sm:$0xf]
        %v2045 = vld [vmem:[%s1982 + $0xf8] sm:$0xf]
        %v2046 = vld [vmem:[%s1982 + $0xfc] sm:$0xf]
        %v2047 = vld [vmem:[%s1982 + $0x100] sm:$0xf]
        %v2048 = vld [vmem:[%s1982 + $0x104] sm:$0xf]
        %v2049 = vld [vmem:[%s1982 + $0x108] sm:$0xf]
        %v2050 = vld [vmem:[%s1982 + $0x10c] sm:$0xf]
        %v2051 = vld [vmem:[%s1982 + $0x110] sm:$0xf]
        %v2052 = vld [vmem:[%s1982 + $0x114] sm:$0xf]
        %v2053 = vld [vmem:[%s1982 + $0x118] sm:$0xf]
        %v2054 = vld [vmem:[%s1982 + $0x11c] sm:$0xf]
        %v2055 = vld [vmem:[%s1982 + $0x120] sm:$0xf]
        %v2056 = vld [vmem:[%s1982 + $0x124] sm:$0xf]
        %v2057 = vld [vmem:[%s1982 + $0x128] sm:$0xf]
        %v2058 = vld [vmem:[%s1982 + $0x12c] sm:$0xf]
        %v2059 = vld [vmem:[%s1982 + $0x130] sm:$0xf]
        %v2060 = vld [vmem:[%s1982 + $0x134] sm:$0xf]
        %v2061 = vld [vmem:[%s1982 + $0x138] sm:$0xf]
        %v2062 = vld [vmem:[%s1982 + $0x13c] sm:$0xf]
        %v2143 = vunpack.c.l.b16 %v1983
        %v2144 = vunpack.c.l.b16 %v1984
        %v2145 = vunpack.c.l.b16 %v1985
        %v2146 = vunpack.c.l.b16 %v1986
        %v2147 = vunpack.c.l.b16 %v1987
        %v2148 = vunpack.c.l.b16 %v1988
        %v2149 = vunpack.c.l.b16 %v1989
        %v2150 = vunpack.c.l.b16 %v1990
        %v2151 = vunpack.c.l.b16 %v1991
        %v2152 = vunpack.c.l.b16 %v1992
        %v2153 = vunpack.c.l.b16 %v1993
        %v2154 = vunpack.c.l.b16 %v1994
        %v2155 = vunpack.c.l.b16 %v1995
        %v2156 = vunpack.c.l.b16 %v1996
        %v2157 = vunpack.c.l.b16 %v1997
        %v2158 = vunpack.c.l.b16 %v1998
        %v2159 = vunpack.c.l.b16 %v1999
        %v2160 = vunpack.c.l.b16 %v2000
        %v2161 = vunpack.c.l.b16 %v2001
        %v2162 = vunpack.c.l.b16 %v2002
        %v2163 = vunpack.c.l.b16 %v2003
        %v2164 = vunpack.c.l.b16 %v2004
        %v2165 = vunpack.c.l.b16 %v2005
        %v2166 = vunpack.c.l.b16 %v2006
        %v2167 = vunpack.c.l.b16 %v2007
        %v2168 = vunpack.c.l.b16 %v2008
        %v2169 = vunpack.c.l.b16 %v2009
        %v2170 = vunpack.c.l.b16 %v2010
        %v2171 = vunpack.c.l.b16 %v2011
        %v2172 = vunpack.c.l.b16 %v2012
        %v2173 = vunpack.c.l.b16 %v2013
        %v2174 = vunpack.c.l.b16 %v2014
        %v2175 = vunpack.c.l.b16 %v2015
        %v2176 = vunpack.c.l.b16 %v2016
        %v2177 = vunpack.c.l.b16 %v2017
        %v2178 = vunpack.c.l.b16 %v2018
        %v2179 = vunpack.c.l.b16 %v2019
        %v2180 = vunpack.c.l.b16 %v2020
        %v2181 = vunpack.c.l.b16 %v2021
        %v2182 = vunpack.c.l.b16 %v2022
        %v2183 = vunpack.c.l.b16 %v2023
        %v2184 = vunpack.c.l.b16 %v2024
        %v2185 = vunpack.c.l.b16 %v2025
        %v2186 = vunpack.c.l.b16 %v2026
        %v2187 = vunpack.c.l.b16 %v2027
        %v2188 = vunpack.c.l.b16 %v2028
        %v2189 = vunpack.c.l.b16 %v2029
        %v2190 = vunpack.c.l.b16 %v2030
        %v2191 = vunpack.c.l.b16 %v2031
        %v2192 = vunpack.c.l.b16 %v2032
        %v2193 = vunpack.c.l.b16 %v2033
        %v2194 = vunpack.c.l.b16 %v2034
        %v2195 = vunpack.c.l.b16 %v2035
        %v2196 = vunpack.c.l.b16 %v2036
        %v2197 = vunpack.c.l.b16 %v2037
        %v2198 = vunpack.c.l.b16 %v2038
        %v2199 = vunpack.c.l.b16 %v2039
        %v2200 = vunpack.c.l.b16 %v2040
        %v2201 = vunpack.c.l.b16 %v2041
        %v2202 = vunpack.c.l.b16 %v2042
        %v2203 = vunpack.c.l.b16 %v2043
        %v2204 = vunpack.c.l.b16 %v2044
        %v2205 = vunpack.c.l.b16 %v2045
        %v2206 = vunpack.c.l.b16 %v2046
        %v2207 = vunpack.c.l.b16 %v2047
        %v2208 = vunpack.c.l.b16 %v2048
        %v2209 = vunpack.c.l.b16 %v2049
        %v2210 = vunpack.c.l.b16 %v2050
        %v2211 = vunpack.c.l.b16 %v2051
        %v2212 = vunpack.c.l.b16 %v2052
        %v2213 = vunpack.c.l.b16 %v2053
        %v2214 = vunpack.c.l.b16 %v2054
        %v2215 = vunpack.c.l.b16 %v2055
        %v2216 = vunpack.c.l.b16 %v2056
        %v2217 = vunpack.c.l.b16 %v2057
        %v2218 = vunpack.c.l.b16 %v2058
        %v2219 = vunpack.c.l.b16 %v2059
        %v2220 = vunpack.c.l.b16 %v2060
        %v2221 = vunpack.c.l.b16 %v2061
        %v2222 = vunpack.c.l.b16 %v2062
        %v2223 = vpack.c.b16 %v2144, %v2143
        %v2224 = vpack.c.b16 %v2146, %v2145
        %v2225 = vpack.c.b16 %v2148, %v2147
        %v2226 = vpack.c.b16 %v2150, %v2149
        %v2227 = vpack.c.b16 %v2152, %v2151
        %v2228 = vpack.c.b16 %v2154, %v2153
        %v2229 = vpack.c.b16 %v2156, %v2155
        %v2230 = vpack.c.b16 %v2158, %v2157
        %v2231 = vpack.c.b16 %v2160, %v2159
        %v2232 = vpack.c.b16 %v2162, %v2161
        %v2233 = vpack.c.b16 %v2164, %v2163
        %v2234 = vpack.c.b16 %v2166, %v2165
        %v2235 = vpack.c.b16 %v2168, %v2167
        %v2236 = vpack.c.b16 %v2170, %v2169
        %v2237 = vpack.c.b16 %v2172, %v2171
        %v2238 = vpack.c.b16 %v2174, %v2173
        %v2239 = vpack.c.b16 %v2176, %v2175
        %v2240 = vpack.c.b16 %v2178, %v2177
        %v2241 = vpack.c.b16 %v2180, %v2179
        %v2242 = vpack.c.b16 %v2182, %v2181
        %v2243 = vpack.c.b16 %v2184, %v2183
        %v2244 = vpack.c.b16 %v2186, %v2185
        %v2245 = vpack.c.b16 %v2188, %v2187
        %v2246 = vpack.c.b16 %v2190, %v2189
        %v2247 = vpack.c.b16 %v2192, %v2191
        %v2248 = vpack.c.b16 %v2194, %v2193
        %v2249 = vpack.c.b16 %v2196, %v2195
        %v2250 = vpack.c.b16 %v2198, %v2197
        %v2251 = vpack.c.b16 %v2200, %v2199
        %v2252 = vpack.c.b16 %v2202, %v2201
        %v2253 = vpack.c.b16 %v2204, %v2203
        %v2254 = vpack.c.b16 %v2206, %v2205
        %v2255 = vpack.c.b16 %v2208, %v2207
        %v2256 = vpack.c.b16 %v2210, %v2209
        %v2257 = vpack.c.b16 %v2212, %v2211
        %v2258 = vpack.c.b16 %v2214, %v2213
        %v2259 = vpack.c.b16 %v2216, %v2215
        %v2260 = vpack.c.b16 %v2218, %v2217
        %v2261 = vpack.c.b16 %v2220, %v2219
        %v2262 = vpack.c.b16 %v2222, %v2221
        %2303 = vmatprep.subr.bf16.mxu0 0
        %2304 = vmatpush1.bf16.msra.mxu0 %v2223
        %2305 = vmatprep.subr.bf16.mxu0 0
        %2306 = vmatpush1.bf16.msra.mxu0 %v2224
        %2307 = vmatprep.subr.bf16.mxu0 0
        %2308 = vmatpush1.bf16.msra.mxu0 %v2225
        %2309 = vmatprep.subr.bf16.mxu0 0
        %2310 = vmatpush1.bf16.msra.mxu0 %v2226
        %2311 = vmatprep.subr.bf16.mxu0 0
        %2312 = vmatpush1.bf16.msra.mxu0 %v2227
        %2313 = vmatprep.subr.bf16.mxu0 0
        %2314 = vmatpush1.bf16.msra.mxu0 %v2228
        %2315 = vmatprep.subr.bf16.mxu0 0
        %2316 = vmatpush1.bf16.msra.mxu0 %v2229
        %2317 = vmatprep.subr.bf16.mxu0 0
        %2318 = vmatpush1.bf16.msra.mxu0 %v2230
        %2319 = vmatprep.subr.bf16.mxu0 0
        %2320 = vmatpush1.bf16.msra.mxu0 %v2231
        %2321 = vmatprep.subr.bf16.mxu0 0
        %2322 = vmatpush1.bf16.msra.mxu0 %v2232
        %2323 = vmatprep.subr.bf16.mxu0 0
        %2324 = vmatpush1.bf16.msra.mxu0 %v2233
        %2325 = vmatprep.subr.bf16.mxu0 0
        %2326 = vmatpush1.bf16.msra.mxu0 %v2234
        %2327 = vmatprep.subr.bf16.mxu0 0
        %2328 = vmatpush1.bf16.msra.mxu0 %v2235
        %2329 = vmatprep.subr.bf16.mxu0 0
        %2330 = vmatpush1.bf16.msra.mxu0 %v2236
        %2331 = vmatprep.subr.bf16.mxu0 0
        %2332 = vmatpush1.bf16.msra.mxu0 %v2237
        %2333 = vmatprep.subr.bf16.mxu0 0
        %2334 = vmatpush1.bf16.msra.mxu0 %v2238
        %2335 = vmatprep.mubr.bf16.mxu0 %v463
        %2336 = vmatmul.mubr.bf16.gmra.mrb[0].mxu0 %v389
        %v2337 = vpop.f32.mrb[0].mxu0
        %v2338 = vadd.f32 0.0, %v2337
        %v2339 = vpop.f32.mrb[0].mxu0
        %v2340 = vpop.f32.mrb[0].mxu0
        %v2341 = vadd.f32 0.0, %v2340
        %v2342 = vpop.f32.mrb[0].mxu0
        %2343 = vmatprep.mubr.bf16.mxu0 %v475
        %2344 = vmatmul.mubr.bf16.gmra.mrb[0].mxu0 %v390
        %v2345 = vpop.f32.mrb[0].mxu0
        %v2346 = vadd.f32 0.0, %v2345
        %v2347 = vpop.f32.mrb[0].mxu0
        %v2348 = vpop.f32.mrb[0].mxu0
        %v2349 = vadd.f32 0.0, %v2348
        %v2350 = vpop.f32.mrb[0].mxu0
        %2351 = vmatprep.mubr.bf16.mxu0 %v487
        %2352 = vmatmul.mubr.bf16.gmra.mrb[0].mxu0 %v391
        %v2353 = vpop.f32.mrb[0].mxu0
        %v2354 = vadd.f32 0.0, %v2353
        %v2355 = vpop.f32.mrb[0].mxu0
        %v2356 = vpop.f32.mrb[0].mxu0
        %v2357 = vadd.f32 0.0, %v2356
        %v2358 = vpop.f32.mrb[0].mxu0
        %2359 = vmatprep.mubr.bf16.mxu0 %v499
        %2360 = vmatmul.mubr.bf16.gmra.mrb[0].mxu0 %v392
        %v2361 = vpop.f32.mrb[0].mxu0
        %v2362 = vadd.f32 0.0, %v2361
        %v2363 = vpop.f32.mrb[0].mxu0
        %v2364 = vpop.f32.mrb[0].mxu0
        %v2365 = vadd.f32 0.0, %v2364
        %v2366 = vpop.f32.mrb[0].mxu0
        %2367 = vmatprep.mubr.bf16.mxu0 %v511
        %2368 = vmatmul.mubr.bf16.gmra.mrb[0].mxu0 %v393
        %v2369 = vpop.f32.mrb[0].mxu0
        %v2370 = vadd.f32 0.0, %v2369
        %v2371 = vpop.f32.mrb[0].mxu0
        %v2372 = vpop.f32.mrb[0].mxu0
        %v2373 = vadd.f32 0.0, %v2372
        %v2374 = vpop.f32.mrb[0].mxu0
        %2375 = vmatprep.mubr.bf16.mxu0 %v523
        %2376 = vmatmul.mubr.bf16.gmra.mrb[0].mxu0 %v394
        %v2377 = vpop.f32.mrb[0].mxu0
        %v2378 = vadd.f32 0.0, %v2377
        %v2379 = vpop.f32.mrb[0].mxu0
        %v2380 = vpop.f32.mrb[0].mxu0
        %v2381 = vadd.f32 0.0, %v2380
        %v2382 = vpop.f32.mrb[0].mxu0
        %2383 = vmatprep.mubr.bf16.mxu0 %v779
        %2384 = vmatmul.mubr.bf16.gmra.mrb[0].mxu0 %v763
        %v2385 = vpop.f32.mrb[0].mxu0
        %v2386 = vadd.f32 0.0, %v2385
        %v2387 = vpop.f32.mrb[0].mxu0
        %v2388 = vpop.f32.mrb[0].mxu0
        %v2389 = vadd.f32 0.0, %v2388
        %v2390 = vpop.f32.mrb[0].mxu0
        %2391 = vmatprep.mubr.bf16.mxu0 %v1962
        %2392 = vmatmul.mubr.bf16.gmra.mrb[0].mxu0 %v1946
        %v2393 = vpop.f32.mrb[0].mxu0
        %v2394 = vadd.f32 0.0, %v2393
        %v2395 = vpop.f32.mrb[0].mxu0
        %v2396 = vpop.f32.mrb[0].mxu0
        %v2397 = vadd.f32 0.0, %v2396
        %v2398 = vpop.f32.mrb[0].mxu0
        %2399 = vdwg.mxu0
        %2400 = vmatprep.subr.bf16.mxu0 0
        %2401 = vmatpush1.bf16.msra.mxu0 %v2239
        %2402 = vmatprep.subr.bf16.mxu0 0
        %2403 = vmatpush1.bf16.msra.mxu0 %v2240
        %2404 = vmatprep.subr.bf16.mxu0 0
        %2405 = vmatpush1.bf16.msra.mxu0 %v2241
        %2406 = vmatprep.subr.bf16.mxu0 0
        %2407 = vmatpush1.bf16.msra.mxu0 %v2242
        %2408 = vmatprep.subr.bf16.mxu0 0
        %2409 = vmatpush1.bf16.msra.mxu0 %v2243
        %2410 = vmatprep.subr.bf16.mxu0 0
        %2411 = vmatpush1.bf16.msra.mxu0 %v2244
        %2412 = vmatprep.subr.bf16.mxu0 0
        %2413 = vmatpush1.bf16.msra.mxu0 %v2245
        %2414 = vmatprep.subr.bf16.mxu0 0
        %2415 = vmatpush1.bf16.msra.mxu0 %v2246
        %2416 = vmatprep.subr.bf16.mxu0 0
        %2417 = vmatpush1.bf16.msra.mxu0 %v2247
        %2418 = vmatprep.subr.bf16.mxu0 0
        %2419 = vmatpush1.bf16.msra.mxu0 %v2248
        %2420 = vmatprep.subr.bf16.mxu0 0
        %2421 = vmatpush1.bf16.msra.mxu0 %v2249
        %2422 = vmatprep.subr.bf16.mxu0 0
        %2423 = vmatpush1.bf16.msra.mxu0 %v2250
        %2424 = vmatprep.subr.bf16.mxu0 0
        %2425 = vmatpush1.bf16.msra.mxu0 %v2251
        %2426 = vmatprep.subr.bf16.mxu0 0
        %2427 = vmatpush1.bf16.msra.mxu0 %v2252
        %2428 = vmatprep.subr.bf16.mxu0 0
        %2429 = vmatpush1.bf16.msra.mxu0 %v2253
        %2430 = vmatprep.subr.bf16.mxu0 0
        %2431 = vmatpush1.bf16.msra.mxu0 %v2254
        %2432 = vmatprep.mubr.bf16.mxu0 %v592
        %2433 = vmatmul.mubr.bf16.gmra.mrb[0].mxu0 %v541
        %v2434 = vpop.f32.mrb[0].mxu0
        %v2435 = vadd.f32 %v2338, %v2434
        %v2436 = vpop.f32.mrb[0].mxu0
        %v2437 = vpop.f32.mrb[0].mxu0
        %v2438 = vadd.f32 %v2341, %v2437
        %v2439 = vpop.f32.mrb[0].mxu0
        %2440 = vmatprep.mubr.bf16.mxu0 %v601
        %2441 = vmatmul.mubr.bf16.gmra.mrb[0].mxu0 %v544
        %v2442 = vpop.f32.mrb[0].mxu0
        %v2443 = vadd.f32 %v2346, %v2442
        %v2444 = vpop.f32.mrb[0].mxu0
        %v2445 = vpop.f32.mrb[0].mxu0
        %v2446 = vadd.f32 %v2349, %v2445
        %v2447 = vpop.f32.mrb[0].mxu0
        %2448 = vmatprep.mubr.bf16.mxu0 %v610
        %2449 = vmatmul.mubr.bf16.gmra.mrb[0].mxu0 %v547
        %v2450 = vpop.f32.mrb[0].mxu0
        %v2451 = vadd.f32 %v2354, %v2450
        %v2452 = vpop.f32.mrb[0].mxu0
        %v2453 = vpop.f32.mrb[0].mxu0
        %v2454 = vadd.f32 %v2357, %v2453
        %v2455 = vpop.f32.mrb[0].mxu0
        %2456 = vmatprep.mubr.bf16.mxu0 %v619
        %2457 = vmatmul.mubr.bf16.gmra.mrb[0].mxu0 %v550
        %v2458 = vpop.f32.mrb[0].mxu0
        %v2459 = vadd.f32 %v2362, %v2458
        %v2460 = vpop.f32.mrb[0].mxu0
        %v2461 = vpop.f32.mrb[0].mxu0
        %v2462 = vadd.f32 %v2365, %v2461
        %v2463 = vpop.f32.mrb[0].mxu0
        %2464 = vmatprep.mubr.bf16.mxu0 %v628
        %2465 = vmatmul.mubr.bf16.gmra.mrb[0].mxu0 %v553
        %v2466 = vpop.f32.mrb[0].mxu0
        %v2467 = vadd.f32 %v2370, %v2466
        %v2468 = vpop.f32.mrb[0].mxu0
        %v2469 = vpop.f32.mrb[0].mxu0
        %v2470 = vadd.f32 %v2373, %v2469
        %v2471 = vpop.f32.mrb[0].mxu0
        %2472 = vmatprep.mubr.bf16.mxu0 %v637
        %2473 = vmatmul.mubr.bf16.gmra.mrb[0].mxu0 %v556
        %v2474 = vpop.f32.mrb[0].mxu0
        %v2475 = vadd.f32 %v2378, %v2474
        %v2476 = vpop.f32.mrb[0].mxu0
        %v2477 = vpop.f32.mrb[0].mxu0
        %v2478 = vadd.f32 %v2381, %v2477
        %v2479 = vpop.f32.mrb[0].mxu0
        %2480 = vmatprep.mubr.bf16.mxu0 %v793
        %2481 = vmatmul.mubr.bf16.gmra.mrb[0].mxu0 %v783
        %v2482 = vpop.f32.mrb[0].mxu0
        %v2483 = vadd.f32 %v2386, %v2482
        %v2484 = vpop.f32.mrb[0].mxu0
        %v2485 = vpop.f32.mrb[0].mxu0
        %v2486 = vadd.f32 %v2389, %v2485
        %v2487 = vpop.f32.mrb[0].mxu0
        %2488 = vmatprep.mubr.bf16.mxu0 %v1976
        %2489 = vmatmul.mubr.bf16.gmra.mrb[0].mxu0 %v1966
        %v2490 = vpop.f32.mrb[0].mxu0
        %v2491 = vadd.f32 %v2394, %v2490
        %v2492 = vpop.f32.mrb[0].mxu0
        %v2493 = vpop.f32.mrb[0].mxu0
        %v2494 = vadd.f32 %v2397, %v2493
        %v2495 = vpop.f32.mrb[0].mxu0
        %2496 = vdwg.mxu0
        %2497 = vmatprep.subr.bf16.mxu0 0
        %2498 = vmatpush1.bf16.msra.mxu0 %v2255
        %2499 = vmatprep.subr.bf16.mxu0 0
        %2500 = vmatpush1.bf16.msra.mxu0 %v2256
        %2501 = vmatprep.subr.bf16.mxu0 0
        %2502 = vmatpush1.bf16.msra.mxu0 %v2257
        %2503 = vmatprep.subr.bf16.mxu0 0
        %2504 = vmatpush1.bf16.msra.mxu0 %v2258
        %2505 = vmatprep.subr.bf16.mxu0 0
        %2506 = vmatpush1.bf16.msra.mxu0 %v2259
        %2507 = vmatprep.subr.bf16.mxu0 0
        %2508 = vmatpush1.bf16.msra.mxu0 %v2260
        %2509 = vmatprep.subr.bf16.mxu0 0
        %2510 = vmatpush1.bf16.msra.mxu0 %v2261
        %2511 = vmatprep.subr.bf16.mxu0 0
        %2512 = vmatpush1.bf16.msra.mxu0 %v2262
        %2513 = vmatprep.subr.bf16.mxu0 0
        %2514 = vmatpush1.bf16.msra.mxu0 0
        %2515 = vmatprep.subr.bf16.mxu0 0
        %2516 = vmatpush1.bf16.msra.mxu0 0
        %2517 = vmatprep.subr.bf16.mxu0 0
        %2518 = vmatpush1.bf16.msra.mxu0 0
        %2519 = vmatprep.subr.bf16.mxu0 0
        %2520 = vmatpush1.bf16.msra.mxu0 0
        %2521 = vmatprep.subr.bf16.mxu0 0
        %2522 = vmatpush1.bf16.msra.mxu0 0
        %2523 = vmatprep.subr.bf16.mxu0 0
        %2524 = vmatpush1.bf16.msra.mxu0 0
        %2525 = vmatprep.subr.bf16.mxu0 0
        %2526 = vmatpush1.bf16.msra.mxu0 0
        %2527 = vmatprep.subr.bf16.mxu0 0
        %2528 = vmatpush1.bf16.msra.mxu0 0
        %2529 = vmatprep.mubr.bf16.mxu0 0
        %2530 = vmatmul.mubr.bf16.gmra.mrb[0].mxu0 %v655
        %v2531 = vpop.f32.mrb[0].mxu0
        %v2532 = vadd.f32 %v2435, %v2531
        %v2533 = vpop.f32.mrb[0].mxu0
        %v2534 = vpop.f32.mrb[0].mxu0
        %v2535 = vadd.f32 %v2438, %v2534
        %v2536 = vpop.f32.mrb[0].mxu0
        %2537 = vmatprep.mubr.bf16.mxu0 0
        %2538 = vmatmul.mubr.bf16.gmra.mrb[0].mxu0 %v658
        %v2539 = vpop.f32.mrb[0].mxu0
        %v2540 = vadd.f32 %v2443, %v2539
        %v2541 = vpop.f32.mrb[0].mxu0
        %v2542 = vpop.f32.mrb[0].mxu0
        %v2543 = vadd.f32 %v2446, %v2542
        %v2544 = vpop.f32.mrb[0].mxu0
        %2545 = vmatprep.mubr.bf16.mxu0 0
        %2546 = vmatmul.mubr.bf16.gmra.mrb[0].mxu0 %v661
        %v2547 = vpop.f32.mrb[0].mxu0
        %v2548 = vadd.f32 %v2451, %v2547
        %v2549 = vpop.f32.mrb[0].mxu0
        %v2550 = vpop.f32.mrb[0].mxu0
        %v2551 = vadd.f32 %v2454, %v2550
        %v2552 = vpop.f32.mrb[0].mxu0
        %2553 = vmatprep.mubr.bf16.mxu0 0
        %2554 = vmatmul.mubr.bf16.gmra.mrb[0].mxu0 %v664
        %v2555 = vpop.f32.mrb[0].mxu0
        %v2556 = vadd.f32 %v2459, %v2555
        %v2557 = vpop.f32.mrb[0].mxu0
        %v2558 = vpop.f32.mrb[0].mxu0
        %v2559 = vadd.f32 %v2462, %v2558
        %v2560 = vpop.f32.mrb[0].mxu0
        %2561 = vmatprep.mubr.bf16.mxu0 0
        %2562 = vmatmul.mubr.bf16.gmra.mrb[0].mxu0 %v667
        %v2563 = vpop.f32.mrb[0].mxu0
        %v2564 = vadd.f32 %v2467, %v2563
        %v2565 = vpop.f32.mrb[0].mxu0
        %v2566 = vpop.f32.mrb[0].mxu0
        %v2567 = vadd.f32 %v2470, %v2566
        %v2568 = vpop.f32.mrb[0].mxu0
        %2569 = vmatprep.mubr.bf16.mxu0 0
        %2570 = vmatmul.mubr.bf16.gmra.mrb[0].mxu0 %v670
        %v2571 = vpop.f32.mrb[0].mxu0
        %v2572 = vadd.f32 %v2475, %v2571
        %v2573 = vpop.f32.mrb[0].mxu0
        %v2574 = vpop.f32.mrb[0].mxu0
        %v2575 = vadd.f32 %v2478, %v2574
        %v2576 = vpop.f32.mrb[0].mxu0
        %2577 = vmatprep.mubr.bf16.mxu0 0
        %2578 = vmatmul.mubr.bf16.gmra.mrb[0].mxu0 %v797
        %v2579 = vpop.f32.mrb[0].mxu0
        %v2580 = vadd.f32 %v2483, %v2579
        %v2581 = vpop.f32.mrb[0].mxu0
        %v2582 = vpop.f32.mrb[0].mxu0
        %v2583 = vadd.f32 %v2486, %v2582
        %v2584 = vpop.f32.mrb[0].mxu0
        %2585 = vmatprep.mubr.bf16.mxu0 0
        %2586 = vmatmul.mubr.bf16.gmra.mrb[0].mxu0 %v1980
        %v2587 = vpop.f32.mrb[0].mxu0
        %v2588 = vadd.f32 %v2491, %v2587
        %v2589 = vpop.f32.mrb[0].mxu0
        %v2590 = vpop.f32.mrb[0].mxu0
        %v2591 = vadd.f32 %v2494, %v2590
        %v2592 = vpop.f32.mrb[0].mxu0
        %2593 = vdwg.mxu0
        %v2594 = vadd.f32 %v1880, %v2532
        %v2595 = vadd.f32 %v1883, %v2535
        %v2596 = vadd.f32 %v1888, %v2540
        %v2597 = vadd.f32 %v1891, %v2543
        %v2598 = vadd.f32 %v1896, %v2548
        %v2599 = vadd.f32 %v1899, %v2551
        %v2600 = vadd.f32 %v1904, %v2556
        %v2601 = vadd.f32 %v1907, %v2559
        %v2602 = vadd.f32 %v1912, %v2564
        %v2603 = vadd.f32 %v1915, %v2567
        %v2604 = vadd.f32 %v1920, %v2572
        %v2605 = vadd.f32 %v1923, %v2575
        %v2606 = vadd.f32 %v1928, %v2580
        %v2607 = vadd.f32 %v1931, %v2583
        %v2608 = vadd.f32 %v1936, %v2588
        %v2609 = vadd.f32 %v1939, %v2591
        %v2612 = vunpack.c.l.b16 %v349
        %v2613 = vunpack.c.l.b16 %v350
        %v2614 = vpack.c.b16 %v2613, %v2612
        %v2617 = vunpack.c.l.b16 %v351
        %v2618 = vpack.c.b16 %v2617, %v2617
        %v2620 = vshrl.u32 %v2614, 16
        %v2622 = vshll.u32 %v2614, 16
        %v2624 = vrot.slane %v2622, 1
        %v2625 = vor.u32 %v2620, %v2624
        %v2627 = vshll.u32 %v2618, 16
        %v2629 = vrot.slane %v2627, 1
        %v2630 = vsel %vm427, %v2625, %v2629
        %v2632 = vrot.slane %v2614, 1
        %v2633 = vrot.slane %v2618, 1
        %v2634 = vsel %vm532, %v2632, %v2633
        %v2636 = vrot.slane %v2620, 1
        %v2637 = vrot.slane %v2622, 2
        %v2638 = vor.u32 %v2636, %v2637
        %v2639 = vshrl.u32 %v2618, 16
        %v2641 = vrot.slane %v2639, 1
        %v2642 = vrot.slane %v2627, 2
        %v2643 = vor.u32 %v2641, %v2642
        %v2644 = vsel %vm565, %v2638, %v2643
        %v2646 = vrot.slane %v2614, 2
        %v2647 = vrot.slane %v2618, 2
        %v2648 = vsel %vm646, %v2646, %v2647
        %s2650 = scalar_lea.vmem [#allocation2], 960
        %v2651 = vld [vmem:[%s2650] sm:$0xf]
        %v2652 = vld [vmem:[%s2650 + $0x4] sm:$0xf]
        %v2653 = vld [vmem:[%s2650 + $0x8] sm:$0xf]
        %v2654 = vld [vmem:[%s2650 + $0xc] sm:$0xf]
        %v2655 = vld [vmem:[%s2650 + $0x10] sm:$0xf]
        %v2656 = vld [vmem:[%s2650 + $0x14] sm:$0xf]
        %v2657 = vld [vmem:[%s2650 + $0x18] sm:$0xf]
        %v2658 = vld [vmem:[%s2650 + $0x1c] sm:$0xf]
        %v2659 = vld [vmem:[%s2650 + $0x20] sm:$0xf]
        %v2660 = vld [vmem:[%s2650 + $0x24] sm:$0xf]
        %v2661 = vld [vmem:[%s2650 + $0x28] sm:$0xf]
        %v2662 = vld [vmem:[%s2650 + $0x2c] sm:$0xf]
        %v2663 = vld [vmem:[%s2650 + $0x30] sm:$0xf]
        %v2664 = vld [vmem:[%s2650 + $0x34] sm:$0xf]
        %v2665 = vld [vmem:[%s2650 + $0x38] sm:$0xf]
        %v2666 = vld [vmem:[%s2650 + $0x3c] sm:$0xf]
        %v2667 = vld [vmem:[%s2650 + $0x40] sm:$0xf]
        %v2668 = vld [vmem:[%s2650 + $0x44] sm:$0xf]
        %v2669 = vld [vmem:[%s2650 + $0x48] sm:$0xf]
        %v2670 = vld [vmem:[%s2650 + $0x4c] sm:$0xf]
        %v2671 = vld [vmem:[%s2650 + $0x50] sm:$0xf]
        %v2672 = vld [vmem:[%s2650 + $0x54] sm:$0xf]
        %v2673 = vld [vmem:[%s2650 + $0x58] sm:$0xf]
        %v2674 = vld [vmem:[%s2650 + $0x5c] sm:$0xf]
        %v2675 = vld [vmem:[%s2650 + $0x60] sm:$0xf]
        %v2676 = vld [vmem:[%s2650 + $0x64] sm:$0xf]
        %v2677 = vld [vmem:[%s2650 + $0x68] sm:$0xf]
        %v2678 = vld [vmem:[%s2650 + $0x6c] sm:$0xf]
        %v2679 = vld [vmem:[%s2650 + $0x70] sm:$0xf]
        %v2680 = vld [vmem:[%s2650 + $0x74] sm:$0xf]
        %v2681 = vld [vmem:[%s2650 + $0x78] sm:$0xf]
        %v2682 = vld [vmem:[%s2650 + $0x7c] sm:$0xf]
        %v2683 = vld [vmem:[%s2650 + $0x80] sm:$0xf]
        %v2684 = vld [vmem:[%s2650 + $0x84] sm:$0xf]
        %v2685 = vld [vmem:[%s2650 + $0x88] sm:$0xf]
        %v2686 = vld [vmem:[%s2650 + $0x8c] sm:$0xf]
        %v2687 = vld [vmem:[%s2650 + $0x90] sm:$0xf]
        %v2688 = vld [vmem:[%s2650 + $0x94] sm:$0xf]
        %v2689 = vld [vmem:[%s2650 + $0x98] sm:$0xf]
        %v2690 = vld [vmem:[%s2650 + $0x9c] sm:$0xf]
        %v2691 = vld [vmem:[%s2650 + $0xa0] sm:$0xf]
        %v2692 = vld [vmem:[%s2650 + $0xa4] sm:$0xf]
        %v2693 = vld [vmem:[%s2650 + $0xa8] sm:$0xf]
        %v2694 = vld [vmem:[%s2650 + $0xac] sm:$0xf]
        %v2695 = vld [vmem:[%s2650 + $0xb0] sm:$0xf]
        %v2696 = vld [vmem:[%s2650 + $0xb4] sm:$0xf]
        %v2697 = vld [vmem:[%s2650 + $0xb8] sm:$0xf]
        %v2698 = vld [vmem:[%s2650 + $0xbc] sm:$0xf]
        %v2699 = vld [vmem:[%s2650 + $0xc0] sm:$0xf]
        %v2700 = vld [vmem:[%s2650 + $0xc4] sm:$0xf]
        %v2701 = vld [vmem:[%s2650 + $0xc8] sm:$0xf]
        %v2702 = vld [vmem:[%s2650 + $0xcc] sm:$0xf]
        %v2703 = vld [vmem:[%s2650 + $0xd0] sm:$0xf]
        %v2704 = vld [vmem:[%s2650 + $0xd4] sm:$0xf]
        %v2705 = vld [vmem:[%s2650 + $0xd8] sm:$0xf]
        %v2706 = vld [vmem:[%s2650 + $0xdc] sm:$0xf]
        %v2707 = vld [vmem:[%s2650 + $0xe0] sm:$0xf]
        %v2708 = vld [vmem:[%s2650 + $0xe4] sm:$0xf]
        %v2709 = vld [vmem:[%s2650 + $0xe8] sm:$0xf]
        %v2710 = vld [vmem:[%s2650 + $0xec] sm:$0xf]
        %v2711 = vld [vmem:[%s2650 + $0xf0] sm:$0xf]
        %v2712 = vld [vmem:[%s2650 + $0xf4] sm:$0xf]
        %v2713 = vld [vmem:[%s2650 + $0xf8] sm:$0xf]
        %v2714 = vld [vmem:[%s2650 + $0xfc] sm:$0xf]
        %v2715 = vld [vmem:[%s2650 + $0x100] sm:$0xf]
        %v2716 = vld [vmem:[%s2650 + $0x104] sm:$0xf]
        %v2717 = vld [vmem:[%s2650 + $0x108] sm:$0xf]
        %v2718 = vld [vmem:[%s2650 + $0x10c] sm:$0xf]
        %v2719 = vld [vmem:[%s2650 + $0x110] sm:$0xf]
        %v2720 = vld [vmem:[%s2650 + $0x114] sm:$0xf]
        %v2721 = vld [vmem:[%s2650 + $0x118] sm:$0xf]
        %v2722 = vld [vmem:[%s2650 + $0x11c] sm:$0xf]
        %v2723 = vld [vmem:[%s2650 + $0x120] sm:$0xf]
        %v2724 = vld [vmem:[%s2650 + $0x124] sm:$0xf]
        %v2725 = vld [vmem:[%s2650 + $0x128] sm:$0xf]
        %v2726 = vld [vmem:[%s2650 + $0x12c] sm:$0xf]
        %v2727 = vld [vmem:[%s2650 + $0x130] sm:$0xf]
        %v2728 = vld [vmem:[%s2650 + $0x134] sm:$0xf]
        %v2729 = vld [vmem:[%s2650 + $0x138] sm:$0xf]
        %v2730 = vld [vmem:[%s2650 + $0x13c] sm:$0xf]
        %v2811 = vunpack.c.l.b16 %v2651
        %v2812 = vunpack.c.l.b16 %v2652
        %v2813 = vunpack.c.l.b16 %v2653
        %v2814 = vunpack.c.l.b16 %v2654
        %v2815 = vunpack.c.l.b16 %v2655
        %v2816 = vunpack.c.l.b16 %v2656
        %v2817 = vunpack.c.l.b16 %v2657
        %v2818 = vunpack.c.l.b16 %v2658
        %v2819 = vunpack.c.l.b16 %v2659
        %v2820 = vunpack.c.l.b16 %v2660
        %v2821 = vunpack.c.l.b16 %v2661
        %v2822 = vunpack.c.l.b16 %v2662
        %v2823 = vunpack.c.l.b16 %v2663
        %v2824 = vunpack.c.l.b16 %v2664
        %v2825 = vunpack.c.l.b16 %v2665
        %v2826 = vunpack.c.l.b16 %v2666
        %v2827 = vunpack.c.l.b16 %v2667
        %v2828 = vunpack.c.l.b16 %v2668
        %v2829 = vunpack.c.l.b16 %v2669
        %v2830 = vunpack.c.l.b16 %v2670
        %v2831 = vunpack.c.l.b16 %v2671
        %v2832 = vunpack.c.l.b16 %v2672
        %v2833 = vunpack.c.l.b16 %v2673
        %v2834 = vunpack.c.l.b16 %v2674
        %v2835 = vunpack.c.l.b16 %v2675
        %v2836 = vunpack.c.l.b16 %v2676
        %v2837 = vunpack.c.l.b16 %v2677
        %v2838 = vunpack.c.l.b16 %v2678
        %v2839 = vunpack.c.l.b16 %v2679
        %v2840 = vunpack.c.l.b16 %v2680
        %v2841 = vunpack.c.l.b16 %v2681
        %v2842 = vunpack.c.l.b16 %v2682
        %v2843 = vunpack.c.l.b16 %v2683
        %v2844 = vunpack.c.l.b16 %v2684
        %v2845 = vunpack.c.l.b16 %v2685
        %v2846 = vunpack.c.l.b16 %v2686
        %v2847 = vunpack.c.l.b16 %v2687
        %v2848 = vunpack.c.l.b16 %v2688
        %v2849 = vunpack.c.l.b16 %v2689
        %v2850 = vunpack.c.l.b16 %v2690
        %v2851 = vunpack.c.l.b16 %v2691
        %v2852 = vunpack.c.l.b16 %v2692
        %v2853 = vunpack.c.l.b16 %v2693
        %v2854 = vunpack.c.l.b16 %v2694
        %v2855 = vunpack.c.l.b16 %v2695
        %v2856 = vunpack.c.l.b16 %v2696
        %v2857 = vunpack.c.l.b16 %v2697
        %v2858 = vunpack.c.l.b16 %v2698
        %v2859 = vunpack.c.l.b16 %v2699
        %v2860 = vunpack.c.l.b16 %v2700
        %v2861 = vunpack.c.l.b16 %v2701
        %v2862 = vunpack.c.l.b16 %v2702
        %v2863 = vunpack.c.l.b16 %v2703
        %v2864 = vunpack.c.l.b16 %v2704
        %v2865 = vunpack.c.l.b16 %v2705
        %v2866 = vunpack.c.l.b16 %v2706
        %v2867 = vunpack.c.l.b16 %v2707
        %v2868 = vunpack.c.l.b16 %v2708
        %v2869 = vunpack.c.l.b16 %v2709
        %v2870 = vunpack.c.l.b16 %v2710
        %v2871 = vunpack.c.l.b16 %v2711
        %v2872 = vunpack.c.l.b16 %v2712
        %v2873 = vunpack.c.l.b16 %v2713
        %v2874 = vunpack.c.l.b16 %v2714
        %v2875 = vunpack.c.l.b16 %v2715
        %v2876 = vunpack.c.l.b16 %v2716
        %v2877 = vunpack.c.l.b16 %v2717
        %v2878 = vunpack.c.l.b16 %v2718
        %v2879 = vunpack.c.l.b16 %v2719
        %v2880 = vunpack.c.l.b16 %v2720
        %v2881 = vunpack.c.l.b16 %v2721
        %v2882 = vunpack.c.l.b16 %v2722
        %v2883 = vunpack.c.l.b16 %v2723
        %v2884 = vunpack.c.l.b16 %v2724
        %v2885 = vunpack.c.l.b16 %v2725
        %v2886 = vunpack.c.l.b16 %v2726
        %v2887 = vunpack.c.l.b16 %v2727
        %v2888 = vunpack.c.l.b16 %v2728
        %v2889 = vunpack.c.l.b16 %v2729
        %v2890 = vunpack.c.l.b16 %v2730
        %v2891 = vpack.c.b16 %v2812, %v2811
        %v2892 = vpack.c.b16 %v2814, %v2813
        %v2893 = vpack.c.b16 %v2816, %v2815
        %v2894 = vpack.c.b16 %v2818, %v2817
        %v2895 = vpack.c.b16 %v2820, %v2819
        %v2896 = vpack.c.b16 %v2822, %v2821
        %v2897 = vpack.c.b16 %v2824, %v2823
        %v2898 = vpack.c.b16 %v2826, %v2825
        %v2899 = vpack.c.b16 %v2828, %v2827
        %v2900 = vpack.c.b16 %v2830, %v2829
        %v2901 = vpack.c.b16 %v2832, %v2831
        %v2902 = vpack.c.b16 %v2834, %v2833
        %v2903 = vpack.c.b16 %v2836, %v2835
        %v2904 = vpack.c.b16 %v2838, %v2837
        %v2905 = vpack.c.b16 %v2840, %v2839
        %v2906 = vpack.c.b16 %v2842, %v2841
        %v2907 = vpack.c.b16 %v2844, %v2843
        %v2908 = vpack.c.b16 %v2846, %v2845
        %v2909 = vpack.c.b16 %v2848, %v2847
        %v2910 = vpack.c.b16 %v2850, %v2849
        %v2911 = vpack.c.b16 %v2852, %v2851
        %v2912 = vpack.c.b16 %v2854, %v2853
        %v2913 = vpack.c.b16 %v2856, %v2855
        %v2914 = vpack.c.b16 %v2858, %v2857
        %v2915 = vpack.c.b16 %v2860, %v2859
        %v2916 = vpack.c.b16 %v2862, %v2861
        %v2917 = vpack.c.b16 %v2864, %v2863
        %v2918 = vpack.c.b16 %v2866, %v2865
        %v2919 = vpack.c.b16 %v2868, %v2867
        %v2920 = vpack.c.b16 %v2870, %v2869
        %v2921 = vpack.c.b16 %v2872, %v2871
        %v2922 = vpack.c.b16 %v2874, %v2873
        %v2923 = vpack.c.b16 %v2876, %v2875
        %v2924 = vpack.c.b16 %v2878, %v2877
        %v2925 = vpack.c.b16 %v2880, %v2879
        %v2926 = vpack.c.b16 %v2882, %v2881
        %v2927 = vpack.c.b16 %v2884, %v2883
        %v2928 = vpack.c.b16 %v2886, %v2885
        %v2929 = vpack.c.b16 %v2888, %v2887
        %v2930 = vpack.c.b16 %v2890, %v2889
        %2971 = vmatprep.subr.bf16.mxu0 0
        %2972 = vmatpush1.bf16.msra.mxu0 %v2891
        %2973 = vmatprep.subr.bf16.mxu0 0
        %2974 = vmatpush1.bf16.msra.mxu0 %v2892
        %2975 = vmatprep.subr.bf16.mxu0 0
        %2976 = vmatpush1.bf16.msra.mxu0 %v2893
        %2977 = vmatprep.subr.bf16.mxu0 0
        %2978 = vmatpush1.bf16.msra.mxu0 %v2894
        %2979 = vmatprep.subr.bf16.mxu0 0
        %2980 = vmatpush1.bf16.msra.mxu0 %v2895
        %2981 = vmatprep.subr.bf16.mxu0 0
        %2982 = vmatpush1.bf16.msra.mxu0 %v2896
        %2983 = vmatprep.subr.bf16.mxu0 0
        %2984 = vmatpush1.bf16.msra.mxu0 %v2897
        %2985 = vmatprep.subr.bf16.mxu0 0
        %2986 = vmatpush1.bf16.msra.mxu0 %v2898
        %2987 = vmatprep.subr.bf16.mxu0 0
        %2988 = vmatpush1.bf16.msra.mxu0 %v2899
        %2989 = vmatprep.subr.bf16.mxu0 0
        %2990 = vmatpush1.bf16.msra.mxu0 %v2900
        %2991 = vmatprep.subr.bf16.mxu0 0
        %2992 = vmatpush1.bf16.msra.mxu0 %v2901
        %2993 = vmatprep.subr.bf16.mxu0 0
        %2994 = vmatpush1.bf16.msra.mxu0 %v2902
        %2995 = vmatprep.subr.bf16.mxu0 0
        %2996 = vmatpush1.bf16.msra.mxu0 %v2903
        %2997 = vmatprep.subr.bf16.mxu0 0
        %2998 = vmatpush1.bf16.msra.mxu0 %v2904
        %2999 = vmatprep.subr.bf16.mxu0 0
        %3000 = vmatpush1.bf16.msra.mxu0 %v2905
        %3001 = vmatprep.subr.bf16.mxu0 0
        %3002 = vmatpush1.bf16.msra.mxu0 %v2906
        %3003 = vmatprep.mubr.bf16.mxu0 %v475
        %3004 = vmatmul.mubr.bf16.gmra.mrb[0].mxu0 %v390
        %v3005 = vpop.f32.mrb[0].mxu0
        %v3006 = vadd.f32 0.0, %v3005
        %v3007 = vpop.f32.mrb[0].mxu0
        %v3008 = vpop.f32.mrb[0].mxu0
        %v3009 = vadd.f32 0.0, %v3008
        %v3010 = vpop.f32.mrb[0].mxu0
        %3011 = vmatprep.mubr.bf16.mxu0 %v487
        %3012 = vmatmul.mubr.bf16.gmra.mrb[0].mxu0 %v391
        %v3013 = vpop.f32.mrb[0].mxu0
        %v3014 = vadd.f32 0.0, %v3013
        %v3015 = vpop.f32.mrb[0].mxu0
        %v3016 = vpop.f32.mrb[0].mxu0
        %v3017 = vadd.f32 0.0, %v3016
        %v3018 = vpop.f32.mrb[0].mxu0
        %3019 = vmatprep.mubr.bf16.mxu0 %v499
        %3020 = vmatmul.mubr.bf16.gmra.mrb[0].mxu0 %v392
        %v3021 = vpop.f32.mrb[0].mxu0
        %v3022 = vadd.f32 0.0, %v3021
        %v3023 = vpop.f32.mrb[0].mxu0
        %v3024 = vpop.f32.mrb[0].mxu0
        %v3025 = vadd.f32 0.0, %v3024
        %v3026 = vpop.f32.mrb[0].mxu0
        %3027 = vmatprep.mubr.bf16.mxu0 %v511
        %3028 = vmatmul.mubr.bf16.gmra.mrb[0].mxu0 %v393
        %v3029 = vpop.f32.mrb[0].mxu0
        %v3030 = vadd.f32 0.0, %v3029
        %v3031 = vpop.f32.mrb[0].mxu0
        %v3032 = vpop.f32.mrb[0].mxu0
        %v3033 = vadd.f32 0.0, %v3032
        %v3034 = vpop.f32.mrb[0].mxu0
        %3035 = vmatprep.mubr.bf16.mxu0 %v523
        %3036 = vmatmul.mubr.bf16.gmra.mrb[0].mxu0 %v394
        %v3037 = vpop.f32.mrb[0].mxu0
        %v3038 = vadd.f32 0.0, %v3037
        %v3039 = vpop.f32.mrb[0].mxu0
        %v3040 = vpop.f32.mrb[0].mxu0
        %v3041 = vadd.f32 0.0, %v3040
        %v3042 = vpop.f32.mrb[0].mxu0
        %3043 = vmatprep.mubr.bf16.mxu0 %v779
        %3044 = vmatmul.mubr.bf16.gmra.mrb[0].mxu0 %v763
        %v3045 = vpop.f32.mrb[0].mxu0
        %v3046 = vadd.f32 0.0, %v3045
        %v3047 = vpop.f32.mrb[0].mxu0
        %v3048 = vpop.f32.mrb[0].mxu0
        %v3049 = vadd.f32 0.0, %v3048
        %v3050 = vpop.f32.mrb[0].mxu0
        %3051 = vmatprep.mubr.bf16.mxu0 %v1962
        %3052 = vmatmul.mubr.bf16.gmra.mrb[0].mxu0 %v1946
        %v3053 = vpop.f32.mrb[0].mxu0
        %v3054 = vadd.f32 0.0, %v3053
        %v3055 = vpop.f32.mrb[0].mxu0
        %v3056 = vpop.f32.mrb[0].mxu0
        %v3057 = vadd.f32 0.0, %v3056
        %v3058 = vpop.f32.mrb[0].mxu0
        %3059 = vmatprep.mubr.bf16.mxu0 %v2630
        %3060 = vmatmul.mubr.bf16.gmra.mrb[0].mxu0 %v2614
        %v3061 = vpop.f32.mrb[0].mxu0
        %v3062 = vadd.f32 0.0, %v3061
        %v3063 = vpop.f32.mrb[0].mxu0
        %v3064 = vpop.f32.mrb[0].mxu0
        %v3065 = vadd.f32 0.0, %v3064
        %v3066 = vpop.f32.mrb[0].mxu0
        %3067 = vdwg.mxu0
        %3068 = vmatprep.subr.bf16.mxu0 0
        %3069 = vmatpush1.bf16.msra.mxu0 %v2907
        %3070 = vmatprep.subr.bf16.mxu0 0
        %3071 = vmatpush1.bf16.msra.mxu0 %v2908
        %3072 = vmatprep.subr.bf16.mxu0 0
        %3073 = vmatpush1.bf16.msra.mxu0 %v2909
        %3074 = vmatprep.subr.bf16.mxu0 0
        %3075 = vmatpush1.bf16.msra.mxu0 %v2910
        %3076 = vmatprep.subr.bf16.mxu0 0
        %3077 = vmatpush1.bf16.msra.mxu0 %v2911
        %3078 = vmatprep.subr.bf16.mxu0 0
        %3079 = vmatpush1.bf16.msra.mxu0 %v2912
        %3080 = vmatprep.subr.bf16.mxu0 0
        %3081 = vmatpush1.bf16.msra.mxu0 %v2913
        %3082 = vmatprep.subr.bf16.mxu0 0
        %3083 = vmatpush1.bf16.msra.mxu0 %v2914
        %3084 = vmatprep.subr.bf16.mxu0 0
        %3085 = vmatpush1.bf16.msra.mxu0 %v2915
        %3086 = vmatprep.subr.bf16.mxu0 0
        %3087 = vmatpush1.bf16.msra.mxu0 %v2916
        %3088 = vmatprep.subr.bf16.mxu0 0
        %3089 = vmatpush1.bf16.msra.mxu0 %v2917
        %3090 = vmatprep.subr.bf16.mxu0 0
        %3091 = vmatpush1.bf16.msra.mxu0 %v2918
        %3092 = vmatprep.subr.bf16.mxu0 0
        %3093 = vmatpush1.bf16.msra.mxu0 %v2919
        %3094 = vmatprep.subr.bf16.mxu0 0
        %3095 = vmatpush1.bf16.msra.mxu0 %v2920
        %3096 = vmatprep.subr.bf16.mxu0 0
        %3097 = vmatpush1.bf16.msra.mxu0 %v2921
        %3098 = vmatprep.subr.bf16.mxu0 0
        %3099 = vmatpush1.bf16.msra.mxu0 %v2922
        %3100 = vmatprep.mubr.bf16.mxu0 %v601
        %3101 = vmatmul.mubr.bf16.gmra.mrb[0].mxu0 %v544
        %v3102 = vpop.f32.mrb[0].mxu0
        %v3103 = vadd.f32 %v3006, %v3102
        %v3104 = vpop.f32.mrb[0].mxu0
        %v3105 = vpop.f32.mrb[0].mxu0
        %v3106 = vadd.f32 %v3009, %v3105
        %v3107 = vpop.f32.mrb[0].mxu0
        %3108 = vmatprep.mubr.bf16.mxu0 %v610
        %3109 = vmatmul.mubr.bf16.gmra.mrb[0].mxu0 %v547
        %v3110 = vpop.f32.mrb[0].mxu0
        %v3111 = vadd.f32 %v3014, %v3110
        %v3112 = vpop.f32.mrb[0].mxu0
        %v3113 = vpop.f32.mrb[0].mxu0
        %v3114 = vadd.f32 %v3017, %v3113
        %v3115 = vpop.f32.mrb[0].mxu0
        %3116 = vmatprep.mubr.bf16.mxu0 %v619
        %3117 = vmatmul.mubr.bf16.gmra.mrb[0].mxu0 %v550
        %v3118 = vpop.f32.mrb[0].mxu0
        %v3119 = vadd.f32 %v3022, %v3118
        %v3120 = vpop.f32.mrb[0].mxu0
        %v3121 = vpop.f32.mrb[0].mxu0
        %v3122 = vadd.f32 %v3025, %v3121
        %v3123 = vpop.f32.mrb[0].mxu0
        %3124 = vmatprep.mubr.bf16.mxu0 %v628
        %3125 = vmatmul.mubr.bf16.gmra.mrb[0].mxu0 %v553
        %v3126 = vpop.f32.mrb[0].mxu0
        %v3127 = vadd.f32 %v3030, %v3126
        %v3128 = vpop.f32.mrb[0].mxu0
        %v3129 = vpop.f32.mrb[0].mxu0
        %v3130 = vadd.f32 %v3033, %v3129
        %v3131 = vpop.f32.mrb[0].mxu0
        %3132 = vmatprep.mubr.bf16.mxu0 %v637
        %3133 = vmatmul.mubr.bf16.gmra.mrb[0].mxu0 %v556
        %v3134 = vpop.f32.mrb[0].mxu0
        %v3135 = vadd.f32 %v3038, %v3134
        %v3136 = vpop.f32.mrb[0].mxu0
        %v3137 = vpop.f32.mrb[0].mxu0
        %v3138 = vadd.f32 %v3041, %v3137
        %v3139 = vpop.f32.mrb[0].mxu0
        %3140 = vmatprep.mubr.bf16.mxu0 %v793
        %3141 = vmatmul.mubr.bf16.gmra.mrb[0].mxu0 %v783
        %v3142 = vpop.f32.mrb[0].mxu0
        %v3143 = vadd.f32 %v3046, %v3142
        %v3144 = vpop.f32.mrb[0].mxu0
        %v3145 = vpop.f32.mrb[0].mxu0
        %v3146 = vadd.f32 %v3049, %v3145
        %v3147 = vpop.f32.mrb[0].mxu0
        %3148 = vmatprep.mubr.bf16.mxu0 %v1976
        %3149 = vmatmul.mubr.bf16.gmra.mrb[0].mxu0 %v1966
        %v3150 = vpop.f32.mrb[0].mxu0
        %v3151 = vadd.f32 %v3054, %v3150
        %v3152 = vpop.f32.mrb[0].mxu0
        %v3153 = vpop.f32.mrb[0].mxu0
        %v3154 = vadd.f32 %v3057, %v3153
        %v3155 = vpop.f32.mrb[0].mxu0
        %3156 = vmatprep.mubr.bf16.mxu0 %v2644
        %3157 = vmatmul.mubr.bf16.gmra.mrb[0].mxu0 %v2634
        %v3158 = vpop.f32.mrb[0].mxu0
        %v3159 = vadd.f32 %v3062, %v3158
        %v3160 = vpop.f32.mrb[0].mxu0
        %v3161 = vpop.f32.mrb[0].mxu0
        %v3162 = vadd.f32 %v3065, %v3161
        %v3163 = vpop.f32.mrb[0].mxu0
        %3164 = vdwg.mxu0
        %3165 = vmatprep.subr.bf16.mxu0 0
        %3166 = vmatpush1.bf16.msra.mxu0 %v2923
        %3167 = vmatprep.subr.bf16.mxu0 0
        %3168 = vmatpush1.bf16.msra.mxu0 %v2924
        %3169 = vmatprep.subr.bf16.mxu0 0
        %3170 = vmatpush1.bf16.msra.mxu0 %v2925
        %3171 = vmatprep.subr.bf16.mxu0 0
        %3172 = vmatpush1.bf16.msra.mxu0 %v2926
        %3173 = vmatprep.subr.bf16.mxu0 0
        %3174 = vmatpush1.bf16.msra.mxu0 %v2927
        %3175 = vmatprep.subr.bf16.mxu0 0
        %3176 = vmatpush1.bf16.msra.mxu0 %v2928
        %3177 = vmatprep.subr.bf16.mxu0 0
        %3178 = vmatpush1.bf16.msra.mxu0 %v2929
        %3179 = vmatprep.subr.bf16.mxu0 0
        %3180 = vmatpush1.bf16.msra.mxu0 %v2930
        %3181 = vmatprep.subr.bf16.mxu0 0
        %3182 = vmatpush1.bf16.msra.mxu0 0
        %3183 = vmatprep.subr.bf16.mxu0 0
        %3184 = vmatpush1.bf16.msra.mxu0 0
        %3185 = vmatprep.subr.bf16.mxu0 0
        %3186 = vmatpush1.bf16.msra.mxu0 0
        %3187 = vmatprep.subr.bf16.mxu0 0
        %3188 = vmatpush1.bf16.msra.mxu0 0
        %3189 = vmatprep.subr.bf16.mxu0 0
        %3190 = vmatpush1.bf16.msra.mxu0 0
        %3191 = vmatprep.subr.bf16.mxu0 0
        %3192 = vmatpush1.bf16.msra.mxu0 0
        %3193 = vmatprep.subr.bf16.mxu0 0
        %3194 = vmatpush1.bf16.msra.mxu0 0
        %3195 = vmatprep.subr.bf16.mxu0 0
        %3196 = vmatpush1.bf16.msra.mxu0 0
        %3197 = vmatprep.mubr.bf16.mxu0 0
        %3198 = vmatmul.mubr.bf16.gmra.mrb[0].mxu0 %v658
        %v3199 = vpop.f32.mrb[0].mxu0
        %v3200 = vadd.f32 %v3103, %v3199
        %v3201 = vpop.f32.mrb[0].mxu0
        %v3202 = vpop.f32.mrb[0].mxu0
        %v3203 = vadd.f32 %v3106, %v3202
        %v3204 = vpop.f32.mrb[0].mxu0
        %3205 = vmatprep.mubr.bf16.mxu0 0
        %3206 = vmatmul.mubr.bf16.gmra.mrb[0].mxu0 %v661
        %v3207 = vpop.f32.mrb[0].mxu0
        %v3208 = vadd.f32 %v3111, %v3207
        %v3209 = vpop.f32.mrb[0].mxu0
        %v3210 = vpop.f32.mrb[0].mxu0
        %v3211 = vadd.f32 %v3114, %v3210
        %v3212 = vpop.f32.mrb[0].mxu0
        %3213 = vmatprep.mubr.bf16.mxu0 0
        %3214 = vmatmul.mubr.bf16.gmra.mrb[0].mxu0 %v664
        %v3215 = vpop.f32.mrb[0].mxu0
        %v3216 = vadd.f32 %v3119, %v3215
        %v3217 = vpop.f32.mrb[0].mxu0
        %v3218 = vpop.f32.mrb[0].mxu0
        %v3219 = vadd.f32 %v3122, %v3218
        %v3220 = vpop.f32.mrb[0].mxu0
        %3221 = vmatprep.mubr.bf16.mxu0 0
        %3222 = vmatmul.mubr.bf16.gmra.mrb[0].mxu0 %v667
        %v3223 = vpop.f32.mrb[0].mxu0
        %v3224 = vadd.f32 %v3127, %v3223
        %v3225 = vpop.f32.mrb[0].mxu0
        %v3226 = vpop.f32.mrb[0].mxu0
        %v3227 = vadd.f32 %v3130, %v3226
        %v3228 = vpop.f32.mrb[0].mxu0
        %3229 = vmatprep.mubr.bf16.mxu0 0
        %3230 = vmatmul.mubr.bf16.gmra.mrb[0].mxu0 %v670
        %v3231 = vpop.f32.mrb[0].mxu0
        %v3232 = vadd.f32 %v3135, %v3231
        %v3233 = vpop.f32.mrb[0].mxu0
        %v3234 = vpop.f32.mrb[0].mxu0
        %v3235 = vadd.f32 %v3138, %v3234
        %v3236 = vpop.f32.mrb[0].mxu0
        %3237 = vmatprep.mubr.bf16.mxu0 0
        %3238 = vmatmul.mubr.bf16.gmra.mrb[0].mxu0 %v797
        %v3239 = vpop.f32.mrb[0].mxu0
        %v3240 = vadd.f32 %v3143, %v3239
        %v3241 = vpop.f32.mrb[0].mxu0
        %v3242 = vpop.f32.mrb[0].mxu0
        %v3243 = vadd.f32 %v3146, %v3242
        %v3244 = vpop.f32.mrb[0].mxu0
        %3245 = vmatprep.mubr.bf16.mxu0 0
        %3246 = vmatmul.mubr.bf16.gmra.mrb[0].mxu0 %v1980
        %v3247 = vpop.f32.mrb[0].mxu0
        %v3248 = vadd.f32 %v3151, %v3247
        %v3249 = vpop.f32.mrb[0].mxu0
        %v3250 = vpop.f32.mrb[0].mxu0
        %v3251 = vadd.f32 %v3154, %v3250
        %v3252 = vpop.f32.mrb[0].mxu0
        %3253 = vmatprep.mubr.bf16.mxu0 0
        %3254 = vmatmul.mubr.bf16.gmra.mrb[0].mxu0 %v2648
        %v3255 = vpop.f32.mrb[0].mxu0
        %v3256 = vadd.f32 %v3159, %v3255
        %v3257 = vpop.f32.mrb[0].mxu0
        %v3258 = vpop.f32.mrb[0].mxu0
        %v3259 = vadd.f32 %v3162, %v3258
        %v3260 = vpop.f32.mrb[0].mxu0
        %3261 = vdwg.mxu0
        %v3262 = vadd.f32 %v2594, %v3200
        %v3263 = vadd.f32 %v2595, %v3203
        %v3264 = vadd.f32 %v2596, %v3208
        %v3265 = vadd.f32 %v2597, %v3211
        %v3266 = vadd.f32 %v2598, %v3216
        %v3267 = vadd.f32 %v2599, %v3219
        %v3268 = vadd.f32 %v2600, %v3224
        %v3269 = vadd.f32 %v2601, %v3227
        %v3270 = vadd.f32 %v2602, %v3232
        %v3271 = vadd.f32 %v2603, %v3235
        %v3272 = vadd.f32 %v2604, %v3240
        %v3273 = vadd.f32 %v2605, %v3243
        %v3274 = vadd.f32 %v2606, %v3248
        %v3275 = vadd.f32 %v2607, %v3251
        %v3276 = vadd.f32 %v2608, %v3256
        %v3277 = vadd.f32 %v2609, %v3259
        %v3280 = vunpack.c.l.b16 %v352
        %v3281 = vunpack.c.l.b16 %v353
        %v3282 = vpack.c.b16 %v3281, %v3280
        %v3285 = vunpack.c.l.b16 %v354
        %v3286 = vpack.c.b16 %v3285, %v3285
        %v3288 = vshrl.u32 %v3282, 16
        %v3290 = vshll.u32 %v3282, 16
        %v3292 = vrot.slane %v3290, 1
        %v3293 = vor.u32 %v3288, %v3292
        %v3295 = vshll.u32 %v3286, 16
        %v3297 = vrot.slane %v3295, 1
        %v3298 = vsel %vm427, %v3293, %v3297
        %v3300 = vrot.slane %v3282, 1
        %v3301 = vrot.slane %v3286, 1
        %v3302 = vsel %vm532, %v3300, %v3301
        %v3304 = vrot.slane %v3288, 1
        %v3305 = vrot.slane %v3290, 2
        %v3306 = vor.u32 %v3304, %v3305
        %v3307 = vshrl.u32 %v3286, 16
        %v3309 = vrot.slane %v3307, 1
        %v3310 = vrot.slane %v3295, 2
        %v3311 = vor.u32 %v3309, %v3310
        %v3312 = vsel %vm565, %v3306, %v3311
        %v3314 = vrot.slane %v3282, 2
        %v3315 = vrot.slane %v3286, 2
        %v3316 = vsel %vm646, %v3314, %v3315
        %s3318 = scalar_lea.vmem [#allocation2], 1280
        %v3319 = vld [vmem:[%s3318] sm:$0xf]
        %v3320 = vld [vmem:[%s3318 + $0x4] sm:$0xf]
        %v3321 = vld [vmem:[%s3318 + $0x8] sm:$0xf]
        %v3322 = vld [vmem:[%s3318 + $0xc] sm:$0xf]
        %v3323 = vld [vmem:[%s3318 + $0x10] sm:$0xf]
        %v3324 = vld [vmem:[%s3318 + $0x14] sm:$0xf]
        %v3325 = vld [vmem:[%s3318 + $0x18] sm:$0xf]
        %v3326 = vld [vmem:[%s3318 + $0x1c] sm:$0xf]
        %v3327 = vld [vmem:[%s3318 + $0x20] sm:$0xf]
        %v3328 = vld [vmem:[%s3318 + $0x24] sm:$0xf]
        %v3329 = vld [vmem:[%s3318 + $0x28] sm:$0xf]
        %v3330 = vld [vmem:[%s3318 + $0x2c] sm:$0xf]
        %v3331 = vld [vmem:[%s3318 + $0x30] sm:$0xf]
        %v3332 = vld [vmem:[%s3318 + $0x34] sm:$0xf]
        %v3333 = vld [vmem:[%s3318 + $0x38] sm:$0xf]
        %v3334 = vld [vmem:[%s3318 + $0x3c] sm:$0xf]
        %v3335 = vld [vmem:[%s3318 + $0x40] sm:$0xf]
        %v3336 = vld [vmem:[%s3318 + $0x44] sm:$0xf]
        %v3337 = vld [vmem:[%s3318 + $0x48] sm:$0xf]
        %v3338 = vld [vmem:[%s3318 + $0x4c] sm:$0xf]
        %v3339 = vld [vmem:[%s3318 + $0x50] sm:$0xf]
        %v3340 = vld [vmem:[%s3318 + $0x54] sm:$0xf]
        %v3341 = vld [vmem:[%s3318 + $0x58] sm:$0xf]
        %v3342 = vld [vmem:[%s3318 + $0x5c] sm:$0xf]
        %v3343 = vld [vmem:[%s3318 + $0x60] sm:$0xf]
        %v3344 = vld [vmem:[%s3318 + $0x64] sm:$0xf]
        %v3345 = vld [vmem:[%s3318 + $0x68] sm:$0xf]
        %v3346 = vld [vmem:[%s3318 + $0x6c] sm:$0xf]
        %v3347 = vld [vmem:[%s3318 + $0x70] sm:$0xf]
        %v3348 = vld [vmem:[%s3318 + $0x74] sm:$0xf]
        %v3349 = vld [vmem:[%s3318 + $0x78] sm:$0xf]
        %v3350 = vld [vmem:[%s3318 + $0x7c] sm:$0xf]
        %v3351 = vld [vmem:[%s3318 + $0x80] sm:$0xf]
        %v3352 = vld [vmem:[%s3318 + $0x84] sm:$0xf]
        %v3353 = vld [vmem:[%s3318 + $0x88] sm:$0xf]
        %v3354 = vld [vmem:[%s3318 + $0x8c] sm:$0xf]
        %v3355 = vld [vmem:[%s3318 + $0x90] sm:$0xf]
        %v3356 = vld [vmem:[%s3318 + $0x94] sm:$0xf]
        %v3357 = vld [vmem:[%s3318 + $0x98] sm:$0xf]
        %v3358 = vld [vmem:[%s3318 + $0x9c] sm:$0xf]
        %v3359 = vld [vmem:[%s3318 + $0xa0] sm:$0xf]
        %v3360 = vld [vmem:[%s3318 + $0xa4] sm:$0xf]
        %v3361 = vld [vmem:[%s3318 + $0xa8] sm:$0xf]
        %v3362 = vld [vmem:[%s3318 + $0xac] sm:$0xf]
        %v3363 = vld [vmem:[%s3318 + $0xb0] sm:$0xf]
        %v3364 = vld [vmem:[%s3318 + $0xb4] sm:$0xf]
        %v3365 = vld [vmem:[%s3318 + $0xb8] sm:$0xf]
        %v3366 = vld [vmem:[%s3318 + $0xbc] sm:$0xf]
        %v3367 = vld [vmem:[%s3318 + $0xc0] sm:$0xf]
        %v3368 = vld [vmem:[%s3318 + $0xc4] sm:$0xf]
        %v3369 = vld [vmem:[%s3318 + $0xc8] sm:$0xf]
        %v3370 = vld [vmem:[%s3318 + $0xcc] sm:$0xf]
        %v3371 = vld [vmem:[%s3318 + $0xd0] sm:$0xf]
        %v3372 = vld [vmem:[%s3318 + $0xd4] sm:$0xf]
        %v3373 = vld [vmem:[%s3318 + $0xd8] sm:$0xf]
        %v3374 = vld [vmem:[%s3318 + $0xdc] sm:$0xf]
        %v3375 = vld [vmem:[%s3318 + $0xe0] sm:$0xf]
        %v3376 = vld [vmem:[%s3318 + $0xe4] sm:$0xf]
        %v3377 = vld [vmem:[%s3318 + $0xe8] sm:$0xf]
        %v3378 = vld [vmem:[%s3318 + $0xec] sm:$0xf]
        %v3379 = vld [vmem:[%s3318 + $0xf0] sm:$0xf]
        %v3380 = vld [vmem:[%s3318 + $0xf4] sm:$0xf]
        %v3381 = vld [vmem:[%s3318 + $0xf8] sm:$0xf]
        %v3382 = vld [vmem:[%s3318 + $0xfc] sm:$0xf]
        %v3383 = vld [vmem:[%s3318 + $0x100] sm:$0xf]
        %v3384 = vld [vmem:[%s3318 + $0x104] sm:$0xf]
        %v3385 = vld [vmem:[%s3318 + $0x108] sm:$0xf]
        %v3386 = vld [vmem:[%s3318 + $0x10c] sm:$0xf]
        %v3387 = vld [vmem:[%s3318 + $0x110] sm:$0xf]
        %v3388 = vld [vmem:[%s3318 + $0x114] sm:$0xf]
        %v3389 = vld [vmem:[%s3318 + $0x118] sm:$0xf]
        %v3390 = vld [vmem:[%s3318 + $0x11c] sm:$0xf]
        %v3391 = vld [vmem:[%s3318 + $0x120] sm:$0xf]
        %v3392 = vld [vmem:[%s3318 + $0x124] sm:$0xf]
        %v3393 = vld [vmem:[%s3318 + $0x128] sm:$0xf]
        %v3394 = vld [vmem:[%s3318 + $0x12c] sm:$0xf]
        %v3395 = vld [vmem:[%s3318 + $0x130] sm:$0xf]
        %v3396 = vld [vmem:[%s3318 + $0x134] sm:$0xf]
        %v3397 = vld [vmem:[%s3318 + $0x138] sm:$0xf]
        %v3398 = vld [vmem:[%s3318 + $0x13c] sm:$0xf]
        %v3479 = vunpack.c.l.b16 %v3319
        %v3480 = vunpack.c.l.b16 %v3320
        %v3481 = vunpack.c.l.b16 %v3321
        %v3482 = vunpack.c.l.b16 %v3322
        %v3483 = vunpack.c.l.b16 %v3323
        %v3484 = vunpack.c.l.b16 %v3324
        %v3485 = vunpack.c.l.b16 %v3325
        %v3486 = vunpack.c.l.b16 %v3326
        %v3487 = vunpack.c.l.b16 %v3327
        %v3488 = vunpack.c.l.b16 %v3328
        %v3489 = vunpack.c.l.b16 %v3329
        %v3490 = vunpack.c.l.b16 %v3330
        %v3491 = vunpack.c.l.b16 %v3331
        %v3492 = vunpack.c.l.b16 %v3332
        %v3493 = vunpack.c.l.b16 %v3333
        %v3494 = vunpack.c.l.b16 %v3334
        %v3495 = vunpack.c.l.b16 %v3335
        %v3496 = vunpack.c.l.b16 %v3336
        %v3497 = vunpack.c.l.b16 %v3337
        %v3498 = vunpack.c.l.b16 %v3338
        %v3499 = vunpack.c.l.b16 %v3339
        %v3500 = vunpack.c.l.b16 %v3340
        %v3501 = vunpack.c.l.b16 %v3341
        %v3502 = vunpack.c.l.b16 %v3342
        %v3503 = vunpack.c.l.b16 %v3343
        %v3504 = vunpack.c.l.b16 %v3344
        %v3505 = vunpack.c.l.b16 %v3345
        %v3506 = vunpack.c.l.b16 %v3346
        %v3507 = vunpack.c.l.b16 %v3347
        %v3508 = vunpack.c.l.b16 %v3348
        %v3509 = vunpack.c.l.b16 %v3349
        %v3510 = vunpack.c.l.b16 %v3350
        %v3511 = vunpack.c.l.b16 %v3351
        %v3512 = vunpack.c.l.b16 %v3352
        %v3513 = vunpack.c.l.b16 %v3353
        %v3514 = vunpack.c.l.b16 %v3354
        %v3515 = vunpack.c.l.b16 %v3355
        %v3516 = vunpack.c.l.b16 %v3356
        %v3517 = vunpack.c.l.b16 %v3357
        %v3518 = vunpack.c.l.b16 %v3358
        %v3519 = vunpack.c.l.b16 %v3359
        %v3520 = vunpack.c.l.b16 %v3360
        %v3521 = vunpack.c.l.b16 %v3361
        %v3522 = vunpack.c.l.b16 %v3362
        %v3523 = vunpack.c.l.b16 %v3363
        %v3524 = vunpack.c.l.b16 %v3364
        %v3525 = vunpack.c.l.b16 %v3365
        %v3526 = vunpack.c.l.b16 %v3366
        %v3527 = vunpack.c.l.b16 %v3367
        %v3528 = vunpack.c.l.b16 %v3368
        %v3529 = vunpack.c.l.b16 %v3369
        %v3530 = vunpack.c.l.b16 %v3370
        %v3531 = vunpack.c.l.b16 %v3371
        %v3532 = vunpack.c.l.b16 %v3372
        %v3533 = vunpack.c.l.b16 %v3373
        %v3534 = vunpack.c.l.b16 %v3374
        %v3535 = vunpack.c.l.b16 %v3375
        %v3536 = vunpack.c.l.b16 %v3376
        %v3537 = vunpack.c.l.b16 %v3377
        %v3538 = vunpack.c.l.b16 %v3378
        %v3539 = vunpack.c.l.b16 %v3379
        %v3540 = vunpack.c.l.b16 %v3380
        %v3541 = vunpack.c.l.b16 %v3381
        %v3542 = vunpack.c.l.b16 %v3382
        %v3543 = vunpack.c.l.b16 %v3383
        %v3544 = vunpack.c.l.b16 %v3384
        %v3545 = vunpack.c.l.b16 %v3385
        %v3546 = vunpack.c.l.b16 %v3386
        %v3547 = vunpack.c.l.b16 %v3387
        %v3548 = vunpack.c.l.b16 %v3388
        %v3549 = vunpack.c.l.b16 %v3389
        %v3550 = vunpack.c.l.b16 %v3390
        %v3551 = vunpack.c.l.b16 %v3391
        %v3552 = vunpack.c.l.b16 %v3392
        %v3553 = vunpack.c.l.b16 %v3393
        %v3554 = vunpack.c.l.b16 %v3394
        %v3555 = vunpack.c.l.b16 %v3395
        %v3556 = vunpack.c.l.b16 %v3396
        %v3557 = vunpack.c.l.b16 %v3397
        %v3558 = vunpack.c.l.b16 %v3398
        %v3559 = vpack.c.b16 %v3480, %v3479
        %v3560 = vpack.c.b16 %v3482, %v3481
        %v3561 = vpack.c.b16 %v3484, %v3483
        %v3562 = vpack.c.b16 %v3486, %v3485
        %v3563 = vpack.c.b16 %v3488, %v3487
        %v3564 = vpack.c.b16 %v3490, %v3489
        %v3565 = vpack.c.b16 %v3492, %v3491
        %v3566 = vpack.c.b16 %v3494, %v3493
        %v3567 = vpack.c.b16 %v3496, %v3495
        %v3568 = vpack.c.b16 %v3498, %v3497
        %v3569 = vpack.c.b16 %v3500, %v3499
        %v3570 = vpack.c.b16 %v3502, %v3501
        %v3571 = vpack.c.b16 %v3504, %v3503
        %v3572 = vpack.c.b16 %v3506, %v3505
        %v3573 = vpack.c.b16 %v3508, %v3507
        %v3574 = vpack.c.b16 %v3510, %v3509
        %v3575 = vpack.c.b16 %v3512, %v3511
        %v3576 = vpack.c.b16 %v3514, %v3513
        %v3577 = vpack.c.b16 %v3516, %v3515
        %v3578 = vpack.c.b16 %v3518, %v3517
        %v3579 = vpack.c.b16 %v3520, %v3519
        %v3580 = vpack.c.b16 %v3522, %v3521
        %v3581 = vpack.c.b16 %v3524, %v3523
        %v3582 = vpack.c.b16 %v3526, %v3525
        %v3583 = vpack.c.b16 %v3528, %v3527
        %v3584 = vpack.c.b16 %v3530, %v3529
        %v3585 = vpack.c.b16 %v3532, %v3531
        %v3586 = vpack.c.b16 %v3534, %v3533
        %v3587 = vpack.c.b16 %v3536, %v3535
        %v3588 = vpack.c.b16 %v3538, %v3537
        %v3589 = vpack.c.b16 %v3540, %v3539
        %v3590 = vpack.c.b16 %v3542, %v3541
        %v3591 = vpack.c.b16 %v3544, %v3543
        %v3592 = vpack.c.b16 %v3546, %v3545
        %v3593 = vpack.c.b16 %v3548, %v3547
        %v3594 = vpack.c.b16 %v3550, %v3549
        %v3595 = vpack.c.b16 %v3552, %v3551
        %v3596 = vpack.c.b16 %v3554, %v3553
        %v3597 = vpack.c.b16 %v3556, %v3555
        %v3598 = vpack.c.b16 %v3558, %v3557
        %3639 = vmatprep.subr.bf16.mxu0 0
        %3640 = vmatpush1.bf16.msra.mxu0 %v3559
        %3641 = vmatprep.subr.bf16.mxu0 0
        %3642 = vmatpush1.bf16.msra.mxu0 %v3560
        %3643 = vmatprep.subr.bf16.mxu0 0
        %3644 = vmatpush1.bf16.msra.mxu0 %v3561
        %3645 = vmatprep.subr.bf16.mxu0 0
        %3646 = vmatpush1.bf16.msra.mxu0 %v3562
        %3647 = vmatprep.subr.bf16.mxu0 0
        %3648 = vmatpush1.bf16.msra.mxu0 %v3563
        %3649 = vmatprep.subr.bf16.mxu0 0
        %3650 = vmatpush1.bf16.msra.mxu0 %v3564
        %3651 = vmatprep.subr.bf16.mxu0 0
        %3652 = vmatpush1.bf16.msra.mxu0 %v3565
        %3653 = vmatprep.subr.bf16.mxu0 0
        %3654 = vmatpush1.bf16.msra.mxu0 %v3566
        %3655 = vmatprep.subr.bf16.mxu0 0
        %3656 = vmatpush1.bf16.msra.mxu0 %v3567
        %3657 = vmatprep.subr.bf16.mxu0 0
        %3658 = vmatpush1.bf16.msra.mxu0 %v3568
        %3659 = vmatprep.subr.bf16.mxu0 0
        %3660 = vmatpush1.bf16.msra.mxu0 %v3569
        %3661 = vmatprep.subr.bf16.mxu0 0
        %3662 = vmatpush1.bf16.msra.mxu0 %v3570
        %3663 = vmatprep.subr.bf16.mxu0 0
        %3664 = vmatpush1.bf16.msra.mxu0 %v3571
        %3665 = vmatprep.subr.bf16.mxu0 0
        %3666 = vmatpush1.bf16.msra.mxu0 %v3572
        %3667 = vmatprep.subr.bf16.mxu0 0
        %3668 = vmatpush1.bf16.msra.mxu0 %v3573
        %3669 = vmatprep.subr.bf16.mxu0 0
        %3670 = vmatpush1.bf16.msra.mxu0 %v3574
        %3671 = vmatprep.mubr.bf16.mxu0 %v487
        %3672 = vmatmul.mubr.bf16.gmra.mrb[0].mxu0 %v391
        %v3673 = vpop.f32.mrb[0].mxu0
        %v3674 = vadd.f32 0.0, %v3673
        %v3675 = vpop.f32.mrb[0].mxu0
        %v3676 = vpop.f32.mrb[0].mxu0
        %v3677 = vadd.f32 0.0, %v3676
        %v3678 = vpop.f32.mrb[0].mxu0
        %3679 = vmatprep.mubr.bf16.mxu0 %v499
        %3680 = vmatmul.mubr.bf16.gmra.mrb[0].mxu0 %v392
        %v3681 = vpop.f32.mrb[0].mxu0
        %v3682 = vadd.f32 0.0, %v3681
        %v3683 = vpop.f32.mrb[0].mxu0
        %v3684 = vpop.f32.mrb[0].mxu0
        %v3685 = vadd.f32 0.0, %v3684
        %v3686 = vpop.f32.mrb[0].mxu0
        %3687 = vmatprep.mubr.bf16.mxu0 %v511
        %3688 = vmatmul.mubr.bf16.gmra.mrb[0].mxu0 %v393
        %v3689 = vpop.f32.mrb[0].mxu0
        %v3690 = vadd.f32 0.0, %v3689
        %v3691 = vpop.f32.mrb[0].mxu0
        %v3692 = vpop.f32.mrb[0].mxu0
        %v3693 = vadd.f32 0.0, %v3692
        %v3694 = vpop.f32.mrb[0].mxu0
        %3695 = vmatprep.mubr.bf16.mxu0 %v523
        %3696 = vmatmul.mubr.bf16.gmra.mrb[0].mxu0 %v394
        %v3697 = vpop.f32.mrb[0].mxu0
        %v3698 = vadd.f32 0.0, %v3697
        %v3699 = vpop.f32.mrb[0].mxu0
        %v3700 = vpop.f32.mrb[0].mxu0
        %v3701 = vadd.f32 0.0, %v3700
        %v3702 = vpop.f32.mrb[0].mxu0
        %3703 = vmatprep.mubr.bf16.mxu0 %v779
        %3704 = vmatmul.mubr.bf16.gmra.mrb[0].mxu0 %v763
        %v3705 = vpop.f32.mrb[0].mxu0
        %v3706 = vadd.f32 0.0, %v3705
        %v3707 = vpop.f32.mrb[0].mxu0
        %v3708 = vpop.f32.mrb[0].mxu0
        %v3709 = vadd.f32 0.0, %v3708
        %v3710 = vpop.f32.mrb[0].mxu0
        %3711 = vmatprep.mubr.bf16.mxu0 %v1962
        %3712 = vmatmul.mubr.bf16.gmra.mrb[0].mxu0 %v1946
        %v3713 = vpop.f32.mrb[0].mxu0
        %v3714 = vadd.f32 0.0, %v3713
        %v3715 = vpop.f32.mrb[0].mxu0
        %v3716 = vpop.f32.mrb[0].mxu0
        %v3717 = vadd.f32 0.0, %v3716
        %v3718 = vpop.f32.mrb[0].mxu0
        %3719 = vmatprep.mubr.bf16.mxu0 %v2630
        %3720 = vmatmul.mubr.bf16.gmra.mrb[0].mxu0 %v2614
        %v3721 = vpop.f32.mrb[0].mxu0
        %v3722 = vadd.f32 0.0, %v3721
        %v3723 = vpop.f32.mrb[0].mxu0
        %v3724 = vpop.f32.mrb[0].mxu0
        %v3725 = vadd.f32 0.0, %v3724
        %v3726 = vpop.f32.mrb[0].mxu0
        %3727 = vmatprep.mubr.bf16.mxu0 %v3298
        %3728 = vmatmul.mubr.bf16.gmra.mrb[0].mxu0 %v3282
        %v3729 = vpop.f32.mrb[0].mxu0
        %v3730 = vadd.f32 0.0, %v3729
        %v3731 = vpop.f32.mrb[0].mxu0
        %v3732 = vpop.f32.mrb[0].mxu0
        %v3733 = vadd.f32 0.0, %v3732
        %v3734 = vpop.f32.mrb[0].mxu0
        %3735 = vdwg.mxu0
        %3736 = vmatprep.subr.bf16.mxu0 0
        %3737 = vmatpush1.bf16.msra.mxu0 %v3575
        %3738 = vmatprep.subr.bf16.mxu0 0
        %3739 = vmatpush1.bf16.msra.mxu0 %v3576
        %3740 = vmatprep.subr.bf16.mxu0 0
        %3741 = vmatpush1.bf16.msra.mxu0 %v3577
        %3742 = vmatprep.subr.bf16.mxu0 0
        %3743 = vmatpush1.bf16.msra.mxu0 %v3578
        %3744 = vmatprep.subr.bf16.mxu0 0
        %3745 = vmatpush1.bf16.msra.mxu0 %v3579
        %3746 = vmatprep.subr.bf16.mxu0 0
        %3747 = vmatpush1.bf16.msra.mxu0 %v3580
        %3748 = vmatprep.subr.bf16.mxu0 0
        %3749 = vmatpush1.bf16.msra.mxu0 %v3581
        %3750 = vmatprep.subr.bf16.mxu0 0
        %3751 = vmatpush1.bf16.msra.mxu0 %v3582
        %3752 = vmatprep.subr.bf16.mxu0 0
        %3753 = vmatpush1.bf16.msra.mxu0 %v3583
        %3754 = vmatprep.subr.bf16.mxu0 0
        %3755 = vmatpush1.bf16.msra.mxu0 %v3584
        %3756 = vmatprep.subr.bf16.mxu0 0
        %3757 = vmatpush1.bf16.msra.mxu0 %v3585
        %3758 = vmatprep.subr.bf16.mxu0 0
        %3759 = vmatpush1.bf16.msra.mxu0 %v3586
        %3760 = vmatprep.subr.bf16.mxu0 0
        %3761 = vmatpush1.bf16.msra.mxu0 %v3587
        %3762 = vmatprep.subr.bf16.mxu0 0
        %3763 = vmatpush1.bf16.msra.mxu0 %v3588
        %3764 = vmatprep.subr.bf16.mxu0 0
        %3765 = vmatpush1.bf16.msra.mxu0 %v3589
        %3766 = vmatprep.subr.bf16.mxu0 0
        %3767 = vmatpush1.bf16.msra.mxu0 %v3590
        %3768 = vmatprep.mubr.bf16.mxu0 %v610
        %3769 = vmatmul.mubr.bf16.gmra.mrb[0].mxu0 %v547
        %v3770 = vpop.f32.mrb[0].mxu0
        %v3771 = vadd.f32 %v3674, %v3770
        %v3772 = vpop.f32.mrb[0].mxu0
        %v3773 = vpop.f32.mrb[0].mxu0
        %v3774 = vadd.f32 %v3677, %v3773
        %v3775 = vpop.f32.mrb[0].mxu0
        %3776 = vmatprep.mubr.bf16.mxu0 %v619
        %3777 = vmatmul.mubr.bf16.gmra.mrb[0].mxu0 %v550
        %v3778 = vpop.f32.mrb[0].mxu0
        %v3779 = vadd.f32 %v3682, %v3778
        %v3780 = vpop.f32.mrb[0].mxu0
        %v3781 = vpop.f32.mrb[0].mxu0
        %v3782 = vadd.f32 %v3685, %v3781
        %v3783 = vpop.f32.mrb[0].mxu0
        %3784 = vmatprep.mubr.bf16.mxu0 %v628
        %3785 = vmatmul.mubr.bf16.gmra.mrb[0].mxu0 %v553
        %v3786 = vpop.f32.mrb[0].mxu0
        %v3787 = vadd.f32 %v3690, %v3786
        %v3788 = vpop.f32.mrb[0].mxu0
        %v3789 = vpop.f32.mrb[0].mxu0
        %v3790 = vadd.f32 %v3693, %v3789
        %v3791 = vpop.f32.mrb[0].mxu0
        %3792 = vmatprep.mubr.bf16.mxu0 %v637
        %3793 = vmatmul.mubr.bf16.gmra.mrb[0].mxu0 %v556
        %v3794 = vpop.f32.mrb[0].mxu0
        %v3795 = vadd.f32 %v3698, %v3794
        %v3796 = vpop.f32.mrb[0].mxu0
        %v3797 = vpop.f32.mrb[0].mxu0
        %v3798 = vadd.f32 %v3701, %v3797
        %v3799 = vpop.f32.mrb[0].mxu0
        %3800 = vmatprep.mubr.bf16.mxu0 %v793
        %3801 = vmatmul.mubr.bf16.gmra.mrb[0].mxu0 %v783
        %v3802 = vpop.f32.mrb[0].mxu0
        %v3803 = vadd.f32 %v3706, %v3802
        %v3804 = vpop.f32.mrb[0].mxu0
        %v3805 = vpop.f32.mrb[0].mxu0
        %v3806 = vadd.f32 %v3709, %v3805
        %v3807 = vpop.f32.mrb[0].mxu0
        %3808 = vmatprep.mubr.bf16.mxu0 %v1976
        %3809 = vmatmul.mubr.bf16.gmra.mrb[0].mxu0 %v1966
        %v3810 = vpop.f32.mrb[0].mxu0
        %v3811 = vadd.f32 %v3714, %v3810
        %v3812 = vpop.f32.mrb[0].mxu0
        %v3813 = vpop.f32.mrb[0].mxu0
        %v3814 = vadd.f32 %v3717, %v3813
        %v3815 = vpop.f32.mrb[0].mxu0
        %3816 = vmatprep.mubr.bf16.mxu0 %v2644
        %3817 = vmatmul.mubr.bf16.gmra.mrb[0].mxu0 %v2634
        %v3818 = vpop.f32.mrb[0].mxu0
        %v3819 = vadd.f32 %v3722, %v3818
        %v3820 = vpop.f32.mrb[0].mxu0
        %v3821 = vpop.f32.mrb[0].mxu0
        %v3822 = vadd.f32 %v3725, %v3821
        %v3823 = vpop.f32.mrb[0].mxu0
        %3824 = vmatprep.mubr.bf16.mxu0 %v3312
        %3825 = vmatmul.mubr.bf16.gmra.mrb[0].mxu0 %v3302
        %v3826 = vpop.f32.mrb[0].mxu0
        %v3827 = vadd.f32 %v3730, %v3826
        %v3828 = vpop.f32.mrb[0].mxu0
        %v3829 = vpop.f32.mrb[0].mxu0
        %v3830 = vadd.f32 %v3733, %v3829
        %v3831 = vpop.f32.mrb[0].mxu0
        %3832 = vdwg.mxu0
        %3833 = vmatprep.subr.bf16.mxu0 0
        %3834 = vmatpush1.bf16.msra.mxu0 %v3591
        %3835 = vmatprep.subr.bf16.mxu0 0
        %3836 = vmatpush1.bf16.msra.mxu0 %v3592
        %3837 = vmatprep.subr.bf16.mxu0 0
        %3838 = vmatpush1.bf16.msra.mxu0 %v3593
        %3839 = vmatprep.subr.bf16.mxu0 0
        %3840 = vmatpush1.bf16.msra.mxu0 %v3594
        %3841 = vmatprep.subr.bf16.mxu0 0
        %3842 = vmatpush1.bf16.msra.mxu0 %v3595
        %3843 = vmatprep.subr.bf16.mxu0 0
        %3844 = vmatpush1.bf16.msra.mxu0 %v3596
        %3845 = vmatprep.subr.bf16.mxu0 0
        %3846 = vmatpush1.bf16.msra.mxu0 %v3597
        %3847 = vmatprep.subr.bf16.mxu0 0
        %3848 = vmatpush1.bf16.msra.mxu0 %v3598
        %3849 = vmatprep.subr.bf16.mxu0 0
        %3850 = vmatpush1.bf16.msra.mxu0 0
        %3851 = vmatprep.subr.bf16.mxu0 0
        %3852 = vmatpush1.bf16.msra.mxu0 0
        %3853 = vmatprep.subr.bf16.mxu0 0
        %3854 = vmatpush1.bf16.msra.mxu0 0
        %3855 = vmatprep.subr.bf16.mxu0 0
        %3856 = vmatpush1.bf16.msra.mxu0 0
        %3857 = vmatprep.subr.bf16.mxu0 0
        %3858 = vmatpush1.bf16.msra.mxu0 0
        %3859 = vmatprep.subr.bf16.mxu0 0
        %3860 = vmatpush1.bf16.msra.mxu0 0
        %3861 = vmatprep.subr.bf16.mxu0 0
        %3862 = vmatpush1.bf16.msra.mxu0 0
        %3863 = vmatprep.subr.bf16.mxu0 0
        %3864 = vmatpush1.bf16.msra.mxu0 0
        %3865 = vmatprep.mubr.bf16.mxu0 0
        %3866 = vmatmul.mubr.bf16.gmra.mrb[0].mxu0 %v661
        %v3867 = vpop.f32.mrb[0].mxu0
        %v3868 = vadd.f32 %v3771, %v3867
        %v3869 = vpop.f32.mrb[0].mxu0
        %v3870 = vpop.f32.mrb[0].mxu0
        %v3871 = vadd.f32 %v3774, %v3870
        %v3872 = vpop.f32.mrb[0].mxu0
        %3873 = vmatprep.mubr.bf16.mxu0 0
        %3874 = vmatmul.mubr.bf16.gmra.mrb[0].mxu0 %v664
        %v3875 = vpop.f32.mrb[0].mxu0
        %v3876 = vadd.f32 %v3779, %v3875
        %v3877 = vpop.f32.mrb[0].mxu0
        %v3878 = vpop.f32.mrb[0].mxu0
        %v3879 = vadd.f32 %v3782, %v3878
        %v3880 = vpop.f32.mrb[0].mxu0
        %3881 = vmatprep.mubr.bf16.mxu0 0
        %3882 = vmatmul.mubr.bf16.gmra.mrb[0].mxu0 %v667
        %v3883 = vpop.f32.mrb[0].mxu0
        %v3884 = vadd.f32 %v3787, %v3883
        %v3885 = vpop.f32.mrb[0].mxu0
        %v3886 = vpop.f32.mrb[0].mxu0
        %v3887 = vadd.f32 %v3790, %v3886
        %v3888 = vpop.f32.mrb[0].mxu0
        %3889 = vmatprep.mubr.bf16.mxu0 0
        %3890 = vmatmul.mubr.bf16.gmra.mrb[0].mxu0 %v670
        %v3891 = vpop.f32.mrb[0].mxu0
        %v3892 = vadd.f32 %v3795, %v3891
        %v3893 = vpop.f32.mrb[0].mxu0
        %v3894 = vpop.f32.mrb[0].mxu0
        %v3895 = vadd.f32 %v3798, %v3894
        %v3896 = vpop.f32.mrb[0].mxu0
        %3897 = vmatprep.mubr.bf16.mxu0 0
        %3898 = vmatmul.mubr.bf16.gmra.mrb[0].mxu0 %v797
        %v3899 = vpop.f32.mrb[0].mxu0
        %v3900 = vadd.f32 %v3803, %v3899
        %v3901 = vpop.f32.mrb[0].mxu0
        %v3902 = vpop.f32.mrb[0].mxu0
        %v3903 = vadd.f32 %v3806, %v3902
        %v3904 = vpop.f32.mrb[0].mxu0
        %3905 = vmatprep.mubr.bf16.mxu0 0
        %3906 = vmatmul.mubr.bf16.gmra.mrb[0].mxu0 %v1980
        %v3907 = vpop.f32.mrb[0].mxu0
        %v3908 = vadd.f32 %v3811, %v3907
        %v3909 = vpop.f32.mrb[0].mxu0
        %v3910 = vpop.f32.mrb[0].mxu0
        %v3911 = vadd.f32 %v3814, %v3910
        %v3912 = vpop.f32.mrb[0].mxu0
        %3913 = vmatprep.mubr.bf16.mxu0 0
        %3914 = vmatmul.mubr.bf16.gmra.mrb[0].mxu0 %v2648
        %v3915 = vpop.f32.mrb[0].mxu0
        %v3916 = vadd.f32 %v3819, %v3915
        %v3917 = vpop.f32.mrb[0].mxu0
        %v3918 = vpop.f32.mrb[0].mxu0
        %v3919 = vadd.f32 %v3822, %v3918
        %v3920 = vpop.f32.mrb[0].mxu0
        %3921 = vmatprep.mubr.bf16.mxu0 0
        %3922 = vmatmul.mubr.bf16.gmra.mrb[0].mxu0 %v3316
        %v3923 = vpop.f32.mrb[0].mxu0
        %v3924 = vadd.f32 %v3827, %v3923
        %v3925 = vpop.f32.mrb[0].mxu0
        %v3926 = vpop.f32.mrb[0].mxu0
        %v3927 = vadd.f32 %v3830, %v3926
        %v3928 = vpop.f32.mrb[0].mxu0
        %3929 = vdwg.mxu0
        %v3930 = vadd.f32 %v3262, %v3868
        %v3931 = vadd.f32 %v3263, %v3871
        %v3932 = vadd.f32 %v3264, %v3876
        %v3933 = vadd.f32 %v3265, %v3879
        %v3934 = vadd.f32 %v3266, %v3884
        %v3935 = vadd.f32 %v3267, %v3887
        %v3936 = vadd.f32 %v3268, %v3892
        %v3937 = vadd.f32 %v3269, %v3895
        %v3938 = vadd.f32 %v3270, %v3900
        %v3939 = vadd.f32 %v3271, %v3903
        %v3940 = vadd.f32 %v3272, %v3908
        %v3941 = vadd.f32 %v3273, %v3911
        %v3942 = vadd.f32 %v3274, %v3916
        %v3943 = vadd.f32 %v3275, %v3919
        %v3944 = vadd.f32 %v3276, %v3924
        %v3945 = vadd.f32 %v3277, %v3927
        %v3946 = vld [vmem:[%s3] sm:$0x1]
        %v3948 = vlaneseq
        %v3949 = vshrl.u32 %v3948, 7
        %v3950 = vsub.s32 0, %v3949
        %v3951 = vrot.slane %v3946, %v3950
        %v3953 = vmul.f32 %v3930, %v3951
        %v3954 = vmul.f32 %v3931, %v3951
        %v3955 = vmul.f32 %v3932, %v3951
        %v3956 = vmul.f32 %v3933, %v3951
        %v3957 = vmul.f32 %v3934, %v3951
        %v3958 = vmul.f32 %v3935, %v3951
        %v3959 = vmul.f32 %v3936, %v3951
        %v3960 = vmul.f32 %v3937, %v3951
        %v3961 = vmul.f32 %v3938, %v3951
        %v3962 = vmul.f32 %v3939, %v3951
        %v3963 = vmul.f32 %v3940, %v3951
        %v3964 = vmul.f32 %v3941, %v3951
        %v3965 = vmul.f32 %v3942, %v3951
        %v3966 = vmul.f32 %v3943, %v3951
        %v3967 = vmul.f32 %v3944, %v3951
        %v3968 = vmul.f32 %v3945, %v3951
        %v3969 = vld [vmem:[%s4] sm:$0x1]
        %v3971 = vlaneseq
        %v3972 = vshrl.u32 %v3971, 7
        %v3973 = vsub.s32 0, %v3972
        %v3974 = vrot.slane %v3969, %v3973
        %v3976 = vadd.f32 %v3953, %v3974
        %v3977 = vadd.f32 %v3954, %v3974
        %v3978 = vadd.f32 %v3955, %v3974
        %v3979 = vadd.f32 %v3956, %v3974
        %v3980 = vadd.f32 %v3957, %v3974
        %v3981 = vadd.f32 %v3958, %v3974
        %v3982 = vadd.f32 %v3959, %v3974
        %v3983 = vadd.f32 %v3960, %v3974
        %v3984 = vadd.f32 %v3961, %v3974
        %v3985 = vadd.f32 %v3962, %v3974
        %v3986 = vadd.f32 %v3963, %v3974
        %v3987 = vadd.f32 %v3964, %v3974
        %v3988 = vadd.f32 %v3965, %v3974
        %v3989 = vadd.f32 %v3966, %v3974
        %v3990 = vadd.f32 %v3967, %v3974
        %v3991 = vadd.f32 %v3968, %v3974
        %v3992 = vmax.f32 %v3976, 0.0
        %v3993 = vmax.f32 %v3977, 0.0
        %v3994 = vmax.f32 %v3978, 0.0
        %v3995 = vmax.f32 %v3979, 0.0
        %v3996 = vmax.f32 %v3980, 0.0
        %v3997 = vmax.f32 %v3981, 0.0
        %v3998 = vmax.f32 %v3982, 0.0
        %v3999 = vmax.f32 %v3983, 0.0
        %v4000 = vmax.f32 %v3984, 0.0
        %v4001 = vmax.f32 %v3985, 0.0
        %v4002 = vmax.f32 %v3986, 0.0
        %v4003 = vmax.f32 %v3987, 0.0
        %v4004 = vmax.f32 %v3988, 0.0
        %v4005 = vmax.f32 %v3989, 0.0
        %v4006 = vmax.f32 %v3990, 0.0
        %v4007 = vmax.f32 %v3991, 0.0
        %v4008 = vpack.c.bf16 %v3993, %v3992
        %v4009 = vpack.c.bf16 %v3995, %v3994
        %v4010 = vpack.c.bf16 %v3997, %v3996
        %v4011 = vpack.c.bf16 %v3999, %v3998
        %v4012 = vpack.c.bf16 %v4001, %v4000
        %v4013 = vpack.c.bf16 %v4003, %v4002
        %v4014 = vpack.c.bf16 %v4005, %v4004
        %v4015 = vpack.c.bf16 %v4007, %v4006
        %v4024 = vunpack.c.l.b16 %v4008
        %v4025 = vunpack.c.h.b16 %v4008
        %v4026 = vunpack.c.l.b16 %v4009
        %v4027 = vunpack.c.h.b16 %v4009
        %v4028 = vunpack.c.l.b16 %v4010
        %v4029 = vunpack.c.h.b16 %v4010
        %v4030 = vunpack.c.l.b16 %v4011
        %v4031 = vunpack.c.h.b16 %v4011
        %v4032 = vunpack.c.l.b16 %v4012
        %v4033 = vunpack.c.h.b16 %v4012
        %v4034 = vunpack.c.l.b16 %v4013
        %v4035 = vunpack.c.h.b16 %v4013
        %v4036 = vunpack.c.l.b16 %v4014
        %v4037 = vunpack.c.h.b16 %v4014
        %v4038 = vunpack.c.l.b16 %v4015
        %v4039 = vunpack.c.h.b16 %v4015
        %v4040 = vpack.c.b16 %v4024, %v4024
        %v4041 = vpack.c.b16 %v4025, %v4025
        %v4042 = vpack.c.b16 %v4026, %v4026
        %v4043 = vpack.c.b16 %v4027, %v4027
        %v4044 = vpack.c.b16 %v4028, %v4028
        %v4045 = vpack.c.b16 %v4029, %v4029
        %v4046 = vpack.c.b16 %v4030, %v4030
        %v4047 = vpack.c.b16 %v4031, %v4031
        %v4048 = vpack.c.b16 %v4032, %v4032
        %v4049 = vpack.c.b16 %v4033, %v4033
        %v4050 = vpack.c.b16 %v4034, %v4034
        %v4051 = vpack.c.b16 %v4035, %v4035
        %v4052 = vpack.c.b16 %v4036, %v4036
        %v4053 = vpack.c.b16 %v4037, %v4037
        %v4054 = vpack.c.b16 %v4038, %v4038
        %v4055 = vpack.c.b16 %v4039, %v4039
        %4072 = vst [vmem:[%s292] sm:$0xf] %v4040
        %4073 = vst [vmem:[%s292 + $0x4] sm:$0xf] %v4041
        %4074 = vst [vmem:[%s292 + $0x8] sm:$0xf] %v4042
        %4075 = vst [vmem:[%s292 + $0xc] sm:$0xf] %v4043
        %4076 = vst [vmem:[%s292 + $0x10] sm:$0xf] %v4044
        %4077 = vst [vmem:[%s292 + $0x14] sm:$0xf] %v4045
        %4078 = vst [vmem:[%s292 + $0x18] sm:$0xf] %v4046
        %4079 = vst [vmem:[%s292 + $0x1c] sm:$0xf] %v4047
        %4080 = vst [vmem:[%s292 + $0x20] sm:$0xf] %v4048
        %4081 = vst [vmem:[%s292 + $0x24] sm:$0xf] %v4049
        %4082 = vst [vmem:[%s292 + $0x28] sm:$0xf] %v4050
        %4083 = vst [vmem:[%s292 + $0x2c] sm:$0xf] %v4051
        %4084 = vst [vmem:[%s292 + $0x30] sm:$0xf] %v4052
        %4085 = vst [vmem:[%s292 + $0x34] sm:$0xf] %v4053
        %4086 = vst [vmem:[%s292 + $0x38] sm:$0xf] %v4054
        %4087 = vst [vmem:[%s292 + $0x3c] sm:$0xf] %v4055
        %s4088 = sand.u32 %s163, 1
        %s4089 = scalar_lea.sflag [#allocation4], %s4088
        %s4090 = sand.u32 %s163, 1
        %s4091 = smul.addr %s4090, 64
        %s4092 = scalar_lea.vmem [#allocation5], %s4091
        // Predicated region
        $region45: #{tpu_custom_call.1} parent=39 // pred_check
          %p4093 = pneg %p173
        $region46: #{tpu_custom_call.1} parent=39 // pred_check_branch
          %4095 = sbr.rel (%p4093) target = $region48
        $region47: #{tpu_custom_call.1} parent=39 // pred_region
          %s4096 = smul.u32 8, %s25
          %s4098 = ssub.s32 1024, 1024
          %4099 = vsyncadd %s4089, %s4098
          %s4100 = smul.addr %s4096, 2
          %s4101 = smul.addr %s24, 48
          %s4102 = sadd.s32 %s4100, %s4101
          %s4103 = smul.addr %s4102, 64
          %s4104 = scalar_lea.hbm %s5, %s4103
          %s4105 = sshll.u32 %s4092, 4
          %s4106 = int_to_ptr.vmem [resolvable:$true] %s4105
          %4111 = dma.vmem_to_hbm [thread:$0]  %s4106, 1024, %s4104, %s4089, 64, 64, 4
        $region48: #{tpu_custom_call.1} parent=39 // pred_fallthru
          _
      $region40: #{tpu_custom_call.1} parent=5 // pred_fallthru
        _
      %p4112 = scmp.le.s32.totalorder 2, %s15
      // Predicated region
      $region49: #{tpu_custom_call.1} parent=5 // pred_check
        %p4113 = pneg %p4112
      $region50: #{tpu_custom_call.1} parent=5 // pred_check_branch
        %4115 = sbr.rel (%p4113) target = $region52
      $region51: #{tpu_custom_call.1} parent=5 // pred_region
        %s4116 = ssub.s32 %s15, 2
        // Predicated region
        $region53: #{tpu_custom_call.1} parent=51 // pred_check
          %p4117 = pneg %p179
        $region54: #{tpu_custom_call.1} parent=51 // pred_check_branch
          %4119 = sbr.rel (%p4117) target = $region56
        $region55: #{tpu_custom_call.1} parent=51 // pred_region
          %s4120 = sand.u32 %s164, 1
          %s4121 = scalar_lea.sflag [#allocation4], %s4120
          %s4122 = sand.u32 %s164, 1
          %s4123 = smul.addr %s4122, 64
          %s4124 = scalar_lea.vmem [#allocation5], %s4123
          %4125 = dma.done %s4121, 1024
        $region56: #{tpu_custom_call.1} parent=51 // pred_fallthru
          _
      $region52: #{tpu_custom_call.1} parent=5 // pred_fallthru
        _
    $region6: #{tpu_custom_call.1} parent=1 // loop_footer
      %s19 = sadd.s32 1, %s15
    $region7: #{tpu_custom_call.1} parent=1 // loop_footer_branch
      %14 = sbr.rel target = $region3
    $region8: #{tpu_custom_call.1} parent=1 // loop_exit
      _
    %4126 = vsyncpa [#allocation3], 1
    %s4127 = scalar_lea.sflag [#allocation3], 1
    %4128 = vsyncpa %s4127, 1
    %4129 = vsyncpa [#allocation4], 1
    %s4130 = scalar_lea.sflag [#allocation4], 1
    %4131 = vsyncpa %s4130, 1

</llo_original>
